<compile_context>
chip_gen: v5e
topology: v5e:2x2
jax: 0.10.0
libtpu: 0.0.40
codegen_flags: <defaults>
</compile_context>

<pallas_src>
import functools
import math

import jax
import jax.numpy as jnp
from jax.experimental import pallas as pl
from jax.experimental.pallas import tpu as pltpu

LANE = 128


def _tree_reduce(terms, op):
    """Pairwise (log-depth) reduction of a Python list of arrays."""
    terms = list(terms)
    while len(terms) > 1:
        nxt = [op(terms[i], terms[i + 1]) for i in range(0, len(terms) - 1, 2)]
        if len(terms) % 2:
            nxt.append(terms[-1])
        terms = nxt
    return terms[0]


# ----------------------------------------------------------------------------
# Pallas kernel: recurrence + last-kernel contraction + ring trace + log_softmax
# ----------------------------------------------------------------------------
def trnet_kernel(feat_ref, w_ref, msum_ref, out_ref, state_sc, *,
                 t_total, has_remainder, unroll):
    # feat_ref : (tile_T, m, SUB, LANE)  feature chunk, batch on (sublane, lane)
    # w_ref    : (R*m*R,)  SMEM   shared-kernel weight, flat index (i*m + j)*R + k
    # msum_ref : (R*C,)    SMEM   last kernel pre-contracted over (j, ring trace r),
    #                             flat index i*C + c
    # out_ref  : (C, SUB, LANE)   log-softmax output for this batch block
    # state_sc : (R, SUB, LANE)   ring state persisted across the T grid axis
    tile_T, m, _, _ = feat_ref.shape
    R = state_sc.shape[0]
    C = out_ref.shape[0]
    t_blk = pl.program_id(1)
    n_blk = pl.num_programs(1)
    add = lambda a, b: a + b

    # state = ones at the first time block of every batch block
    @pl.when(t_blk == 0)
    def _():
        state_sc[...] = jnp.ones_like(state_sc)

    # Hoist the R*m*R shared-kernel scalars out of the time loop (cheap SMEM reads,
    # loop-invariant).  Each use below is scalar * (SUB,LANE) vreg slab; keeping
    # them as scalars (rather than pre-splatting R*m*R (SUB,LANE) arrays) avoids
    # blowing the 64-vreg budget at sub=16.
    w = [[[w_ref[(i * m + j) * R + k] for k in range(R)]
          for j in range(m)]
         for i in range(R)]

    def run_chain(num_steps, unroll_):
        # State carried in vregs as a tuple of (SUB, LANE) slabs; the VMEM scratch
        # is only read/written at T-block boundaries.
        state = tuple(state_sc[i] for i in range(R))

        def step(t, rows):
            x = feat_ref[t]                                     # (m, SUB, LANE)
            xs = [x[j] for j in range(m)]
            # p[i][j] = state_i * x_j   -- pure VPU, batch on lanes
            p = [[rows[i] * xs[j] for j in range(m)] for i in range(R)]
            new_rows = []
            for k in range(R):
                # tree-reduce the R*m terms: log-depth dependency chain
                terms = [w[i][j][k] * p[i][j] for i in range(R) for j in range(m)]
                new_rows.append(_tree_reduce(terms, add))
            return tuple(new_rows)

        return jax.lax.fori_loop(0, num_steps, step, state, unroll=unroll_)

    def writeback(state):
        for i in range(R):
            state_sc[i] = state[i]

    def epilogue(state):
        # last-kernel contraction with the ring trace folded into msum, then a
        # numerically stable log_softmax over the category axis.
        logits = []
        for c in range(C):
            terms = [msum_ref[i * C + c] * state[i] for i in range(R)]
            logits.append(_tree_reduce(terms, add))             # (SUB, LANE)
        mx = _tree_reduce(logits, jnp.maximum)
        den = _tree_reduce([jnp.exp(l - mx) for l in logits], add)
        lse = mx + jnp.log(den)
        for c in range(C):
            out_ref[c] = logits[c] - lse

    is_last = t_blk == n_blk - 1

    if not has_remainder:
        # T divides evenly into blocks: one statically-unrolled chain for all
        # blocks; skip the scratch writeback on the last block (epilogue consumes
        # the vreg carry directly).
        state = run_chain(tile_T, unroll_=unroll)

        @pl.when(jnp.logical_not(is_last))
        def _():
            writeback(state)

        @pl.when(is_last)
        def _():
            epilogue(state)
    else:
        # Ragged T: full blocks keep the statically-unrolled loop; the last block
        # runs exactly the remaining steps with a dynamic trip count (no wasted
        # or masked iterations, no divisibility requirement on tile_T).
        @pl.when(jnp.logical_not(is_last))
        def _():
            writeback(run_chain(tile_T, unroll_=unroll))

        @pl.when(is_last)
        def _():
            rem = t_total - t_blk * tile_T          # 1 <= rem <= tile_T
            epilogue(run_chain(rem, unroll_=None))


# ----------------------------------------------------------------------------
# Wrapper (plain-JAX glue: feature map, weight re-layout, pallas_call)
# ----------------------------------------------------------------------------
def trnet_shared_forward(x, w_shared, w_last, ranks, *, tile_t=None):
    R1, R2, R3 = ranks
    assert R1 == R2 == R3, "shared tensor-ring recurrence/trace requires equal ranks"
    R = R2
    B = x.shape[0]
    C = w_last.shape[0]
    m = w_shared.shape[1]
    assert m == 2, "FeatureMap default here is [cos, sin] (m = 2)"  # TODO(synk)

    # FeatureMap: pixels in [0,1] -> [cos(pi*x/2), sin(pi*x/2)]   (m = 2)
    # (kept outside the kernel on purpose; see header comment)
    pix = x.reshape(B, -1).astype(jnp.float32)                 # (B, T)
    T = pix.shape[1]
    ang = pix * (jnp.pi / 2.0)
    feats = jnp.stack([jnp.cos(ang), jnp.sin(ang)], axis=1)    # (B, m, T)
    feats = jnp.transpose(feats, (2, 1, 0))                    # (T, m, B)

    # batch -> (rows, 128) lane tiles.  Register-block the batch: up to 16 rows
    # (2 vregs per state row) per batch block, but keep >=2 batch blocks once the
    # batch spans >=16 rows so v7x's second TensorCore gets work ("parallel" axis).
    n_rows = max(1, -(-B // LANE))
    if n_rows <= 8:
        sub = n_rows               # block == full second-to-last dim (tiny batch)
    elif n_rows < 32:
        sub = 8                    # guarantees nb >= 2 once n_rows >= 16
    else:
        sub = 16                   # 2 vregs per state row; nb >= 2
    n_rows_p = -(-n_rows // sub) * sub
    nb = n_rows_p // sub
    Bp = n_rows_p * LANE
    # Zero-padded batch lanes get features (0, 0): the state collapses to 0 and
    # the logits to a uniform -log(C).  Harmless -- those lanes are stripped below.
    feats = jnp.pad(feats, ((0, 0), (0, 0), (0, Bp - B)))

    # Time tiling: balanced ~256-step tiles; no divisibility requirement (the
    # remainder block runs a dynamic-trip-count loop in the kernel).
    if tile_t is None:
        nt0 = max(1, -(-T // 256))
        tile_t = -(-T // nt0)
    # Keep the double-buffered feats block well under v7x's 32 MiB default scoped
    # VMEM (64 MiB physical): single buffer <= 12 MiB.
    max_tile_t = max(1, (12 * 2 ** 20) // (m * sub * LANE * 4))
    tile_t = max(1, min(tile_t, max_tile_t))
    nt = -(-T // tile_t)
    Tp = nt * tile_t
    has_remainder = (Tp != T)

    feats = jnp.pad(feats, ((0, Tp - T), (0, 0), (0, 0)))      # padded steps never run
    feats = feats.reshape(Tp, m, n_rows_p, LANE)

    # shared kernel W[i, j, k] -> flat SMEM scalar table
    w_flat = w_shared.astype(jnp.float32).reshape(-1)          # (R*m*R,)

    # Last kernel + ring trace, pre-contracted.  The recurrence state is identical
    # for every outer ring index r (init == ones, the step never mixes r), so:
    #   logits[b,c] = sum_i state[b,i] * M[i,c],   M[i,c] = sum_{j,r} Wl[c,i,j,r]
    m_sum = jnp.transpose(jnp.sum(w_last, axis=(2, 3)), (1, 0))  # (R, C)
    m_flat = m_sum.astype(jnp.float32).reshape(-1)             # (R*C,)

    unroll = True if tile_t <= 16 else 8

    kernel = functools.partial(trnet_kernel, t_total=T,
                               has_remainder=has_remainder, unroll=unroll)

    out_pad = pl.pallas_call(
        kernel,
        out_shape=jax.ShapeDtypeStruct((C, n_rows_p, LANE), jnp.float32),
        grid=(nb, nt),
        in_specs=[
            pl.BlockSpec((tile_t, m, sub, LANE), lambda b, t: (t, 0, b, 0)),
            pl.BlockSpec(memory_space=pltpu.MemorySpace.SMEM),
            pl.BlockSpec(memory_space=pltpu.MemorySpace.SMEM),
        ],
        out_specs=pl.BlockSpec((C, sub, LANE), lambda b, t: (0, b, 0)),
        scratch_shapes=[pltpu.VMEM((R, sub, LANE), jnp.float32)],
        compiler_params=pltpu.CompilerParams(
            dimension_semantics=("parallel", "arbitrary")),
    )(feats, w_flat, m_flat)

    logits = out_pad.reshape(C, Bp)[:, :B]                     # strip batch padding
    return jnp.transpose(logits, (1, 0))                       # (B, C)


# ----------------------------------------------------------------------------
# Pure-JAX reference (mirrors the PyTorch einsums, keeps the explicit R1 axis)
# ----------------------------------------------------------------------------
def trnet_shared_reference(x, w_shared, w_last, ranks):
    R1, R2, R3 = ranks
    B = x.shape[0]
    m = w_shared.shape[1]
    pix = x.reshape(B, -1).astype(jnp.float32)
    ang = pix * (jnp.pi / 2.0)
    feats = jnp.stack([jnp.cos(ang), jnp.sin(ang)], axis=-1)   # (B, T, m)
    feats = jnp.transpose(feats, (1, 0, 2))                    # (T, B, m)

    state = jnp.ones((R1, B, R2), dtype=jnp.float32)

    def step(state, xt):
        # einsum('bj,rbi->rbji') then einsum('ijk,rbji->rbk')
        new = jnp.einsum('bj,rbi,ijk->rbk', xt, state, w_shared)
        return new, None

    state, _ = jax.lax.scan(step, state, feats)

    pad = jnp.ones((B, m), dtype=jnp.float32)
    out = jnp.einsum('bj,rbi,cijk->cbrk', pad, state, w_last)  # (C, B, R1, R3)
    logits = jnp.trace(out, axis1=2, axis2=3).T                # (B, C)
    return jax.nn.log_softmax(logits, axis=1)


# ----------------------------------------------------------------------------
# Deterministic parameter init (xavier_uniform_, as in the PyTorch module)
# ----------------------------------------------------------------------------
def xavier_uniform(key, shape, gain):
    receptive = 1
    for d in shape[2:]:
        receptive *= d
    fan_in = shape[1] * receptive
    fan_out = shape[0] * receptive
    bound = gain * math.sqrt(6.0 / (fan_in + fan_out))
    return jax.random.uniform(key, shape, minval=-bound, maxval=bound,
                              dtype=jnp.float32)


if __name__ == "__main__":
    # Small, module-consistent shapes
    B, H, W = 2, 4, 4          # batch, spatial -> n = 16 pixels / divisions
    m = 2                      # local feature-map dimension
    R = 4                      # ranks = (R, R, R)
    C = 10                     # categories
    init_value = 1.0
    ranks = (R, R, R)

    key = jax.random.PRNGKey(0)
    k_x, k_w, k_wl = jax.random.split(key, 3)

    x = jax.random.uniform(k_x, (B, 1, H, W), dtype=jnp.float32)       # NCHW in [0,1]
    w_shared = xavier_uniform(k_w, (R, m, R), init_value)              # KernelSharedTensorRing
    w_last = xavier_uniform(k_wl, (C, R, m, R), init_value)            # LastKernelSharedTensorRing

    ref = trnet_shared_reference(x, w_shared, w_last, ranks)

    # default time tiling (single T block, fully unrolled chain)
    out = trnet_shared_forward(x, w_shared, w_last, ranks)
    out = jax.block_until_ready(out)
    assert out.shape == (B, C)
    assert jnp.allclose(out, ref, atol=2e-4, rtol=2e-4), (out, ref)

    # non-divisible time tiling: T=16, tile_t=6 -> 3 T blocks + dynamic remainder
    out2 = trnet_shared_forward(x, w_shared, w_last, ranks, tile_t=6)
    out2 = jax.block_until_ready(out2)
    assert jnp.allclose(out2, ref, atol=2e-4, rtol=2e-4), (out2, ref)

    print("KERNEL_OK")
</pallas_src>

<mosaic_0001>
module attributes {stable_mosaic.version = 11 : i64} {
  func.func @trnet_kernel(%arg0: i32, %arg1: i32, %arg2: memref<16x2x1x128xf32, #tpu.memory_space<vmem>>, %arg3: memref<32xf32, #tpu.memory_space<smem>>, %arg4: memref<40xf32, #tpu.memory_space<smem>>, %arg5: memref<10x1x128xf32, #tpu.memory_space<vmem>>, %arg6: memref<4x1x128xf32, #tpu.memory_space<vmem>>) attributes {dimension_semantics = [#tpu.dimension_semantics<parallel>, #tpu.dimension_semantics<arbitrary>], iteration_bounds = array<i64: 1, 1>, scalar_prefetch = 0 : i64, scratch_operands = 1 : i64, tpu.core_type = #tpu.core_type<tc>, window_params = [{transform_indices = @transform_0, window_bounds = array<i64: 16, 2, 1, 128>}, {transform_indices = @transform_1, window_bounds = array<i64: 32>}, {transform_indices = @transform_2, window_bounds = array<i64: 40>}, {transform_indices = @transform_3, window_bounds = array<i64: 10, 1, 128>}]} {
    %c0_i32 = arith.constant 0 : i32
    %0 = arith.cmpi eq, %arg1, %c0_i32 : i32
    %1 = arith.extui %0 : i1 to i32
    %c0_i32_0 = arith.constant 0 : i32
    %2 = arith.cmpi ne, %1, %c0_i32_0 : i32
    scf.if %2 {
      %cst = arith.constant 1.000000e+00 : f32
      %1761 = vector.broadcast %cst : f32 to vector<4x1x128xf32>
      %c0_65 = arith.constant 0 : index
      %c0_66 = arith.constant 0 : index
      %c0_67 = arith.constant 0 : index
      %1762 = vector.load %arg6[%c0_65, %c0_66, %c0_67] : memref<4x1x128xf32, #tpu.memory_space<vmem>>, vector<4x1x128xf32>
      tpu.vector_store %arg6[%c0_65, %c0_66, %c0_67], %1761 {strides = array<i32>} : memref<4x1x128xf32, #tpu.memory_space<vmem>>, vector<4x1x128xf32>,
    } else {
    }
    %c0 = arith.constant 0 : index
    %3 = memref.load %arg3[%c0] : memref<32xf32, #tpu.memory_space<smem>>
    %c1 = arith.constant 1 : index
    %4 = memref.load %arg3[%c1] : memref<32xf32, #tpu.memory_space<smem>>
    %c2 = arith.constant 2 : index
    %5 = memref.load %arg3[%c2] : memref<32xf32, #tpu.memory_space<smem>>
    %c3 = arith.constant 3 : index
    %6 = memref.load %arg3[%c3] : memref<32xf32, #tpu.memory_space<smem>>
    %c4 = arith.constant 4 : index
    %7 = memref.load %arg3[%c4] : memref<32xf32, #tpu.memory_space<smem>>
    %c5 = arith.constant 5 : index
    %8 = memref.load %arg3[%c5] : memref<32xf32, #tpu.memory_space<smem>>
    %c6 = arith.constant 6 : index
    %9 = memref.load %arg3[%c6] : memref<32xf32, #tpu.memory_space<smem>>
    %c7 = arith.constant 7 : index
    %10 = memref.load %arg3[%c7] : memref<32xf32, #tpu.memory_space<smem>>
    %c8 = arith.constant 8 : index
    %11 = memref.load %arg3[%c8] : memref<32xf32, #tpu.memory_space<smem>>
    %c9 = arith.constant 9 : index
    %12 = memref.load %arg3[%c9] : memref<32xf32, #tpu.memory_space<smem>>
    %c10 = arith.constant 10 : index
    %13 = memref.load %arg3[%c10] : memref<32xf32, #tpu.memory_space<smem>>
    %c11 = arith.constant 11 : index
    %14 = memref.load %arg3[%c11] : memref<32xf32, #tpu.memory_space<smem>>
    %c12 = arith.constant 12 : index
    %15 = memref.load %arg3[%c12] : memref<32xf32, #tpu.memory_space<smem>>
    %c13 = arith.constant 13 : index
    %16 = memref.load %arg3[%c13] : memref<32xf32, #tpu.memory_space<smem>>
    %c14 = arith.constant 14 : index
    %17 = memref.load %arg3[%c14] : memref<32xf32, #tpu.memory_space<smem>>
    %c15 = arith.constant 15 : index
    %18 = memref.load %arg3[%c15] : memref<32xf32, #tpu.memory_space<smem>>
    %c16 = arith.constant 16 : index
    %19 = memref.load %arg3[%c16] : memref<32xf32, #tpu.memory_space<smem>>
    %c17 = arith.constant 17 : index
    %20 = memref.load %arg3[%c17] : memref<32xf32, #tpu.memory_space<smem>>
    %c18 = arith.constant 18 : index
    %21 = memref.load %arg3[%c18] : memref<32xf32, #tpu.memory_space<smem>>
    %c19 = arith.constant 19 : index
    %22 = memref.load %arg3[%c19] : memref<32xf32, #tpu.memory_space<smem>>
    %c20 = arith.constant 20 : index
    %23 = memref.load %arg3[%c20] : memref<32xf32, #tpu.memory_space<smem>>
    %c21 = arith.constant 21 : index
    %24 = memref.load %arg3[%c21] : memref<32xf32, #tpu.memory_space<smem>>
    %c22 = arith.constant 22 : index
    %25 = memref.load %arg3[%c22] : memref<32xf32, #tpu.memory_space<smem>>
    %c23 = arith.constant 23 : index
    %26 = memref.load %arg3[%c23] : memref<32xf32, #tpu.memory_space<smem>>
    %c24 = arith.constant 24 : index
    %27 = memref.load %arg3[%c24] : memref<32xf32, #tpu.memory_space<smem>>
    %c25 = arith.constant 25 : index
    %28 = memref.load %arg3[%c25] : memref<32xf32, #tpu.memory_space<smem>>
    %c26 = arith.constant 26 : index
    %29 = memref.load %arg3[%c26] : memref<32xf32, #tpu.memory_space<smem>>
    %c27 = arith.constant 27 : index
    %30 = memref.load %arg3[%c27] : memref<32xf32, #tpu.memory_space<smem>>
    %c28 = arith.constant 28 : index
    %31 = memref.load %arg3[%c28] : memref<32xf32, #tpu.memory_space<smem>>
    %c29 = arith.constant 29 : index
    %32 = memref.load %arg3[%c29] : memref<32xf32, #tpu.memory_space<smem>>
    %c30 = arith.constant 30 : index
    %33 = memref.load %arg3[%c30] : memref<32xf32, #tpu.memory_space<smem>>
    %c31 = arith.constant 31 : index
    %34 = memref.load %arg3[%c31] : memref<32xf32, #tpu.memory_space<smem>>
    %c0_i32_1 = arith.constant 0 : i32
    %35 = arith.cmpi eq, %arg1, %c0_i32_1 : i32
    %c0_2 = arith.constant 0 : index
    %c0_3 = arith.constant 0 : index
    %c0_4 = arith.constant 0 : index
    %36 = vector.load %arg6[%c0_2, %c0_3, %c0_4] : memref<4x1x128xf32, #tpu.memory_space<vmem>>, vector<1x1x128xf32>
    %37 = vector.shape_cast %36 : vector<1x1x128xf32> to vector<1x128xf32>
    %c1_5 = arith.constant 1 : index
    %c0_6 = arith.constant 0 : index
    %c0_7 = arith.constant 0 : index
    %38 = vector.load %arg6[%c1_5, %c0_6, %c0_7] : memref<4x1x128xf32, #tpu.memory_space<vmem>>, vector<1x1x128xf32>
    %39 = vector.shape_cast %38 : vector<1x1x128xf32> to vector<1x128xf32>
    %c2_8 = arith.constant 2 : index
    %c0_9 = arith.constant 0 : index
    %c0_10 = arith.constant 0 : index
    %40 = vector.load %arg6[%c2_8, %c0_9, %c0_10] : memref<4x1x128xf32, #tpu.memory_space<vmem>>, vector<1x1x128xf32>
    %41 = vector.shape_cast %40 : vector<1x1x128xf32> to vector<1x128xf32>
    %c3_11 = arith.constant 3 : index
    %c0_12 = arith.constant 0 : index
    %c0_13 = arith.constant 0 : index
    %42 = vector.load %arg6[%c3_11, %c0_12, %c0_13] : memref<4x1x128xf32, #tpu.memory_space<vmem>>, vector<1x1x128xf32>
    %43 = vector.shape_cast %42 : vector<1x1x128xf32> to vector<1x128xf32>
    %c0_i32_14 = arith.constant 0 : i32
    %44 = arith.index_cast %c0_i32_14 : i32 to index
    %c0_15 = arith.constant 0 : index
    %c0_16 = arith.constant 0 : index
    %c0_17 = arith.constant 0 : index
    %45 = vector.load %arg2[%44, %c0_15, %c0_16, %c0_17] : memref<16x2x1x128xf32, #tpu.memory_space<vmem>>, vector<1x2x1x128xf32>
    %46 = vector.shape_cast %45 : vector<1x2x1x128xf32> to vector<2x1x128xf32>
    %47 = vector.extract_strided_slice %46 {offsets = [0, 0, 0], sizes = [1, 1, 128], strides = [1, 1, 1]} : vector<2x1x128xf32> to vector<1x1x128xf32>
    %48 = vector.shape_cast %47 : vector<1x1x128xf32> to vector<1x128xf32>
    %49 = vector.extract_strided_slice %46 {offsets = [1, 0, 0], sizes = [1, 1, 128], strides = [1, 1, 1]} : vector<2x1x128xf32> to vector<1x1x128xf32>
    %50 = vector.shape_cast %49 : vector<1x1x128xf32> to vector<1x128xf32>
    %51 = arith.mulf %37, %48 : vector<1x128xf32>
    %52 = arith.mulf %37, %50 : vector<1x128xf32>
    %53 = arith.mulf %39, %48 : vector<1x128xf32>
    %54 = arith.mulf %39, %50 : vector<1x128xf32>
    %55 = arith.mulf %41, %48 : vector<1x128xf32>
    %56 = arith.mulf %41, %50 : vector<1x128xf32>
    %57 = arith.mulf %43, %48 : vector<1x128xf32>
    %58 = arith.mulf %43, %50 : vector<1x128xf32>
    %59 = vector.broadcast %3 : f32 to vector<1x128xf32>
    %60 = arith.mulf %59, %51 : vector<1x128xf32>
    %61 = vector.broadcast %7 : f32 to vector<1x128xf32>
    %62 = arith.mulf %61, %52 : vector<1x128xf32>
    %63 = vector.broadcast %11 : f32 to vector<1x128xf32>
    %64 = arith.mulf %63, %53 : vector<1x128xf32>
    %65 = vector.broadcast %15 : f32 to vector<1x128xf32>
    %66 = arith.mulf %65, %54 : vector<1x128xf32>
    %67 = vector.broadcast %19 : f32 to vector<1x128xf32>
    %68 = arith.mulf %67, %55 : vector<1x128xf32>
    %69 = vector.broadcast %23 : f32 to vector<1x128xf32>
    %70 = arith.mulf %69, %56 : vector<1x128xf32>
    %71 = vector.broadcast %27 : f32 to vector<1x128xf32>
    %72 = arith.mulf %71, %57 : vector<1x128xf32>
    %73 = vector.broadcast %31 : f32 to vector<1x128xf32>
    %74 = arith.mulf %73, %58 : vector<1x128xf32>
    %75 = arith.addf %60, %62 : vector<1x128xf32>
    %76 = arith.addf %64, %66 : vector<1x128xf32>
    %77 = arith.addf %68, %70 : vector<1x128xf32>
    %78 = arith.addf %72, %74 : vector<1x128xf32>
    %79 = arith.addf %75, %76 : vector<1x128xf32>
    %80 = arith.addf %77, %78 : vector<1x128xf32>
    %81 = arith.addf %79, %80 : vector<1x128xf32>
    %82 = vector.broadcast %4 : f32 to vector<1x128xf32>
    %83 = arith.mulf %82, %51 : vector<1x128xf32>
    %84 = vector.broadcast %8 : f32 to vector<1x128xf32>
    %85 = arith.mulf %84, %52 : vector<1x128xf32>
    %86 = vector.broadcast %12 : f32 to vector<1x128xf32>
    %87 = arith.mulf %86, %53 : vector<1x128xf32>
    %88 = vector.broadcast %16 : f32 to vector<1x128xf32>
    %89 = arith.mulf %88, %54 : vector<1x128xf32>
    %90 = vector.broadcast %20 : f32 to vector<1x128xf32>
    %91 = arith.mulf %90, %55 : vector<1x128xf32>
    %92 = vector.broadcast %24 : f32 to vector<1x128xf32>
    %93 = arith.mulf %92, %56 : vector<1x128xf32>
    %94 = vector.broadcast %28 : f32 to vector<1x128xf32>
    %95 = arith.mulf %94, %57 : vector<1x128xf32>
    %96 = vector.broadcast %32 : f32 to vector<1x128xf32>
    %97 = arith.mulf %96, %58 : vector<1x128xf32>
    %98 = arith.addf %83, %85 : vector<1x128xf32>
    %99 = arith.addf %87, %89 : vector<1x128xf32>
    %100 = arith.addf %91, %93 : vector<1x128xf32>
    %101 = arith.addf %95, %97 : vector<1x128xf32>
    %102 = arith.addf %98, %99 : vector<1x128xf32>
    %103 = arith.addf %100, %101 : vector<1x128xf32>
    %104 = arith.addf %102, %103 : vector<1x128xf32>
    %105 = vector.broadcast %5 : f32 to vector<1x128xf32>
    %106 = arith.mulf %105, %51 : vector<1x128xf32>
    %107 = vector.broadcast %9 : f32 to vector<1x128xf32>
    %108 = arith.mulf %107, %52 : vector<1x128xf32>
    %109 = vector.broadcast %13 : f32 to vector<1x128xf32>
    %110 = arith.mulf %109, %53 : vector<1x128xf32>
    %111 = vector.broadcast %17 : f32 to vector<1x128xf32>
    %112 = arith.mulf %111, %54 : vector<1x128xf32>
    %113 = vector.broadcast %21 : f32 to vector<1x128xf32>
    %114 = arith.mulf %113, %55 : vector<1x128xf32>
    %115 = vector.broadcast %25 : f32 to vector<1x128xf32>
    %116 = arith.mulf %115, %56 : vector<1x128xf32>
    %117 = vector.broadcast %29 : f32 to vector<1x128xf32>
    %118 = arith.mulf %117, %57 : vector<1x128xf32>
    %119 = vector.broadcast %33 : f32 to vector<1x128xf32>
    %120 = arith.mulf %119, %58 : vector<1x128xf32>
    %121 = arith.addf %106, %108 : vector<1x128xf32>
    %122 = arith.addf %110, %112 : vector<1x128xf32>
    %123 = arith.addf %114, %116 : vector<1x128xf32>
    %124 = arith.addf %118, %120 : vector<1x128xf32>
    %125 = arith.addf %121, %122 : vector<1x128xf32>
    %126 = arith.addf %123, %124 : vector<1x128xf32>
    %127 = arith.addf %125, %126 : vector<1x128xf32>
    %128 = vector.broadcast %6 : f32 to vector<1x128xf32>
    %129 = arith.mulf %128, %51 : vector<1x128xf32>
    %130 = vector.broadcast %10 : f32 to vector<1x128xf32>
    %131 = arith.mulf %130, %52 : vector<1x128xf32>
    %132 = vector.broadcast %14 : f32 to vector<1x128xf32>
    %133 = arith.mulf %132, %53 : vector<1x128xf32>
    %134 = vector.broadcast %18 : f32 to vector<1x128xf32>
    %135 = arith.mulf %134, %54 : vector<1x128xf32>
    %136 = vector.broadcast %22 : f32 to vector<1x128xf32>
    %137 = arith.mulf %136, %55 : vector<1x128xf32>
    %138 = vector.broadcast %26 : f32 to vector<1x128xf32>
    %139 = arith.mulf %138, %56 : vector<1x128xf32>
    %140 = vector.broadcast %30 : f32 to vector<1x128xf32>
    %141 = arith.mulf %140, %57 : vector<1x128xf32>
    %142 = vector.broadcast %34 : f32 to vector<1x128xf32>
    %143 = arith.mulf %142, %58 : vector<1x128xf32>
    %144 = arith.addf %129, %131 : vector<1x128xf32>
    %145 = arith.addf %133, %135 : vector<1x128xf32>
    %146 = arith.addf %137, %139 : vector<1x128xf32>
    %147 = arith.addf %141, %143 : vector<1x128xf32>
    %148 = arith.addf %144, %145 : vector<1x128xf32>
    %149 = arith.addf %146, %147 : vector<1x128xf32>
    %150 = arith.addf %148, %149 : vector<1x128xf32>
    %c1_i32 = arith.constant 1 : i32
    %151 = arith.index_cast %c1_i32 : i32 to index
    %c0_18 = arith.constant 0 : index
    %c0_19 = arith.constant 0 : index
    %c0_20 = arith.constant 0 : index
    %152 = vector.load %arg2[%151, %c0_18, %c0_19, %c0_20] : memref<16x2x1x128xf32, #tpu.memory_space<vmem>>, vector<1x2x1x128xf32>
    %153 = vector.shape_cast %152 : vector<1x2x1x128xf32> to vector<2x1x128xf32>
    %154 = vector.extract_strided_slice %153 {offsets = [0, 0, 0], sizes = [1, 1, 128], strides = [1, 1, 1]} : vector<2x1x128xf32> to vector<1x1x128xf32>
    %155 = vector.shape_cast %154 : vector<1x1x128xf32> to vector<1x128xf32>
    %156 = vector.extract_strided_slice %153 {offsets = [1, 0, 0], sizes = [1, 1, 128], strides = [1, 1, 1]} : vector<2x1x128xf32> to vector<1x1x128xf32>
    %157 = vector.shape_cast %156 : vector<1x1x128xf32> to vector<1x128xf32>
    %158 = arith.mulf %81, %155 : vector<1x128xf32>
    %159 = arith.mulf %81, %157 : vector<1x128xf32>
    %160 = arith.mulf %104, %155 : vector<1x128xf32>
    %161 = arith.mulf %104, %157 : vector<1x128xf32>
    %162 = arith.mulf %127, %155 : vector<1x128xf32>
    %163 = arith.mulf %127, %157 : vector<1x128xf32>
    %164 = arith.mulf %150, %155 : vector<1x128xf32>
    %165 = arith.mulf %150, %157 : vector<1x128xf32>
    %166 = vector.broadcast %3 : f32 to vector<1x128xf32>
    %167 = arith.mulf %166, %158 : vector<1x128xf32>
    %168 = vector.broadcast %7 : f32 to vector<1x128xf32>
    %169 = arith.mulf %168, %159 : vector<1x128xf32>
    %170 = vector.broadcast %11 : f32 to vector<1x128xf32>
    %171 = arith.mulf %170, %160 : vector<1x128xf32>
    %172 = vector.broadcast %15 : f32 to vector<1x128xf32>
    %173 = arith.mulf %172, %161 : vector<1x128xf32>
    %174 = vector.broadcast %19 : f32 to vector<1x128xf32>
    %175 = arith.mulf %174, %162 : vector<1x128xf32>
    %176 = vector.broadcast %23 : f32 to vector<1x128xf32>
    %177 = arith.mulf %176, %163 : vector<1x128xf32>
    %178 = vector.broadcast %27 : f32 to vector<1x128xf32>
    %179 = arith.mulf %178, %164 : vector<1x128xf32>
    %180 = vector.broadcast %31 : f32 to vector<1x128xf32>
    %181 = arith.mulf %180, %165 : vector<1x128xf32>
    %182 = arith.addf %167, %169 : vector<1x128xf32>
    %183 = arith.addf %171, %173 : vector<1x128xf32>
    %184 = arith.addf %175, %177 : vector<1x128xf32>
    %185 = arith.addf %179, %181 : vector<1x128xf32>
    %186 = arith.addf %182, %183 : vector<1x128xf32>
    %187 = arith.addf %184, %185 : vector<1x128xf32>
    %188 = arith.addf %186, %187 : vector<1x128xf32>
    %189 = vector.broadcast %4 : f32 to vector<1x128xf32>
    %190 = arith.mulf %189, %158 : vector<1x128xf32>
    %191 = vector.broadcast %8 : f32 to vector<1x128xf32>
    %192 = arith.mulf %191, %159 : vector<1x128xf32>
    %193 = vector.broadcast %12 : f32 to vector<1x128xf32>
    %194 = arith.mulf %193, %160 : vector<1x128xf32>
    %195 = vector.broadcast %16 : f32 to vector<1x128xf32>
    %196 = arith.mulf %195, %161 : vector<1x128xf32>
    %197 = vector.broadcast %20 : f32 to vector<1x128xf32>
    %198 = arith.mulf %197, %162 : vector<1x128xf32>
    %199 = vector.broadcast %24 : f32 to vector<1x128xf32>
    %200 = arith.mulf %199, %163 : vector<1x128xf32>
    %201 = vector.broadcast %28 : f32 to vector<1x128xf32>
    %202 = arith.mulf %201, %164 : vector<1x128xf32>
    %203 = vector.broadcast %32 : f32 to vector<1x128xf32>
    %204 = arith.mulf %203, %165 : vector<1x128xf32>
    %205 = arith.addf %190, %192 : vector<1x128xf32>
    %206 = arith.addf %194, %196 : vector<1x128xf32>
    %207 = arith.addf %198, %200 : vector<1x128xf32>
    %208 = arith.addf %202, %204 : vector<1x128xf32>
    %209 = arith.addf %205, %206 : vector<1x128xf32>
    %210 = arith.addf %207, %208 : vector<1x128xf32>
    %211 = arith.addf %209, %210 : vector<1x128xf32>
    %212 = vector.broadcast %5 : f32 to vector<1x128xf32>
    %213 = arith.mulf %212, %158 : vector<1x128xf32>
    %214 = vector.broadcast %9 : f32 to vector<1x128xf32>
    %215 = arith.mulf %214, %159 : vector<1x128xf32>
    %216 = vector.broadcast %13 : f32 to vector<1x128xf32>
    %217 = arith.mulf %216, %160 : vector<1x128xf32>
    %218 = vector.broadcast %17 : f32 to vector<1x128xf32>
    %219 = arith.mulf %218, %161 : vector<1x128xf32>
    %220 = vector.broadcast %21 : f32 to vector<1x128xf32>
    %221 = arith.mulf %220, %162 : vector<1x128xf32>
    %222 = vector.broadcast %25 : f32 to vector<1x128xf32>
    %223 = arith.mulf %222, %163 : vector<1x128xf32>
    %224 = vector.broadcast %29 : f32 to vector<1x128xf32>
    %225 = arith.mulf %224, %164 : vector<1x128xf32>
    %226 = vector.broadcast %33 : f32 to vector<1x128xf32>
    %227 = arith.mulf %226, %165 : vector<1x128xf32>
    %228 = arith.addf %213, %215 : vector<1x128xf32>
    %229 = arith.addf %217, %219 : vector<1x128xf32>
    %230 = arith.addf %221, %223 : vector<1x128xf32>
    %231 = arith.addf %225, %227 : vector<1x128xf32>
    %232 = arith.addf %228, %229 : vector<1x128xf32>
    %233 = arith.addf %230, %231 : vector<1x128xf32>
    %234 = arith.addf %232, %233 : vector<1x128xf32>
    %235 = vector.broadcast %6 : f32 to vector<1x128xf32>
    %236 = arith.mulf %235, %158 : vector<1x128xf32>
    %237 = vector.broadcast %10 : f32 to vector<1x128xf32>
    %238 = arith.mulf %237, %159 : vector<1x128xf32>
    %239 = vector.broadcast %14 : f32 to vector<1x128xf32>
    %240 = arith.mulf %239, %160 : vector<1x128xf32>
    %241 = vector.broadcast %18 : f32 to vector<1x128xf32>
    %242 = arith.mulf %241, %161 : vector<1x128xf32>
    %243 = vector.broadcast %22 : f32 to vector<1x128xf32>
    %244 = arith.mulf %243, %162 : vector<1x128xf32>
    %245 = vector.broadcast %26 : f32 to vector<1x128xf32>
    %246 = arith.mulf %245, %163 : vector<1x128xf32>
    %247 = vector.broadcast %30 : f32 to vector<1x128xf32>
    %248 = arith.mulf %247, %164 : vector<1x128xf32>
    %249 = vector.broadcast %34 : f32 to vector<1x128xf32>
    %250 = arith.mulf %249, %165 : vector<1x128xf32>
    %251 = arith.addf %236, %238 : vector<1x128xf32>
    %252 = arith.addf %240, %242 : vector<1x128xf32>
    %253 = arith.addf %244, %246 : vector<1x128xf32>
    %254 = arith.addf %248, %250 : vector<1x128xf32>
    %255 = arith.addf %251, %252 : vector<1x128xf32>
    %256 = arith.addf %253, %254 : vector<1x128xf32>
    %257 = arith.addf %255, %256 : vector<1x128xf32>
    %c2_i32 = arith.constant 2 : i32
    %258 = arith.index_cast %c2_i32 : i32 to index
    %c0_21 = arith.constant 0 : index
    %c0_22 = arith.constant 0 : index
    %c0_23 = arith.constant 0 : index
    %259 = vector.load %arg2[%258, %c0_21, %c0_22, %c0_23] : memref<16x2x1x128xf32, #tpu.memory_space<vmem>>, vector<1x2x1x128xf32>
    %260 = vector.shape_cast %259 : vector<1x2x1x128xf32> to vector<2x1x128xf32>
    %261 = vector.extract_strided_slice %260 {offsets = [0, 0, 0], sizes = [1, 1, 128], strides = [1, 1, 1]} : vector<2x1x128xf32> to vector<1x1x128xf32>
    %262 = vector.shape_cast %261 : vector<1x1x128xf32> to vector<1x128xf32>
    %263 = vector.extract_strided_slice %260 {offsets = [1, 0, 0], sizes = [1, 1, 128], strides = [1, 1, 1]} : vector<2x1x128xf32> to vector<1x1x128xf32>
    %264 = vector.shape_cast %263 : vector<1x1x128xf32> to vector<1x128xf32>
    %265 = arith.mulf %188, %262 : vector<1x128xf32>
    %266 = arith.mulf %188, %264 : vector<1x128xf32>
    %267 = arith.mulf %211, %262 : vector<1x128xf32>
    %268 = arith.mulf %211, %264 : vector<1x128xf32>
    %269 = arith.mulf %234, %262 : vector<1x128xf32>
    %270 = arith.mulf %234, %264 : vector<1x128xf32>
    %271 = arith.mulf %257, %262 : vector<1x128xf32>
    %272 = arith.mulf %257, %264 : vector<1x128xf32>
    %273 = vector.broadcast %3 : f32 to vector<1x128xf32>
    %274 = arith.mulf %273, %265 : vector<1x128xf32>
    %275 = vector.broadcast %7 : f32 to vector<1x128xf32>
    %276 = arith.mulf %275, %266 : vector<1x128xf32>
    %277 = vector.broadcast %11 : f32 to vector<1x128xf32>
    %278 = arith.mulf %277, %267 : vector<1x128xf32>
    %279 = vector.broadcast %15 : f32 to vector<1x128xf32>
    %280 = arith.mulf %279, %268 : vector<1x128xf32>
    %281 = vector.broadcast %19 : f32 to vector<1x128xf32>
    %282 = arith.mulf %281, %269 : vector<1x128xf32>
    %283 = vector.broadcast %23 : f32 to vector<1x128xf32>
    %284 = arith.mulf %283, %270 : vector<1x128xf32>
    %285 = vector.broadcast %27 : f32 to vector<1x128xf32>
    %286 = arith.mulf %285, %271 : vector<1x128xf32>
    %287 = vector.broadcast %31 : f32 to vector<1x128xf32>
    %288 = arith.mulf %287, %272 : vector<1x128xf32>
    %289 = arith.addf %274, %276 : vector<1x128xf32>
    %290 = arith.addf %278, %280 : vector<1x128xf32>
    %291 = arith.addf %282, %284 : vector<1x128xf32>
    %292 = arith.addf %286, %288 : vector<1x128xf32>
    %293 = arith.addf %289, %290 : vector<1x128xf32>
    %294 = arith.addf %291, %292 : vector<1x128xf32>
    %295 = arith.addf %293, %294 : vector<1x128xf32>
    %296 = vector.broadcast %4 : f32 to vector<1x128xf32>
    %297 = arith.mulf %296, %265 : vector<1x128xf32>
    %298 = vector.broadcast %8 : f32 to vector<1x128xf32>
    %299 = arith.mulf %298, %266 : vector<1x128xf32>
    %300 = vector.broadcast %12 : f32 to vector<1x128xf32>
    %301 = arith.mulf %300, %267 : vector<1x128xf32>
    %302 = vector.broadcast %16 : f32 to vector<1x128xf32>
    %303 = arith.mulf %302, %268 : vector<1x128xf32>
    %304 = vector.broadcast %20 : f32 to vector<1x128xf32>
    %305 = arith.mulf %304, %269 : vector<1x128xf32>
    %306 = vector.broadcast %24 : f32 to vector<1x128xf32>
    %307 = arith.mulf %306, %270 : vector<1x128xf32>
    %308 = vector.broadcast %28 : f32 to vector<1x128xf32>
    %309 = arith.mulf %308, %271 : vector<1x128xf32>
    %310 = vector.broadcast %32 : f32 to vector<1x128xf32>
    %311 = arith.mulf %310, %272 : vector<1x128xf32>
    %312 = arith.addf %297, %299 : vector<1x128xf32>
    %313 = arith.addf %301, %303 : vector<1x128xf32>
    %314 = arith.addf %305, %307 : vector<1x128xf32>
    %315 = arith.addf %309, %311 : vector<1x128xf32>
    %316 = arith.addf %312, %313 : vector<1x128xf32>
    %317 = arith.addf %314, %315 : vector<1x128xf32>
    %318 = arith.addf %316, %317 : vector<1x128xf32>
    %319 = vector.broadcast %5 : f32 to vector<1x128xf32>
    %320 = arith.mulf %319, %265 : vector<1x128xf32>
    %321 = vector.broadcast %9 : f32 to vector<1x128xf32>
    %322 = arith.mulf %321, %266 : vector<1x128xf32>
    %323 = vector.broadcast %13 : f32 to vector<1x128xf32>
    %324 = arith.mulf %323, %267 : vector<1x128xf32>
    %325 = vector.broadcast %17 : f32 to vector<1x128xf32>
    %326 = arith.mulf %325, %268 : vector<1x128xf32>
    %327 = vector.broadcast %21 : f32 to vector<1x128xf32>
    %328 = arith.mulf %327, %269 : vector<1x128xf32>
    %329 = vector.broadcast %25 : f32 to vector<1x128xf32>
    %330 = arith.mulf %329, %270 : vector<1x128xf32>
    %331 = vector.broadcast %29 : f32 to vector<1x128xf32>
    %332 = arith.mulf %331, %271 : vector<1x128xf32>
    %333 = vector.broadcast %33 : f32 to vector<1x128xf32>
    %334 = arith.mulf %333, %272 : vector<1x128xf32>
    %335 = arith.addf %320, %322 : vector<1x128xf32>
    %336 = arith.addf %324, %326 : vector<1x128xf32>
    %337 = arith.addf %328, %330 : vector<1x128xf32>
    %338 = arith.addf %332, %334 : vector<1x128xf32>
    %339 = arith.addf %335, %336 : vector<1x128xf32>
    %340 = arith.addf %337, %338 : vector<1x128xf32>
    %341 = arith.addf %339, %340 : vector<1x128xf32>
    %342 = vector.broadcast %6 : f32 to vector<1x128xf32>
    %343 = arith.mulf %342, %265 : vector<1x128xf32>
    %344 = vector.broadcast %10 : f32 to vector<1x128xf32>
    %345 = arith.mulf %344, %266 : vector<1x128xf32>
    %346 = vector.broadcast %14 : f32 to vector<1x128xf32>
    %347 = arith.mulf %346, %267 : vector<1x128xf32>
    %348 = vector.broadcast %18 : f32 to vector<1x128xf32>
    %349 = arith.mulf %348, %268 : vector<1x128xf32>
    %350 = vector.broadcast %22 : f32 to vector<1x128xf32>
    %351 = arith.mulf %350, %269 : vector<1x128xf32>
    %352 = vector.broadcast %26 : f32 to vector<1x128xf32>
    %353 = arith.mulf %352, %270 : vector<1x128xf32>
    %354 = vector.broadcast %30 : f32 to vector<1x128xf32>
    %355 = arith.mulf %354, %271 : vector<1x128xf32>
    %356 = vector.broadcast %34 : f32 to vector<1x128xf32>
    %357 = arith.mulf %356, %272 : vector<1x128xf32>
    %358 = arith.addf %343, %345 : vector<1x128xf32>
    %359 = arith.addf %347, %349 : vector<1x128xf32>
    %360 = arith.addf %351, %353 : vector<1x128xf32>
    %361 = arith.addf %355, %357 : vector<1x128xf32>
    %362 = arith.addf %358, %359 : vector<1x128xf32>
    %363 = arith.addf %360, %361 : vector<1x128xf32>
    %364 = arith.addf %362, %363 : vector<1x128xf32>
    %c3_i32 = arith.constant 3 : i32
    %365 = arith.index_cast %c3_i32 : i32 to index
    %c0_24 = arith.constant 0 : index
    %c0_25 = arith.constant 0 : index
    %c0_26 = arith.constant 0 : index
    %366 = vector.load %arg2[%365, %c0_24, %c0_25, %c0_26] : memref<16x2x1x128xf32, #tpu.memory_space<vmem>>, vector<1x2x1x128xf32>
    %367 = vector.shape_cast %366 : vector<1x2x1x128xf32> to vector<2x1x128xf32>
    %368 = vector.extract_strided_slice %367 {offsets = [0, 0, 0], sizes = [1, 1, 128], strides = [1, 1, 1]} : vector<2x1x128xf32> to vector<1x1x128xf32>
    %369 = vector.shape_cast %368 : vector<1x1x128xf32> to vector<1x128xf32>
    %370 = vector.extract_strided_slice %367 {offsets = [1, 0, 0], sizes = [1, 1, 128], strides = [1, 1, 1]} : vector<2x1x128xf32> to vector<1x1x128xf32>
    %371 = vector.shape_cast %370 : vector<1x1x128xf32> to vector<1x128xf32>
    %372 = arith.mulf %295, %369 : vector<1x128xf32>
    %373 = arith.mulf %295, %371 : vector<1x128xf32>
    %374 = arith.mulf %318, %369 : vector<1x128xf32>
    %375 = arith.mulf %318, %371 : vector<1x128xf32>
    %376 = arith.mulf %341, %369 : vector<1x128xf32>
    %377 = arith.mulf %341, %371 : vector<1x128xf32>
    %378 = arith.mulf %364, %369 : vector<1x128xf32>
    %379 = arith.mulf %364, %371 : vector<1x128xf32>
    %380 = vector.broadcast %3 : f32 to vector<1x128xf32>
    %381 = arith.mulf %380, %372 : vector<1x128xf32>
    %382 = vector.broadcast %7 : f32 to vector<1x128xf32>
    %383 = arith.mulf %382, %373 : vector<1x128xf32>
    %384 = vector.broadcast %11 : f32 to vector<1x128xf32>
    %385 = arith.mulf %384, %374 : vector<1x128xf32>
    %386 = vector.broadcast %15 : f32 to vector<1x128xf32>
    %387 = arith.mulf %386, %375 : vector<1x128xf32>
    %388 = vector.broadcast %19 : f32 to vector<1x128xf32>
    %389 = arith.mulf %388, %376 : vector<1x128xf32>
    %390 = vector.broadcast %23 : f32 to vector<1x128xf32>
    %391 = arith.mulf %390, %377 : vector<1x128xf32>
    %392 = vector.broadcast %27 : f32 to vector<1x128xf32>
    %393 = arith.mulf %392, %378 : vector<1x128xf32>
    %394 = vector.broadcast %31 : f32 to vector<1x128xf32>
    %395 = arith.mulf %394, %379 : vector<1x128xf32>
    %396 = arith.addf %381, %383 : vector<1x128xf32>
    %397 = arith.addf %385, %387 : vector<1x128xf32>
    %398 = arith.addf %389, %391 : vector<1x128xf32>
    %399 = arith.addf %393, %395 : vector<1x128xf32>
    %400 = arith.addf %396, %397 : vector<1x128xf32>
    %401 = arith.addf %398, %399 : vector<1x128xf32>
    %402 = arith.addf %400, %401 : vector<1x128xf32>
    %403 = vector.broadcast %4 : f32 to vector<1x128xf32>
    %404 = arith.mulf %403, %372 : vector<1x128xf32>
    %405 = vector.broadcast %8 : f32 to vector<1x128xf32>
    %406 = arith.mulf %405, %373 : vector<1x128xf32>
    %407 = vector.broadcast %12 : f32 to vector<1x128xf32>
    %408 = arith.mulf %407, %374 : vector<1x128xf32>
    %409 = vector.broadcast %16 : f32 to vector<1x128xf32>
    %410 = arith.mulf %409, %375 : vector<1x128xf32>
    %411 = vector.broadcast %20 : f32 to vector<1x128xf32>
    %412 = arith.mulf %411, %376 : vector<1x128xf32>
    %413 = vector.broadcast %24 : f32 to vector<1x128xf32>
    %414 = arith.mulf %413, %377 : vector<1x128xf32>
    %415 = vector.broadcast %28 : f32 to vector<1x128xf32>
    %416 = arith.mulf %415, %378 : vector<1x128xf32>
    %417 = vector.broadcast %32 : f32 to vector<1x128xf32>
    %418 = arith.mulf %417, %379 : vector<1x128xf32>
    %419 = arith.addf %404, %406 : vector<1x128xf32>
    %420 = arith.addf %408, %410 : vector<1x128xf32>
    %421 = arith.addf %412, %414 : vector<1x128xf32>
    %422 = arith.addf %416, %418 : vector<1x128xf32>
    %423 = arith.addf %419, %420 : vector<1x128xf32>
    %424 = arith.addf %421, %422 : vector<1x128xf32>
    %425 = arith.addf %423, %424 : vector<1x128xf32>
    %426 = vector.broadcast %5 : f32 to vector<1x128xf32>
    %427 = arith.mulf %426, %372 : vector<1x128xf32>
    %428 = vector.broadcast %9 : f32 to vector<1x128xf32>
    %429 = arith.mulf %428, %373 : vector<1x128xf32>
    %430 = vector.broadcast %13 : f32 to vector<1x128xf32>
    %431 = arith.mulf %430, %374 : vector<1x128xf32>
    %432 = vector.broadcast %17 : f32 to vector<1x128xf32>
    %433 = arith.mulf %432, %375 : vector<1x128xf32>
    %434 = vector.broadcast %21 : f32 to vector<1x128xf32>
    %435 = arith.mulf %434, %376 : vector<1x128xf32>
    %436 = vector.broadcast %25 : f32 to vector<1x128xf32>
    %437 = arith.mulf %436, %377 : vector<1x128xf32>
    %438 = vector.broadcast %29 : f32 to vector<1x128xf32>
    %439 = arith.mulf %438, %378 : vector<1x128xf32>
    %440 = vector.broadcast %33 : f32 to vector<1x128xf32>
    %441 = arith.mulf %440, %379 : vector<1x128xf32>
    %442 = arith.addf %427, %429 : vector<1x128xf32>
    %443 = arith.addf %431, %433 : vector<1x128xf32>
    %444 = arith.addf %435, %437 : vector<1x128xf32>
    %445 = arith.addf %439, %441 : vector<1x128xf32>
    %446 = arith.addf %442, %443 : vector<1x128xf32>
    %447 = arith.addf %444, %445 : vector<1x128xf32>
    %448 = arith.addf %446, %447 : vector<1x128xf32>
    %449 = vector.broadcast %6 : f32 to vector<1x128xf32>
    %450 = arith.mulf %449, %372 : vector<1x128xf32>
    %451 = vector.broadcast %10 : f32 to vector<1x128xf32>
    %452 = arith.mulf %451, %373 : vector<1x128xf32>
    %453 = vector.broadcast %14 : f32 to vector<1x128xf32>
    %454 = arith.mulf %453, %374 : vector<1x128xf32>
    %455 = vector.broadcast %18 : f32 to vector<1x128xf32>
    %456 = arith.mulf %455, %375 : vector<1x128xf32>
    %457 = vector.broadcast %22 : f32 to vector<1x128xf32>
    %458 = arith.mulf %457, %376 : vector<1x128xf32>
    %459 = vector.broadcast %26 : f32 to vector<1x128xf32>
    %460 = arith.mulf %459, %377 : vector<1x128xf32>
    %461 = vector.broadcast %30 : f32 to vector<1x128xf32>
    %462 = arith.mulf %461, %378 : vector<1x128xf32>
    %463 = vector.broadcast %34 : f32 to vector<1x128xf32>
    %464 = arith.mulf %463, %379 : vector<1x128xf32>
    %465 = arith.addf %450, %452 : vector<1x128xf32>
    %466 = arith.addf %454, %456 : vector<1x128xf32>
    %467 = arith.addf %458, %460 : vector<1x128xf32>
    %468 = arith.addf %462, %464 : vector<1x128xf32>
    %469 = arith.addf %465, %466 : vector<1x128xf32>
    %470 = arith.addf %467, %468 : vector<1x128xf32>
    %471 = arith.addf %469, %470 : vector<1x128xf32>
    %c4_i32 = arith.constant 4 : i32
    %472 = arith.index_cast %c4_i32 : i32 to index
    %c0_27 = arith.constant 0 : index
    %c0_28 = arith.constant 0 : index
    %c0_29 = arith.constant 0 : index
    %473 = vector.load %arg2[%472, %c0_27, %c0_28, %c0_29] : memref<16x2x1x128xf32, #tpu.memory_space<vmem>>, vector<1x2x1x128xf32>
    %474 = vector.shape_cast %473 : vector<1x2x1x128xf32> to vector<2x1x128xf32>
    %475 = vector.extract_strided_slice %474 {offsets = [0, 0, 0], sizes = [1, 1, 128], strides = [1, 1, 1]} : vector<2x1x128xf32> to vector<1x1x128xf32>
    %476 = vector.shape_cast %475 : vector<1x1x128xf32> to vector<1x128xf32>
    %477 = vector.extract_strided_slice %474 {offsets = [1, 0, 0], sizes = [1, 1, 128], strides = [1, 1, 1]} : vector<2x1x128xf32> to vector<1x1x128xf32>
    %478 = vector.shape_cast %477 : vector<1x1x128xf32> to vector<1x128xf32>
    %479 = arith.mulf %402, %476 : vector<1x128xf32>
    %480 = arith.mulf %402, %478 : vector<1x128xf32>
    %481 = arith.mulf %425, %476 : vector<1x128xf32>
    %482 = arith.mulf %425, %478 : vector<1x128xf32>
    %483 = arith.mulf %448, %476 : vector<1x128xf32>
    %484 = arith.mulf %448, %478 : vector<1x128xf32>
    %485 = arith.mulf %471, %476 : vector<1x128xf32>
    %486 = arith.mulf %471, %478 : vector<1x128xf32>
    %487 = vector.broadcast %3 : f32 to vector<1x128xf32>
    %488 = arith.mulf %487, %479 : vector<1x128xf32>
    %489 = vector.broadcast %7 : f32 to vector<1x128xf32>
    %490 = arith.mulf %489, %480 : vector<1x128xf32>
    %491 = vector.broadcast %11 : f32 to vector<1x128xf32>
    %492 = arith.mulf %491, %481 : vector<1x128xf32>
    %493 = vector.broadcast %15 : f32 to vector<1x128xf32>
    %494 = arith.mulf %493, %482 : vector<1x128xf32>
    %495 = vector.broadcast %19 : f32 to vector<1x128xf32>
    %496 = arith.mulf %495, %483 : vector<1x128xf32>
    %497 = vector.broadcast %23 : f32 to vector<1x128xf32>
    %498 = arith.mulf %497, %484 : vector<1x128xf32>
    %499 = vector.broadcast %27 : f32 to vector<1x128xf32>
    %500 = arith.mulf %499, %485 : vector<1x128xf32>
    %501 = vector.broadcast %31 : f32 to vector<1x128xf32>
    %502 = arith.mulf %501, %486 : vector<1x128xf32>
    %503 = arith.addf %488, %490 : vector<1x128xf32>
    %504 = arith.addf %492, %494 : vector<1x128xf32>
    %505 = arith.addf %496, %498 : vector<1x128xf32>
    %506 = arith.addf %500, %502 : vector<1x128xf32>
    %507 = arith.addf %503, %504 : vector<1x128xf32>
    %508 = arith.addf %505, %506 : vector<1x128xf32>
    %509 = arith.addf %507, %508 : vector<1x128xf32>
    %510 = vector.broadcast %4 : f32 to vector<1x128xf32>
    %511 = arith.mulf %510, %479 : vector<1x128xf32>
    %512 = vector.broadcast %8 : f32 to vector<1x128xf32>
    %513 = arith.mulf %512, %480 : vector<1x128xf32>
    %514 = vector.broadcast %12 : f32 to vector<1x128xf32>
    %515 = arith.mulf %514, %481 : vector<1x128xf32>
    %516 = vector.broadcast %16 : f32 to vector<1x128xf32>
    %517 = arith.mulf %516, %482 : vector<1x128xf32>
    %518 = vector.broadcast %20 : f32 to vector<1x128xf32>
    %519 = arith.mulf %518, %483 : vector<1x128xf32>
    %520 = vector.broadcast %24 : f32 to vector<1x128xf32>
    %521 = arith.mulf %520, %484 : vector<1x128xf32>
    %522 = vector.broadcast %28 : f32 to vector<1x128xf32>
    %523 = arith.mulf %522, %485 : vector<1x128xf32>
    %524 = vector.broadcast %32 : f32 to vector<1x128xf32>
    %525 = arith.mulf %524, %486 : vector<1x128xf32>
    %526 = arith.addf %511, %513 : vector<1x128xf32>
    %527 = arith.addf %515, %517 : vector<1x128xf32>
    %528 = arith.addf %519, %521 : vector<1x128xf32>
    %529 = arith.addf %523, %525 : vector<1x128xf32>
    %530 = arith.addf %526, %527 : vector<1x128xf32>
    %531 = arith.addf %528, %529 : vector<1x128xf32>
    %532 = arith.addf %530, %531 : vector<1x128xf32>
    %533 = vector.broadcast %5 : f32 to vector<1x128xf32>
    %534 = arith.mulf %533, %479 : vector<1x128xf32>
    %535 = vector.broadcast %9 : f32 to vector<1x128xf32>
    %536 = arith.mulf %535, %480 : vector<1x128xf32>
    %537 = vector.broadcast %13 : f32 to vector<1x128xf32>
    %538 = arith.mulf %537, %481 : vector<1x128xf32>
    %539 = vector.broadcast %17 : f32 to vector<1x128xf32>
    %540 = arith.mulf %539, %482 : vector<1x128xf32>
    %541 = vector.broadcast %21 : f32 to vector<1x128xf32>
    %542 = arith.mulf %541, %483 : vector<1x128xf32>
    %543 = vector.broadcast %25 : f32 to vector<1x128xf32>
    %544 = arith.mulf %543, %484 : vector<1x128xf32>
    %545 = vector.broadcast %29 : f32 to vector<1x128xf32>
    %546 = arith.mulf %545, %485 : vector<1x128xf32>
    %547 = vector.broadcast %33 : f32 to vector<1x128xf32>
    %548 = arith.mulf %547, %486 : vector<1x128xf32>
    %549 = arith.addf %534, %536 : vector<1x128xf32>
    %550 = arith.addf %538, %540 : vector<1x128xf32>
    %551 = arith.addf %542, %544 : vector<1x128xf32>
    %552 = arith.addf %546, %548 : vector<1x128xf32>
    %553 = arith.addf %549, %550 : vector<1x128xf32>
    %554 = arith.addf %551, %552 : vector<1x128xf32>
    %555 = arith.addf %553, %554 : vector<1x128xf32>
    %556 = vector.broadcast %6 : f32 to vector<1x128xf32>
    %557 = arith.mulf %556, %479 : vector<1x128xf32>
    %558 = vector.broadcast %10 : f32 to vector<1x128xf32>
    %559 = arith.mulf %558, %480 : vector<1x128xf32>
    %560 = vector.broadcast %14 : f32 to vector<1x128xf32>
    %561 = arith.mulf %560, %481 : vector<1x128xf32>
    %562 = vector.broadcast %18 : f32 to vector<1x128xf32>
    %563 = arith.mulf %562, %482 : vector<1x128xf32>
    %564 = vector.broadcast %22 : f32 to vector<1x128xf32>
    %565 = arith.mulf %564, %483 : vector<1x128xf32>
    %566 = vector.broadcast %26 : f32 to vector<1x128xf32>
    %567 = arith.mulf %566, %484 : vector<1x128xf32>
    %568 = vector.broadcast %30 : f32 to vector<1x128xf32>
    %569 = arith.mulf %568, %485 : vector<1x128xf32>
    %570 = vector.broadcast %34 : f32 to vector<1x128xf32>
    %571 = arith.mulf %570, %486 : vector<1x128xf32>
    %572 = arith.addf %557, %559 : vector<1x128xf32>
    %573 = arith.addf %561, %563 : vector<1x128xf32>
    %574 = arith.addf %565, %567 : vector<1x128xf32>
    %575 = arith.addf %569, %571 : vector<1x128xf32>
    %576 = arith.addf %572, %573 : vector<1x128xf32>
    %577 = arith.addf %574, %575 : vector<1x128xf32>
    %578 = arith.addf %576, %577 : vector<1x128xf32>
    %c5_i32 = arith.constant 5 : i32
    %579 = arith.index_cast %c5_i32 : i32 to index
    %c0_30 = arith.constant 0 : index
    %c0_31 = arith.constant 0 : index
    %c0_32 = arith.constant 0 : index
    %580 = vector.load %arg2[%579, %c0_30, %c0_31, %c0_32] : memref<16x2x1x128xf32, #tpu.memory_space<vmem>>, vector<1x2x1x128xf32>
    %581 = vector.shape_cast %580 : vector<1x2x1x128xf32> to vector<2x1x128xf32>
    %582 = vector.extract_strided_slice %581 {offsets = [0, 0, 0], sizes = [1, 1, 128], strides = [1, 1, 1]} : vector<2x1x128xf32> to vector<1x1x128xf32>
    %583 = vector.shape_cast %582 : vector<1x1x128xf32> to vector<1x128xf32>
    %584 = vector.extract_strided_slice %581 {offsets = [1, 0, 0], sizes = [1, 1, 128], strides = [1, 1, 1]} : vector<2x1x128xf32> to vector<1x1x128xf32>
    %585 = vector.shape_cast %584 : vector<1x1x128xf32> to vector<1x128xf32>
    %586 = arith.mulf %509, %583 : vector<1x128xf32>
    %587 = arith.mulf %509, %585 : vector<1x128xf32>
    %588 = arith.mulf %532, %583 : vector<1x128xf32>
    %589 = arith.mulf %532, %585 : vector<1x128xf32>
    %590 = arith.mulf %555, %583 : vector<1x128xf32>
    %591 = arith.mulf %555, %585 : vector<1x128xf32>
    %592 = arith.mulf %578, %583 : vector<1x128xf32>
    %593 = arith.mulf %578, %585 : vector<1x128xf32>
    %594 = vector.broadcast %3 : f32 to vector<1x128xf32>
    %595 = arith.mulf %594, %586 : vector<1x128xf32>
    %596 = vector.broadcast %7 : f32 to vector<1x128xf32>
    %597 = arith.mulf %596, %587 : vector<1x128xf32>
    %598 = vector.broadcast %11 : f32 to vector<1x128xf32>
    %599 = arith.mulf %598, %588 : vector<1x128xf32>
    %600 = vector.broadcast %15 : f32 to vector<1x128xf32>
    %601 = arith.mulf %600, %589 : vector<1x128xf32>
    %602 = vector.broadcast %19 : f32 to vector<1x128xf32>
    %603 = arith.mulf %602, %590 : vector<1x128xf32>
    %604 = vector.broadcast %23 : f32 to vector<1x128xf32>
    %605 = arith.mulf %604, %591 : vector<1x128xf32>
    %606 = vector.broadcast %27 : f32 to vector<1x128xf32>
    %607 = arith.mulf %606, %592 : vector<1x128xf32>
    %608 = vector.broadcast %31 : f32 to vector<1x128xf32>
    %609 = arith.mulf %608, %593 : vector<1x128xf32>
    %610 = arith.addf %595, %597 : vector<1x128xf32>
    %611 = arith.addf %599, %601 : vector<1x128xf32>
    %612 = arith.addf %603, %605 : vector<1x128xf32>
    %613 = arith.addf %607, %609 : vector<1x128xf32>
    %614 = arith.addf %610, %611 : vector<1x128xf32>
    %615 = arith.addf %612, %613 : vector<1x128xf32>
    %616 = arith.addf %614, %615 : vector<1x128xf32>
    %617 = vector.broadcast %4 : f32 to vector<1x128xf32>
    %618 = arith.mulf %617, %586 : vector<1x128xf32>
    %619 = vector.broadcast %8 : f32 to vector<1x128xf32>
    %620 = arith.mulf %619, %587 : vector<1x128xf32>
    %621 = vector.broadcast %12 : f32 to vector<1x128xf32>
    %622 = arith.mulf %621, %588 : vector<1x128xf32>
    %623 = vector.broadcast %16 : f32 to vector<1x128xf32>
    %624 = arith.mulf %623, %589 : vector<1x128xf32>
    %625 = vector.broadcast %20 : f32 to vector<1x128xf32>
    %626 = arith.mulf %625, %590 : vector<1x128xf32>
    %627 = vector.broadcast %24 : f32 to vector<1x128xf32>
    %628 = arith.mulf %627, %591 : vector<1x128xf32>
    %629 = vector.broadcast %28 : f32 to vector<1x128xf32>
    %630 = arith.mulf %629, %592 : vector<1x128xf32>
    %631 = vector.broadcast %32 : f32 to vector<1x128xf32>
    %632 = arith.mulf %631, %593 : vector<1x128xf32>
    %633 = arith.addf %618, %620 : vector<1x128xf32>
    %634 = arith.addf %622, %624 : vector<1x128xf32>
    %635 = arith.addf %626, %628 : vector<1x128xf32>
    %636 = arith.addf %630, %632 : vector<1x128xf32>
    %637 = arith.addf %633, %634 : vector<1x128xf32>
    %638 = arith.addf %635, %636 : vector<1x128xf32>
    %639 = arith.addf %637, %638 : vector<1x128xf32>
    %640 = vector.broadcast %5 : f32 to vector<1x128xf32>
    %641 = arith.mulf %640, %586 : vector<1x128xf32>
    %642 = vector.broadcast %9 : f32 to vector<1x128xf32>
    %643 = arith.mulf %642, %587 : vector<1x128xf32>
    %644 = vector.broadcast %13 : f32 to vector<1x128xf32>
    %645 = arith.mulf %644, %588 : vector<1x128xf32>
    %646 = vector.broadcast %17 : f32 to vector<1x128xf32>
    %647 = arith.mulf %646, %589 : vector<1x128xf32>
    %648 = vector.broadcast %21 : f32 to vector<1x128xf32>
    %649 = arith.mulf %648, %590 : vector<1x128xf32>
    %650 = vector.broadcast %25 : f32 to vector<1x128xf32>
    %651 = arith.mulf %650, %591 : vector<1x128xf32>
    %652 = vector.broadcast %29 : f32 to vector<1x128xf32>
    %653 = arith.mulf %652, %592 : vector<1x128xf32>
    %654 = vector.broadcast %33 : f32 to vector<1x128xf32>
    %655 = arith.mulf %654, %593 : vector<1x128xf32>
    %656 = arith.addf %641, %643 : vector<1x128xf32>
    %657 = arith.addf %645, %647 : vector<1x128xf32>
    %658 = arith.addf %649, %651 : vector<1x128xf32>
    %659 = arith.addf %653, %655 : vector<1x128xf32>
    %660 = arith.addf %656, %657 : vector<1x128xf32>
    %661 = arith.addf %658, %659 : vector<1x128xf32>
    %662 = arith.addf %660, %661 : vector<1x128xf32>
    %663 = vector.broadcast %6 : f32 to vector<1x128xf32>
    %664 = arith.mulf %663, %586 : vector<1x128xf32>
    %665 = vector.broadcast %10 : f32 to vector<1x128xf32>
    %666 = arith.mulf %665, %587 : vector<1x128xf32>
    %667 = vector.broadcast %14 : f32 to vector<1x128xf32>
    %668 = arith.mulf %667, %588 : vector<1x128xf32>
    %669 = vector.broadcast %18 : f32 to vector<1x128xf32>
    %670 = arith.mulf %669, %589 : vector<1x128xf32>
    %671 = vector.broadcast %22 : f32 to vector<1x128xf32>
    %672 = arith.mulf %671, %590 : vector<1x128xf32>
    %673 = vector.broadcast %26 : f32 to vector<1x128xf32>
    %674 = arith.mulf %673, %591 : vector<1x128xf32>
    %675 = vector.broadcast %30 : f32 to vector<1x128xf32>
    %676 = arith.mulf %675, %592 : vector<1x128xf32>
    %677 = vector.broadcast %34 : f32 to vector<1x128xf32>
    %678 = arith.mulf %677, %593 : vector<1x128xf32>
    %679 = arith.addf %664, %666 : vector<1x128xf32>
    %680 = arith.addf %668, %670 : vector<1x128xf32>
    %681 = arith.addf %672, %674 : vector<1x128xf32>
    %682 = arith.addf %676, %678 : vector<1x128xf32>
    %683 = arith.addf %679, %680 : vector<1x128xf32>
    %684 = arith.addf %681, %682 : vector<1x128xf32>
    %685 = arith.addf %683, %684 : vector<1x128xf32>
    %c6_i32 = arith.constant 6 : i32
    %686 = arith.index_cast %c6_i32 : i32 to index
    %c0_33 = arith.constant 0 : index
    %c0_34 = arith.constant 0 : index
    %c0_35 = arith.constant 0 : index
    %687 = vector.load %arg2[%686, %c0_33, %c0_34, %c0_35] : memref<16x2x1x128xf32, #tpu.memory_space<vmem>>, vector<1x2x1x128xf32>
    %688 = vector.shape_cast %687 : vector<1x2x1x128xf32> to vector<2x1x128xf32>
    %689 = vector.extract_strided_slice %688 {offsets = [0, 0, 0], sizes = [1, 1, 128], strides = [1, 1, 1]} : vector<2x1x128xf32> to vector<1x1x128xf32>
    %690 = vector.shape_cast %689 : vector<1x1x128xf32> to vector<1x128xf32>
    %691 = vector.extract_strided_slice %688 {offsets = [1, 0, 0], sizes = [1, 1, 128], strides = [1, 1, 1]} : vector<2x1x128xf32> to vector<1x1x128xf32>
    %692 = vector.shape_cast %691 : vector<1x1x128xf32> to vector<1x128xf32>
    %693 = arith.mulf %616, %690 : vector<1x128xf32>
    %694 = arith.mulf %616, %692 : vector<1x128xf32>
    %695 = arith.mulf %639, %690 : vector<1x128xf32>
    %696 = arith.mulf %639, %692 : vector<1x128xf32>
    %697 = arith.mulf %662, %690 : vector<1x128xf32>
    %698 = arith.mulf %662, %692 : vector<1x128xf32>
    %699 = arith.mulf %685, %690 : vector<1x128xf32>
    %700 = arith.mulf %685, %692 : vector<1x128xf32>
    %701 = vector.broadcast %3 : f32 to vector<1x128xf32>
    %702 = arith.mulf %701, %693 : vector<1x128xf32>
    %703 = vector.broadcast %7 : f32 to vector<1x128xf32>
    %704 = arith.mulf %703, %694 : vector<1x128xf32>
    %705 = vector.broadcast %11 : f32 to vector<1x128xf32>
    %706 = arith.mulf %705, %695 : vector<1x128xf32>
    %707 = vector.broadcast %15 : f32 to vector<1x128xf32>
    %708 = arith.mulf %707, %696 : vector<1x128xf32>
    %709 = vector.broadcast %19 : f32 to vector<1x128xf32>
    %710 = arith.mulf %709, %697 : vector<1x128xf32>
    %711 = vector.broadcast %23 : f32 to vector<1x128xf32>
    %712 = arith.mulf %711, %698 : vector<1x128xf32>
    %713 = vector.broadcast %27 : f32 to vector<1x128xf32>
    %714 = arith.mulf %713, %699 : vector<1x128xf32>
    %715 = vector.broadcast %31 : f32 to vector<1x128xf32>
    %716 = arith.mulf %715, %700 : vector<1x128xf32>
    %717 = arith.addf %702, %704 : vector<1x128xf32>
    %718 = arith.addf %706, %708 : vector<1x128xf32>
    %719 = arith.addf %710, %712 : vector<1x128xf32>
    %720 = arith.addf %714, %716 : vector<1x128xf32>
    %721 = arith.addf %717, %718 : vector<1x128xf32>
    %722 = arith.addf %719, %720 : vector<1x128xf32>
    %723 = arith.addf %721, %722 : vector<1x128xf32>
    %724 = vector.broadcast %4 : f32 to vector<1x128xf32>
    %725 = arith.mulf %724, %693 : vector<1x128xf32>
    %726 = vector.broadcast %8 : f32 to vector<1x128xf32>
    %727 = arith.mulf %726, %694 : vector<1x128xf32>
    %728 = vector.broadcast %12 : f32 to vector<1x128xf32>
    %729 = arith.mulf %728, %695 : vector<1x128xf32>
    %730 = vector.broadcast %16 : f32 to vector<1x128xf32>
    %731 = arith.mulf %730, %696 : vector<1x128xf32>
    %732 = vector.broadcast %20 : f32 to vector<1x128xf32>
    %733 = arith.mulf %732, %697 : vector<1x128xf32>
    %734 = vector.broadcast %24 : f32 to vector<1x128xf32>
    %735 = arith.mulf %734, %698 : vector<1x128xf32>
    %736 = vector.broadcast %28 : f32 to vector<1x128xf32>
    %737 = arith.mulf %736, %699 : vector<1x128xf32>
    %738 = vector.broadcast %32 : f32 to vector<1x128xf32>
    %739 = arith.mulf %738, %700 : vector<1x128xf32>
    %740 = arith.addf %725, %727 : vector<1x128xf32>
    %741 = arith.addf %729, %731 : vector<1x128xf32>
    %742 = arith.addf %733, %735 : vector<1x128xf32>
    %743 = arith.addf %737, %739 : vector<1x128xf32>
    %744 = arith.addf %740, %741 : vector<1x128xf32>
    %745 = arith.addf %742, %743 : vector<1x128xf32>
    %746 = arith.addf %744, %745 : vector<1x128xf32>
    %747 = vector.broadcast %5 : f32 to vector<1x128xf32>
    %748 = arith.mulf %747, %693 : vector<1x128xf32>
    %749 = vector.broadcast %9 : f32 to vector<1x128xf32>
    %750 = arith.mulf %749, %694 : vector<1x128xf32>
    %751 = vector.broadcast %13 : f32 to vector<1x128xf32>
    %752 = arith.mulf %751, %695 : vector<1x128xf32>
    %753 = vector.broadcast %17 : f32 to vector<1x128xf32>
    %754 = arith.mulf %753, %696 : vector<1x128xf32>
    %755 = vector.broadcast %21 : f32 to vector<1x128xf32>
    %756 = arith.mulf %755, %697 : vector<1x128xf32>
    %757 = vector.broadcast %25 : f32 to vector<1x128xf32>
    %758 = arith.mulf %757, %698 : vector<1x128xf32>
    %759 = vector.broadcast %29 : f32 to vector<1x128xf32>
    %760 = arith.mulf %759, %699 : vector<1x128xf32>
    %761 = vector.broadcast %33 : f32 to vector<1x128xf32>
    %762 = arith.mulf %761, %700 : vector<1x128xf32>
    %763 = arith.addf %748, %750 : vector<1x128xf32>
    %764 = arith.addf %752, %754 : vector<1x128xf32>
    %765 = arith.addf %756, %758 : vector<1x128xf32>
    %766 = arith.addf %760, %762 : vector<1x128xf32>
    %767 = arith.addf %763, %764 : vector<1x128xf32>
    %768 = arith.addf %765, %766 : vector<1x128xf32>
    %769 = arith.addf %767, %768 : vector<1x128xf32>
    %770 = vector.broadcast %6 : f32 to vector<1x128xf32>
    %771 = arith.mulf %770, %693 : vector<1x128xf32>
    %772 = vector.broadcast %10 : f32 to vector<1x128xf32>
    %773 = arith.mulf %772, %694 : vector<1x128xf32>
    %774 = vector.broadcast %14 : f32 to vector<1x128xf32>
    %775 = arith.mulf %774, %695 : vector<1x128xf32>
    %776 = vector.broadcast %18 : f32 to vector<1x128xf32>
    %777 = arith.mulf %776, %696 : vector<1x128xf32>
    %778 = vector.broadcast %22 : f32 to vector<1x128xf32>
    %779 = arith.mulf %778, %697 : vector<1x128xf32>
    %780 = vector.broadcast %26 : f32 to vector<1x128xf32>
    %781 = arith.mulf %780, %698 : vector<1x128xf32>
    %782 = vector.broadcast %30 : f32 to vector<1x128xf32>
    %783 = arith.mulf %782, %699 : vector<1x128xf32>
    %784 = vector.broadcast %34 : f32 to vector<1x128xf32>
    %785 = arith.mulf %784, %700 : vector<1x128xf32>
    %786 = arith.addf %771, %773 : vector<1x128xf32>
    %787 = arith.addf %775, %777 : vector<1x128xf32>
    %788 = arith.addf %779, %781 : vector<1x128xf32>
    %789 = arith.addf %783, %785 : vector<1x128xf32>
    %790 = arith.addf %786, %787 : vector<1x128xf32>
    %791 = arith.addf %788, %789 : vector<1x128xf32>
    %792 = arith.addf %790, %791 : vector<1x128xf32>
    %c7_i32 = arith.constant 7 : i32
    %793 = arith.index_cast %c7_i32 : i32 to index
    %c0_36 = arith.constant 0 : index
    %c0_37 = arith.constant 0 : index
    %c0_38 = arith.constant 0 : index
    %794 = vector.load %arg2[%793, %c0_36, %c0_37, %c0_38] : memref<16x2x1x128xf32, #tpu.memory_space<vmem>>, vector<1x2x1x128xf32>
    %795 = vector.shape_cast %794 : vector<1x2x1x128xf32> to vector<2x1x128xf32>
    %796 = vector.extract_strided_slice %795 {offsets = [0, 0, 0], sizes = [1, 1, 128], strides = [1, 1, 1]} : vector<2x1x128xf32> to vector<1x1x128xf32>
    %797 = vector.shape_cast %796 : vector<1x1x128xf32> to vector<1x128xf32>
    %798 = vector.extract_strided_slice %795 {offsets = [1, 0, 0], sizes = [1, 1, 128], strides = [1, 1, 1]} : vector<2x1x128xf32> to vector<1x1x128xf32>
    %799 = vector.shape_cast %798 : vector<1x1x128xf32> to vector<1x128xf32>
    %800 = arith.mulf %723, %797 : vector<1x128xf32>
    %801 = arith.mulf %723, %799 : vector<1x128xf32>
    %802 = arith.mulf %746, %797 : vector<1x128xf32>
    %803 = arith.mulf %746, %799 : vector<1x128xf32>
    %804 = arith.mulf %769, %797 : vector<1x128xf32>
    %805 = arith.mulf %769, %799 : vector<1x128xf32>
    %806 = arith.mulf %792, %797 : vector<1x128xf32>
    %807 = arith.mulf %792, %799 : vector<1x128xf32>
    %808 = vector.broadcast %3 : f32 to vector<1x128xf32>
    %809 = arith.mulf %808, %800 : vector<1x128xf32>
    %810 = vector.broadcast %7 : f32 to vector<1x128xf32>
    %811 = arith.mulf %810, %801 : vector<1x128xf32>
    %812 = vector.broadcast %11 : f32 to vector<1x128xf32>
    %813 = arith.mulf %812, %802 : vector<1x128xf32>
    %814 = vector.broadcast %15 : f32 to vector<1x128xf32>
    %815 = arith.mulf %814, %803 : vector<1x128xf32>
    %816 = vector.broadcast %19 : f32 to vector<1x128xf32>
    %817 = arith.mulf %816, %804 : vector<1x128xf32>
    %818 = vector.broadcast %23 : f32 to vector<1x128xf32>
    %819 = arith.mulf %818, %805 : vector<1x128xf32>
    %820 = vector.broadcast %27 : f32 to vector<1x128xf32>
    %821 = arith.mulf %820, %806 : vector<1x128xf32>
    %822 = vector.broadcast %31 : f32 to vector<1x128xf32>
    %823 = arith.mulf %822, %807 : vector<1x128xf32>
    %824 = arith.addf %809, %811 : vector<1x128xf32>
    %825 = arith.addf %813, %815 : vector<1x128xf32>
    %826 = arith.addf %817, %819 : vector<1x128xf32>
    %827 = arith.addf %821, %823 : vector<1x128xf32>
    %828 = arith.addf %824, %825 : vector<1x128xf32>
    %829 = arith.addf %826, %827 : vector<1x128xf32>
    %830 = arith.addf %828, %829 : vector<1x128xf32>
    %831 = vector.broadcast %4 : f32 to vector<1x128xf32>
    %832 = arith.mulf %831, %800 : vector<1x128xf32>
    %833 = vector.broadcast %8 : f32 to vector<1x128xf32>
    %834 = arith.mulf %833, %801 : vector<1x128xf32>
    %835 = vector.broadcast %12 : f32 to vector<1x128xf32>
    %836 = arith.mulf %835, %802 : vector<1x128xf32>
    %837 = vector.broadcast %16 : f32 to vector<1x128xf32>
    %838 = arith.mulf %837, %803 : vector<1x128xf32>
    %839 = vector.broadcast %20 : f32 to vector<1x128xf32>
    %840 = arith.mulf %839, %804 : vector<1x128xf32>
    %841 = vector.broadcast %24 : f32 to vector<1x128xf32>
    %842 = arith.mulf %841, %805 : vector<1x128xf32>
    %843 = vector.broadcast %28 : f32 to vector<1x128xf32>
    %844 = arith.mulf %843, %806 : vector<1x128xf32>
    %845 = vector.broadcast %32 : f32 to vector<1x128xf32>
    %846 = arith.mulf %845, %807 : vector<1x128xf32>
    %847 = arith.addf %832, %834 : vector<1x128xf32>
    %848 = arith.addf %836, %838 : vector<1x128xf32>
    %849 = arith.addf %840, %842 : vector<1x128xf32>
    %850 = arith.addf %844, %846 : vector<1x128xf32>
    %851 = arith.addf %847, %848 : vector<1x128xf32>
    %852 = arith.addf %849, %850 : vector<1x128xf32>
    %853 = arith.addf %851, %852 : vector<1x128xf32>
    %854 = vector.broadcast %5 : f32 to vector<1x128xf32>
    %855 = arith.mulf %854, %800 : vector<1x128xf32>
    %856 = vector.broadcast %9 : f32 to vector<1x128xf32>
    %857 = arith.mulf %856, %801 : vector<1x128xf32>
    %858 = vector.broadcast %13 : f32 to vector<1x128xf32>
    %859 = arith.mulf %858, %802 : vector<1x128xf32>
    %860 = vector.broadcast %17 : f32 to vector<1x128xf32>
    %861 = arith.mulf %860, %803 : vector<1x128xf32>
    %862 = vector.broadcast %21 : f32 to vector<1x128xf32>
    %863 = arith.mulf %862, %804 : vector<1x128xf32>
    %864 = vector.broadcast %25 : f32 to vector<1x128xf32>
    %865 = arith.mulf %864, %805 : vector<1x128xf32>
    %866 = vector.broadcast %29 : f32 to vector<1x128xf32>
    %867 = arith.mulf %866, %806 : vector<1x128xf32>
    %868 = vector.broadcast %33 : f32 to vector<1x128xf32>
    %869 = arith.mulf %868, %807 : vector<1x128xf32>
    %870 = arith.addf %855, %857 : vector<1x128xf32>
    %871 = arith.addf %859, %861 : vector<1x128xf32>
    %872 = arith.addf %863, %865 : vector<1x128xf32>
    %873 = arith.addf %867, %869 : vector<1x128xf32>
    %874 = arith.addf %870, %871 : vector<1x128xf32>
    %875 = arith.addf %872, %873 : vector<1x128xf32>
    %876 = arith.addf %874, %875 : vector<1x128xf32>
    %877 = vector.broadcast %6 : f32 to vector<1x128xf32>
    %878 = arith.mulf %877, %800 : vector<1x128xf32>
    %879 = vector.broadcast %10 : f32 to vector<1x128xf32>
    %880 = arith.mulf %879, %801 : vector<1x128xf32>
    %881 = vector.broadcast %14 : f32 to vector<1x128xf32>
    %882 = arith.mulf %881, %802 : vector<1x128xf32>
    %883 = vector.broadcast %18 : f32 to vector<1x128xf32>
    %884 = arith.mulf %883, %803 : vector<1x128xf32>
    %885 = vector.broadcast %22 : f32 to vector<1x128xf32>
    %886 = arith.mulf %885, %804 : vector<1x128xf32>
    %887 = vector.broadcast %26 : f32 to vector<1x128xf32>
    %888 = arith.mulf %887, %805 : vector<1x128xf32>
    %889 = vector.broadcast %30 : f32 to vector<1x128xf32>
    %890 = arith.mulf %889, %806 : vector<1x128xf32>
    %891 = vector.broadcast %34 : f32 to vector<1x128xf32>
    %892 = arith.mulf %891, %807 : vector<1x128xf32>
    %893 = arith.addf %878, %880 : vector<1x128xf32>
    %894 = arith.addf %882, %884 : vector<1x128xf32>
    %895 = arith.addf %886, %888 : vector<1x128xf32>
    %896 = arith.addf %890, %892 : vector<1x128xf32>
    %897 = arith.addf %893, %894 : vector<1x128xf32>
    %898 = arith.addf %895, %896 : vector<1x128xf32>
    %899 = arith.addf %897, %898 : vector<1x128xf32>
    %c8_i32 = arith.constant 8 : i32
    %900 = arith.index_cast %c8_i32 : i32 to index
    %c0_39 = arith.constant 0 : index
    %c0_40 = arith.constant 0 : index
    %c0_41 = arith.constant 0 : index
    %901 = vector.load %arg2[%900, %c0_39, %c0_40, %c0_41] : memref<16x2x1x128xf32, #tpu.memory_space<vmem>>, vector<1x2x1x128xf32>
    %902 = vector.shape_cast %901 : vector<1x2x1x128xf32> to vector<2x1x128xf32>
    %903 = vector.extract_strided_slice %902 {offsets = [0, 0, 0], sizes = [1, 1, 128], strides = [1, 1, 1]} : vector<2x1x128xf32> to vector<1x1x128xf32>
    %904 = vector.shape_cast %903 : vector<1x1x128xf32> to vector<1x128xf32>
    %905 = vector.extract_strided_slice %902 {offsets = [1, 0, 0], sizes = [1, 1, 128], strides = [1, 1, 1]} : vector<2x1x128xf32> to vector<1x1x128xf32>
    %906 = vector.shape_cast %905 : vector<1x1x128xf32> to vector<1x128xf32>
    %907 = arith.mulf %830, %904 : vector<1x128xf32>
    %908 = arith.mulf %830, %906 : vector<1x128xf32>
    %909 = arith.mulf %853, %904 : vector<1x128xf32>
    %910 = arith.mulf %853, %906 : vector<1x128xf32>
    %911 = arith.mulf %876, %904 : vector<1x128xf32>
    %912 = arith.mulf %876, %906 : vector<1x128xf32>
    %913 = arith.mulf %899, %904 : vector<1x128xf32>
    %914 = arith.mulf %899, %906 : vector<1x128xf32>
    %915 = vector.broadcast %3 : f32 to vector<1x128xf32>
    %916 = arith.mulf %915, %907 : vector<1x128xf32>
    %917 = vector.broadcast %7 : f32 to vector<1x128xf32>
    %918 = arith.mulf %917, %908 : vector<1x128xf32>
    %919 = vector.broadcast %11 : f32 to vector<1x128xf32>
    %920 = arith.mulf %919, %909 : vector<1x128xf32>
    %921 = vector.broadcast %15 : f32 to vector<1x128xf32>
    %922 = arith.mulf %921, %910 : vector<1x128xf32>
    %923 = vector.broadcast %19 : f32 to vector<1x128xf32>
    %924 = arith.mulf %923, %911 : vector<1x128xf32>
    %925 = vector.broadcast %23 : f32 to vector<1x128xf32>
    %926 = arith.mulf %925, %912 : vector<1x128xf32>
    %927 = vector.broadcast %27 : f32 to vector<1x128xf32>
    %928 = arith.mulf %927, %913 : vector<1x128xf32>
    %929 = vector.broadcast %31 : f32 to vector<1x128xf32>
    %930 = arith.mulf %929, %914 : vector<1x128xf32>
    %931 = arith.addf %916, %918 : vector<1x128xf32>
    %932 = arith.addf %920, %922 : vector<1x128xf32>
    %933 = arith.addf %924, %926 : vector<1x128xf32>
    %934 = arith.addf %928, %930 : vector<1x128xf32>
    %935 = arith.addf %931, %932 : vector<1x128xf32>
    %936 = arith.addf %933, %934 : vector<1x128xf32>
    %937 = arith.addf %935, %936 : vector<1x128xf32>
    %938 = vector.broadcast %4 : f32 to vector<1x128xf32>
    %939 = arith.mulf %938, %907 : vector<1x128xf32>
    %940 = vector.broadcast %8 : f32 to vector<1x128xf32>
    %941 = arith.mulf %940, %908 : vector<1x128xf32>
    %942 = vector.broadcast %12 : f32 to vector<1x128xf32>
    %943 = arith.mulf %942, %909 : vector<1x128xf32>
    %944 = vector.broadcast %16 : f32 to vector<1x128xf32>
    %945 = arith.mulf %944, %910 : vector<1x128xf32>
    %946 = vector.broadcast %20 : f32 to vector<1x128xf32>
    %947 = arith.mulf %946, %911 : vector<1x128xf32>
    %948 = vector.broadcast %24 : f32 to vector<1x128xf32>
    %949 = arith.mulf %948, %912 : vector<1x128xf32>
    %950 = vector.broadcast %28 : f32 to vector<1x128xf32>
    %951 = arith.mulf %950, %913 : vector<1x128xf32>
    %952 = vector.broadcast %32 : f32 to vector<1x128xf32>
    %953 = arith.mulf %952, %914 : vector<1x128xf32>
    %954 = arith.addf %939, %941 : vector<1x128xf32>
    %955 = arith.addf %943, %945 : vector<1x128xf32>
    %956 = arith.addf %947, %949 : vector<1x128xf32>
    %957 = arith.addf %951, %953 : vector<1x128xf32>
    %958 = arith.addf %954, %955 : vector<1x128xf32>
    %959 = arith.addf %956, %957 : vector<1x128xf32>
    %960 = arith.addf %958, %959 : vector<1x128xf32>
    %961 = vector.broadcast %5 : f32 to vector<1x128xf32>
    %962 = arith.mulf %961, %907 : vector<1x128xf32>
    %963 = vector.broadcast %9 : f32 to vector<1x128xf32>
    %964 = arith.mulf %963, %908 : vector<1x128xf32>
    %965 = vector.broadcast %13 : f32 to vector<1x128xf32>
    %966 = arith.mulf %965, %909 : vector<1x128xf32>
    %967 = vector.broadcast %17 : f32 to vector<1x128xf32>
    %968 = arith.mulf %967, %910 : vector<1x128xf32>
    %969 = vector.broadcast %21 : f32 to vector<1x128xf32>
    %970 = arith.mulf %969, %911 : vector<1x128xf32>
    %971 = vector.broadcast %25 : f32 to vector<1x128xf32>
    %972 = arith.mulf %971, %912 : vector<1x128xf32>
    %973 = vector.broadcast %29 : f32 to vector<1x128xf32>
    %974 = arith.mulf %973, %913 : vector<1x128xf32>
    %975 = vector.broadcast %33 : f32 to vector<1x128xf32>
    %976 = arith.mulf %975, %914 : vector<1x128xf32>
    %977 = arith.addf %962, %964 : vector<1x128xf32>
    %978 = arith.addf %966, %968 : vector<1x128xf32>
    %979 = arith.addf %970, %972 : vector<1x128xf32>
    %980 = arith.addf %974, %976 : vector<1x128xf32>
    %981 = arith.addf %977, %978 : vector<1x128xf32>
    %982 = arith.addf %979, %980 : vector<1x128xf32>
    %983 = arith.addf %981, %982 : vector<1x128xf32>
    %984 = vector.broadcast %6 : f32 to vector<1x128xf32>
    %985 = arith.mulf %984, %907 : vector<1x128xf32>
    %986 = vector.broadcast %10 : f32 to vector<1x128xf32>
    %987 = arith.mulf %986, %908 : vector<1x128xf32>
    %988 = vector.broadcast %14 : f32 to vector<1x128xf32>
    %989 = arith.mulf %988, %909 : vector<1x128xf32>
    %990 = vector.broadcast %18 : f32 to vector<1x128xf32>
    %991 = arith.mulf %990, %910 : vector<1x128xf32>
    %992 = vector.broadcast %22 : f32 to vector<1x128xf32>
    %993 = arith.mulf %992, %911 : vector<1x128xf32>
    %994 = vector.broadcast %26 : f32 to vector<1x128xf32>
    %995 = arith.mulf %994, %912 : vector<1x128xf32>
    %996 = vector.broadcast %30 : f32 to vector<1x128xf32>
    %997 = arith.mulf %996, %913 : vector<1x128xf32>
    %998 = vector.broadcast %34 : f32 to vector<1x128xf32>
    %999 = arith.mulf %998, %914 : vector<1x128xf32>
    %1000 = arith.addf %985, %987 : vector<1x128xf32>
    %1001 = arith.addf %989, %991 : vector<1x128xf32>
    %1002 = arith.addf %993, %995 : vector<1x128xf32>
    %1003 = arith.addf %997, %999 : vector<1x128xf32>
    %1004 = arith.addf %1000, %1001 : vector<1x128xf32>
    %1005 = arith.addf %1002, %1003 : vector<1x128xf32>
    %1006 = arith.addf %1004, %1005 : vector<1x128xf32>
    %c9_i32 = arith.constant 9 : i32
    %1007 = arith.index_cast %c9_i32 : i32 to index
    %c0_42 = arith.constant 0 : index
    %c0_43 = arith.constant 0 : index
    %c0_44 = arith.constant 0 : index
    %1008 = vector.load %arg2[%1007, %c0_42, %c0_43, %c0_44] : memref<16x2x1x128xf32, #tpu.memory_space<vmem>>, vector<1x2x1x128xf32>
    %1009 = vector.shape_cast %1008 : vector<1x2x1x128xf32> to vector<2x1x128xf32>
    %1010 = vector.extract_strided_slice %1009 {offsets = [0, 0, 0], sizes = [1, 1, 128], strides = [1, 1, 1]} : vector<2x1x128xf32> to vector<1x1x128xf32>
    %1011 = vector.shape_cast %1010 : vector<1x1x128xf32> to vector<1x128xf32>
    %1012 = vector.extract_strided_slice %1009 {offsets = [1, 0, 0], sizes = [1, 1, 128], strides = [1, 1, 1]} : vector<2x1x128xf32> to vector<1x1x128xf32>
    %1013 = vector.shape_cast %1012 : vector<1x1x128xf32> to vector<1x128xf32>
    %1014 = arith.mulf %937, %1011 : vector<1x128xf32>
    %1015 = arith.mulf %937, %1013 : vector<1x128xf32>
    %1016 = arith.mulf %960, %1011 : vector<1x128xf32>
    %1017 = arith.mulf %960, %1013 : vector<1x128xf32>
    %1018 = arith.mulf %983, %1011 : vector<1x128xf32>
    %1019 = arith.mulf %983, %1013 : vector<1x128xf32>
    %1020 = arith.mulf %1006, %1011 : vector<1x128xf32>
    %1021 = arith.mulf %1006, %1013 : vector<1x128xf32>
    %1022 = vector.broadcast %3 : f32 to vector<1x128xf32>
    %1023 = arith.mulf %1022, %1014 : vector<1x128xf32>
    %1024 = vector.broadcast %7 : f32 to vector<1x128xf32>
    %1025 = arith.mulf %1024, %1015 : vector<1x128xf32>
    %1026 = vector.broadcast %11 : f32 to vector<1x128xf32>
    %1027 = arith.mulf %1026, %1016 : vector<1x128xf32>
    %1028 = vector.broadcast %15 : f32 to vector<1x128xf32>
    %1029 = arith.mulf %1028, %1017 : vector<1x128xf32>
    %1030 = vector.broadcast %19 : f32 to vector<1x128xf32>
    %1031 = arith.mulf %1030, %1018 : vector<1x128xf32>
    %1032 = vector.broadcast %23 : f32 to vector<1x128xf32>
    %1033 = arith.mulf %1032, %1019 : vector<1x128xf32>
    %1034 = vector.broadcast %27 : f32 to vector<1x128xf32>
    %1035 = arith.mulf %1034, %1020 : vector<1x128xf32>
    %1036 = vector.broadcast %31 : f32 to vector<1x128xf32>
    %1037 = arith.mulf %1036, %1021 : vector<1x128xf32>
    %1038 = arith.addf %1023, %1025 : vector<1x128xf32>
    %1039 = arith.addf %1027, %1029 : vector<1x128xf32>
    %1040 = arith.addf %1031, %1033 : vector<1x128xf32>
    %1041 = arith.addf %1035, %1037 : vector<1x128xf32>
    %1042 = arith.addf %1038, %1039 : vector<1x128xf32>
    %1043 = arith.addf %1040, %1041 : vector<1x128xf32>
    %1044 = arith.addf %1042, %1043 : vector<1x128xf32>
    %1045 = vector.broadcast %4 : f32 to vector<1x128xf32>
    %1046 = arith.mulf %1045, %1014 : vector<1x128xf32>
    %1047 = vector.broadcast %8 : f32 to vector<1x128xf32>
    %1048 = arith.mulf %1047, %1015 : vector<1x128xf32>
    %1049 = vector.broadcast %12 : f32 to vector<1x128xf32>
    %1050 = arith.mulf %1049, %1016 : vector<1x128xf32>
    %1051 = vector.broadcast %16 : f32 to vector<1x128xf32>
    %1052 = arith.mulf %1051, %1017 : vector<1x128xf32>
    %1053 = vector.broadcast %20 : f32 to vector<1x128xf32>
    %1054 = arith.mulf %1053, %1018 : vector<1x128xf32>
    %1055 = vector.broadcast %24 : f32 to vector<1x128xf32>
    %1056 = arith.mulf %1055, %1019 : vector<1x128xf32>
    %1057 = vector.broadcast %28 : f32 to vector<1x128xf32>
    %1058 = arith.mulf %1057, %1020 : vector<1x128xf32>
    %1059 = vector.broadcast %32 : f32 to vector<1x128xf32>
    %1060 = arith.mulf %1059, %1021 : vector<1x128xf32>
    %1061 = arith.addf %1046, %1048 : vector<1x128xf32>
    %1062 = arith.addf %1050, %1052 : vector<1x128xf32>
    %1063 = arith.addf %1054, %1056 : vector<1x128xf32>
    %1064 = arith.addf %1058, %1060 : vector<1x128xf32>
    %1065 = arith.addf %1061, %1062 : vector<1x128xf32>
    %1066 = arith.addf %1063, %1064 : vector<1x128xf32>
    %1067 = arith.addf %1065, %1066 : vector<1x128xf32>
    %1068 = vector.broadcast %5 : f32 to vector<1x128xf32>
    %1069 = arith.mulf %1068, %1014 : vector<1x128xf32>
    %1070 = vector.broadcast %9 : f32 to vector<1x128xf32>
    %1071 = arith.mulf %1070, %1015 : vector<1x128xf32>
    %1072 = vector.broadcast %13 : f32 to vector<1x128xf32>
    %1073 = arith.mulf %1072, %1016 : vector<1x128xf32>
    %1074 = vector.broadcast %17 : f32 to vector<1x128xf32>
    %1075 = arith.mulf %1074, %1017 : vector<1x128xf32>
    %1076 = vector.broadcast %21 : f32 to vector<1x128xf32>
    %1077 = arith.mulf %1076, %1018 : vector<1x128xf32>
    %1078 = vector.broadcast %25 : f32 to vector<1x128xf32>
    %1079 = arith.mulf %1078, %1019 : vector<1x128xf32>
    %1080 = vector.broadcast %29 : f32 to vector<1x128xf32>
    %1081 = arith.mulf %1080, %1020 : vector<1x128xf32>
    %1082 = vector.broadcast %33 : f32 to vector<1x128xf32>
    %1083 = arith.mulf %1082, %1021 : vector<1x128xf32>
    %1084 = arith.addf %1069, %1071 : vector<1x128xf32>
    %1085 = arith.addf %1073, %1075 : vector<1x128xf32>
    %1086 = arith.addf %1077, %1079 : vector<1x128xf32>
    %1087 = arith.addf %1081, %1083 : vector<1x128xf32>
    %1088 = arith.addf %1084, %1085 : vector<1x128xf32>
    %1089 = arith.addf %1086, %1087 : vector<1x128xf32>
    %1090 = arith.addf %1088, %1089 : vector<1x128xf32>
    %1091 = vector.broadcast %6 : f32 to vector<1x128xf32>
    %1092 = arith.mulf %1091, %1014 : vector<1x128xf32>
    %1093 = vector.broadcast %10 : f32 to vector<1x128xf32>
    %1094 = arith.mulf %1093, %1015 : vector<1x128xf32>
    %1095 = vector.broadcast %14 : f32 to vector<1x128xf32>
    %1096 = arith.mulf %1095, %1016 : vector<1x128xf32>
    %1097 = vector.broadcast %18 : f32 to vector<1x128xf32>
    %1098 = arith.mulf %1097, %1017 : vector<1x128xf32>
    %1099 = vector.broadcast %22 : f32 to vector<1x128xf32>
    %1100 = arith.mulf %1099, %1018 : vector<1x128xf32>
    %1101 = vector.broadcast %26 : f32 to vector<1x128xf32>
    %1102 = arith.mulf %1101, %1019 : vector<1x128xf32>
    %1103 = vector.broadcast %30 : f32 to vector<1x128xf32>
    %1104 = arith.mulf %1103, %1020 : vector<1x128xf32>
    %1105 = vector.broadcast %34 : f32 to vector<1x128xf32>
    %1106 = arith.mulf %1105, %1021 : vector<1x128xf32>
    %1107 = arith.addf %1092, %1094 : vector<1x128xf32>
    %1108 = arith.addf %1096, %1098 : vector<1x128xf32>
    %1109 = arith.addf %1100, %1102 : vector<1x128xf32>
    %1110 = arith.addf %1104, %1106 : vector<1x128xf32>
    %1111 = arith.addf %1107, %1108 : vector<1x128xf32>
    %1112 = arith.addf %1109, %1110 : vector<1x128xf32>
    %1113 = arith.addf %1111, %1112 : vector<1x128xf32>
    %c10_i32 = arith.constant 10 : i32
    %1114 = arith.index_cast %c10_i32 : i32 to index
    %c0_45 = arith.constant 0 : index
    %c0_46 = arith.constant 0 : index
    %c0_47 = arith.constant 0 : index
    %1115 = vector.load %arg2[%1114, %c0_45, %c0_46, %c0_47] : memref<16x2x1x128xf32, #tpu.memory_space<vmem>>, vector<1x2x1x128xf32>
    %1116 = vector.shape_cast %1115 : vector<1x2x1x128xf32> to vector<2x1x128xf32>
    %1117 = vector.extract_strided_slice %1116 {offsets = [0, 0, 0], sizes = [1, 1, 128], strides = [1, 1, 1]} : vector<2x1x128xf32> to vector<1x1x128xf32>
    %1118 = vector.shape_cast %1117 : vector<1x1x128xf32> to vector<1x128xf32>
    %1119 = vector.extract_strided_slice %1116 {offsets = [1, 0, 0], sizes = [1, 1, 128], strides = [1, 1, 1]} : vector<2x1x128xf32> to vector<1x1x128xf32>
    %1120 = vector.shape_cast %1119 : vector<1x1x128xf32> to vector<1x128xf32>
    %1121 = arith.mulf %1044, %1118 : vector<1x128xf32>
    %1122 = arith.mulf %1044, %1120 : vector<1x128xf32>
    %1123 = arith.mulf %1067, %1118 : vector<1x128xf32>
    %1124 = arith.mulf %1067, %1120 : vector<1x128xf32>
    %1125 = arith.mulf %1090, %1118 : vector<1x128xf32>
    %1126 = arith.mulf %1090, %1120 : vector<1x128xf32>
    %1127 = arith.mulf %1113, %1118 : vector<1x128xf32>
    %1128 = arith.mulf %1113, %1120 : vector<1x128xf32>
    %1129 = vector.broadcast %3 : f32 to vector<1x128xf32>
    %1130 = arith.mulf %1129, %1121 : vector<1x128xf32>
    %1131 = vector.broadcast %7 : f32 to vector<1x128xf32>
    %1132 = arith.mulf %1131, %1122 : vector<1x128xf32>
    %1133 = vector.broadcast %11 : f32 to vector<1x128xf32>
    %1134 = arith.mulf %1133, %1123 : vector<1x128xf32>
    %1135 = vector.broadcast %15 : f32 to vector<1x128xf32>
    %1136 = arith.mulf %1135, %1124 : vector<1x128xf32>
    %1137 = vector.broadcast %19 : f32 to vector<1x128xf32>
    %1138 = arith.mulf %1137, %1125 : vector<1x128xf32>
    %1139 = vector.broadcast %23 : f32 to vector<1x128xf32>
    %1140 = arith.mulf %1139, %1126 : vector<1x128xf32>
    %1141 = vector.broadcast %27 : f32 to vector<1x128xf32>
    %1142 = arith.mulf %1141, %1127 : vector<1x128xf32>
    %1143 = vector.broadcast %31 : f32 to vector<1x128xf32>
    %1144 = arith.mulf %1143, %1128 : vector<1x128xf32>
    %1145 = arith.addf %1130, %1132 : vector<1x128xf32>
    %1146 = arith.addf %1134, %1136 : vector<1x128xf32>
    %1147 = arith.addf %1138, %1140 : vector<1x128xf32>
    %1148 = arith.addf %1142, %1144 : vector<1x128xf32>
    %1149 = arith.addf %1145, %1146 : vector<1x128xf32>
    %1150 = arith.addf %1147, %1148 : vector<1x128xf32>
    %1151 = arith.addf %1149, %1150 : vector<1x128xf32>
    %1152 = vector.broadcast %4 : f32 to vector<1x128xf32>
    %1153 = arith.mulf %1152, %1121 : vector<1x128xf32>
    %1154 = vector.broadcast %8 : f32 to vector<1x128xf32>
    %1155 = arith.mulf %1154, %1122 : vector<1x128xf32>
    %1156 = vector.broadcast %12 : f32 to vector<1x128xf32>
    %1157 = arith.mulf %1156, %1123 : vector<1x128xf32>
    %1158 = vector.broadcast %16 : f32 to vector<1x128xf32>
    %1159 = arith.mulf %1158, %1124 : vector<1x128xf32>
    %1160 = vector.broadcast %20 : f32 to vector<1x128xf32>
    %1161 = arith.mulf %1160, %1125 : vector<1x128xf32>
    %1162 = vector.broadcast %24 : f32 to vector<1x128xf32>
    %1163 = arith.mulf %1162, %1126 : vector<1x128xf32>
    %1164 = vector.broadcast %28 : f32 to vector<1x128xf32>
    %1165 = arith.mulf %1164, %1127 : vector<1x128xf32>
    %1166 = vector.broadcast %32 : f32 to vector<1x128xf32>
    %1167 = arith.mulf %1166, %1128 : vector<1x128xf32>
    %1168 = arith.addf %1153, %1155 : vector<1x128xf32>
    %1169 = arith.addf %1157, %1159 : vector<1x128xf32>
    %1170 = arith.addf %1161, %1163 : vector<1x128xf32>
    %1171 = arith.addf %1165, %1167 : vector<1x128xf32>
    %1172 = arith.addf %1168, %1169 : vector<1x128xf32>
    %1173 = arith.addf %1170, %1171 : vector<1x128xf32>
    %1174 = arith.addf %1172, %1173 : vector<1x128xf32>
    %1175 = vector.broadcast %5 : f32 to vector<1x128xf32>
    %1176 = arith.mulf %1175, %1121 : vector<1x128xf32>
    %1177 = vector.broadcast %9 : f32 to vector<1x128xf32>
    %1178 = arith.mulf %1177, %1122 : vector<1x128xf32>
    %1179 = vector.broadcast %13 : f32 to vector<1x128xf32>
    %1180 = arith.mulf %1179, %1123 : vector<1x128xf32>
    %1181 = vector.broadcast %17 : f32 to vector<1x128xf32>
    %1182 = arith.mulf %1181, %1124 : vector<1x128xf32>
    %1183 = vector.broadcast %21 : f32 to vector<1x128xf32>
    %1184 = arith.mulf %1183, %1125 : vector<1x128xf32>
    %1185 = vector.broadcast %25 : f32 to vector<1x128xf32>
    %1186 = arith.mulf %1185, %1126 : vector<1x128xf32>
    %1187 = vector.broadcast %29 : f32 to vector<1x128xf32>
    %1188 = arith.mulf %1187, %1127 : vector<1x128xf32>
    %1189 = vector.broadcast %33 : f32 to vector<1x128xf32>
    %1190 = arith.mulf %1189, %1128 : vector<1x128xf32>
    %1191 = arith.addf %1176, %1178 : vector<1x128xf32>
    %1192 = arith.addf %1180, %1182 : vector<1x128xf32>
    %1193 = arith.addf %1184, %1186 : vector<1x128xf32>
    %1194 = arith.addf %1188, %1190 : vector<1x128xf32>
    %1195 = arith.addf %1191, %1192 : vector<1x128xf32>
    %1196 = arith.addf %1193, %1194 : vector<1x128xf32>
    %1197 = arith.addf %1195, %1196 : vector<1x128xf32>
    %1198 = vector.broadcast %6 : f32 to vector<1x128xf32>
    %1199 = arith.mulf %1198, %1121 : vector<1x128xf32>
    %1200 = vector.broadcast %10 : f32 to vector<1x128xf32>
    %1201 = arith.mulf %1200, %1122 : vector<1x128xf32>
    %1202 = vector.broadcast %14 : f32 to vector<1x128xf32>
    %1203 = arith.mulf %1202, %1123 : vector<1x128xf32>
    %1204 = vector.broadcast %18 : f32 to vector<1x128xf32>
    %1205 = arith.mulf %1204, %1124 : vector<1x128xf32>
    %1206 = vector.broadcast %22 : f32 to vector<1x128xf32>
    %1207 = arith.mulf %1206, %1125 : vector<1x128xf32>
    %1208 = vector.broadcast %26 : f32 to vector<1x128xf32>
    %1209 = arith.mulf %1208, %1126 : vector<1x128xf32>
    %1210 = vector.broadcast %30 : f32 to vector<1x128xf32>
    %1211 = arith.mulf %1210, %1127 : vector<1x128xf32>
    %1212 = vector.broadcast %34 : f32 to vector<1x128xf32>
    %1213 = arith.mulf %1212, %1128 : vector<1x128xf32>
    %1214 = arith.addf %1199, %1201 : vector<1x128xf32>
    %1215 = arith.addf %1203, %1205 : vector<1x128xf32>
    %1216 = arith.addf %1207, %1209 : vector<1x128xf32>
    %1217 = arith.addf %1211, %1213 : vector<1x128xf32>
    %1218 = arith.addf %1214, %1215 : vector<1x128xf32>
    %1219 = arith.addf %1216, %1217 : vector<1x128xf32>
    %1220 = arith.addf %1218, %1219 : vector<1x128xf32>
    %c11_i32 = arith.constant 11 : i32
    %1221 = arith.index_cast %c11_i32 : i32 to index
    %c0_48 = arith.constant 0 : index
    %c0_49 = arith.constant 0 : index
    %c0_50 = arith.constant 0 : index
    %1222 = vector.load %arg2[%1221, %c0_48, %c0_49, %c0_50] : memref<16x2x1x128xf32, #tpu.memory_space<vmem>>, vector<1x2x1x128xf32>
    %1223 = vector.shape_cast %1222 : vector<1x2x1x128xf32> to vector<2x1x128xf32>
    %1224 = vector.extract_strided_slice %1223 {offsets = [0, 0, 0], sizes = [1, 1, 128], strides = [1, 1, 1]} : vector<2x1x128xf32> to vector<1x1x128xf32>
    %1225 = vector.shape_cast %1224 : vector<1x1x128xf32> to vector<1x128xf32>
    %1226 = vector.extract_strided_slice %1223 {offsets = [1, 0, 0], sizes = [1, 1, 128], strides = [1, 1, 1]} : vector<2x1x128xf32> to vector<1x1x128xf32>
    %1227 = vector.shape_cast %1226 : vector<1x1x128xf32> to vector<1x128xf32>
    %1228 = arith.mulf %1151, %1225 : vector<1x128xf32>
    %1229 = arith.mulf %1151, %1227 : vector<1x128xf32>
    %1230 = arith.mulf %1174, %1225 : vector<1x128xf32>
    %1231 = arith.mulf %1174, %1227 : vector<1x128xf32>
    %1232 = arith.mulf %1197, %1225 : vector<1x128xf32>
    %1233 = arith.mulf %1197, %1227 : vector<1x128xf32>
    %1234 = arith.mulf %1220, %1225 : vector<1x128xf32>
    %1235 = arith.mulf %1220, %1227 : vector<1x128xf32>
    %1236 = vector.broadcast %3 : f32 to vector<1x128xf32>
    %1237 = arith.mulf %1236, %1228 : vector<1x128xf32>
    %1238 = vector.broadcast %7 : f32 to vector<1x128xf32>
    %1239 = arith.mulf %1238, %1229 : vector<1x128xf32>
    %1240 = vector.broadcast %11 : f32 to vector<1x128xf32>
    %1241 = arith.mulf %1240, %1230 : vector<1x128xf32>
    %1242 = vector.broadcast %15 : f32 to vector<1x128xf32>
    %1243 = arith.mulf %1242, %1231 : vector<1x128xf32>
    %1244 = vector.broadcast %19 : f32 to vector<1x128xf32>
    %1245 = arith.mulf %1244, %1232 : vector<1x128xf32>
    %1246 = vector.broadcast %23 : f32 to vector<1x128xf32>
    %1247 = arith.mulf %1246, %1233 : vector<1x128xf32>
    %1248 = vector.broadcast %27 : f32 to vector<1x128xf32>
    %1249 = arith.mulf %1248, %1234 : vector<1x128xf32>
    %1250 = vector.broadcast %31 : f32 to vector<1x128xf32>
    %1251 = arith.mulf %1250, %1235 : vector<1x128xf32>
    %1252 = arith.addf %1237, %1239 : vector<1x128xf32>
    %1253 = arith.addf %1241, %1243 : vector<1x128xf32>
    %1254 = arith.addf %1245, %1247 : vector<1x128xf32>
    %1255 = arith.addf %1249, %1251 : vector<1x128xf32>
    %1256 = arith.addf %1252, %1253 : vector<1x128xf32>
    %1257 = arith.addf %1254, %1255 : vector<1x128xf32>
    %1258 = arith.addf %1256, %1257 : vector<1x128xf32>
    %1259 = vector.broadcast %4 : f32 to vector<1x128xf32>
    %1260 = arith.mulf %1259, %1228 : vector<1x128xf32>
    %1261 = vector.broadcast %8 : f32 to vector<1x128xf32>
    %1262 = arith.mulf %1261, %1229 : vector<1x128xf32>
    %1263 = vector.broadcast %12 : f32 to vector<1x128xf32>
    %1264 = arith.mulf %1263, %1230 : vector<1x128xf32>
    %1265 = vector.broadcast %16 : f32 to vector<1x128xf32>
    %1266 = arith.mulf %1265, %1231 : vector<1x128xf32>
    %1267 = vector.broadcast %20 : f32 to vector<1x128xf32>
    %1268 = arith.mulf %1267, %1232 : vector<1x128xf32>
    %1269 = vector.broadcast %24 : f32 to vector<1x128xf32>
    %1270 = arith.mulf %1269, %1233 : vector<1x128xf32>
    %1271 = vector.broadcast %28 : f32 to vector<1x128xf32>
    %1272 = arith.mulf %1271, %1234 : vector<1x128xf32>
    %1273 = vector.broadcast %32 : f32 to vector<1x128xf32>
    %1274 = arith.mulf %1273, %1235 : vector<1x128xf32>
    %1275 = arith.addf %1260, %1262 : vector<1x128xf32>
    %1276 = arith.addf %1264, %1266 : vector<1x128xf32>
    %1277 = arith.addf %1268, %1270 : vector<1x128xf32>
    %1278 = arith.addf %1272, %1274 : vector<1x128xf32>
    %1279 = arith.addf %1275, %1276 : vector<1x128xf32>
    %1280 = arith.addf %1277, %1278 : vector<1x128xf32>
    %1281 = arith.addf %1279, %1280 : vector<1x128xf32>
    %1282 = vector.broadcast %5 : f32 to vector<1x128xf32>
    %1283 = arith.mulf %1282, %1228 : vector<1x128xf32>
    %1284 = vector.broadcast %9 : f32 to vector<1x128xf32>
    %1285 = arith.mulf %1284, %1229 : vector<1x128xf32>
    %1286 = vector.broadcast %13 : f32 to vector<1x128xf32>
    %1287 = arith.mulf %1286, %1230 : vector<1x128xf32>
    %1288 = vector.broadcast %17 : f32 to vector<1x128xf32>
    %1289 = arith.mulf %1288, %1231 : vector<1x128xf32>
    %1290 = vector.broadcast %21 : f32 to vector<1x128xf32>
    %1291 = arith.mulf %1290, %1232 : vector<1x128xf32>
    %1292 = vector.broadcast %25 : f32 to vector<1x128xf32>
    %1293 = arith.mulf %1292, %1233 : vector<1x128xf32>
    %1294 = vector.broadcast %29 : f32 to vector<1x128xf32>
    %1295 = arith.mulf %1294, %1234 : vector<1x128xf32>
    %1296 = vector.broadcast %33 : f32 to vector<1x128xf32>
    %1297 = arith.mulf %1296, %1235 : vector<1x128xf32>
    %1298 = arith.addf %1283, %1285 : vector<1x128xf32>
    %1299 = arith.addf %1287, %1289 : vector<1x128xf32>
    %1300 = arith.addf %1291, %1293 : vector<1x128xf32>
    %1301 = arith.addf %1295, %1297 : vector<1x128xf32>
    %1302 = arith.addf %1298, %1299 : vector<1x128xf32>
    %1303 = arith.addf %1300, %1301 : vector<1x128xf32>
    %1304 = arith.addf %1302, %1303 : vector<1x128xf32>
    %1305 = vector.broadcast %6 : f32 to vector<1x128xf32>
    %1306 = arith.mulf %1305, %1228 : vector<1x128xf32>
    %1307 = vector.broadcast %10 : f32 to vector<1x128xf32>
    %1308 = arith.mulf %1307, %1229 : vector<1x128xf32>
    %1309 = vector.broadcast %14 : f32 to vector<1x128xf32>
    %1310 = arith.mulf %1309, %1230 : vector<1x128xf32>
    %1311 = vector.broadcast %18 : f32 to vector<1x128xf32>
    %1312 = arith.mulf %1311, %1231 : vector<1x128xf32>
    %1313 = vector.broadcast %22 : f32 to vector<1x128xf32>
    %1314 = arith.mulf %1313, %1232 : vector<1x128xf32>
    %1315 = vector.broadcast %26 : f32 to vector<1x128xf32>
    %1316 = arith.mulf %1315, %1233 : vector<1x128xf32>
    %1317 = vector.broadcast %30 : f32 to vector<1x128xf32>
    %1318 = arith.mulf %1317, %1234 : vector<1x128xf32>
    %1319 = vector.broadcast %34 : f32 to vector<1x128xf32>
    %1320 = arith.mulf %1319, %1235 : vector<1x128xf32>
    %1321 = arith.addf %1306, %1308 : vector<1x128xf32>
    %1322 = arith.addf %1310, %1312 : vector<1x128xf32>
    %1323 = arith.addf %1314, %1316 : vector<1x128xf32>
    %1324 = arith.addf %1318, %1320 : vector<1x128xf32>
    %1325 = arith.addf %1321, %1322 : vector<1x128xf32>
    %1326 = arith.addf %1323, %1324 : vector<1x128xf32>
    %1327 = arith.addf %1325, %1326 : vector<1x128xf32>
    %c12_i32 = arith.constant 12 : i32
    %1328 = arith.index_cast %c12_i32 : i32 to index
    %c0_51 = arith.constant 0 : index
    %c0_52 = arith.constant 0 : index
    %c0_53 = arith.constant 0 : index
    %1329 = vector.load %arg2[%1328, %c0_51, %c0_52, %c0_53] : memref<16x2x1x128xf32, #tpu.memory_space<vmem>>, vector<1x2x1x128xf32>
    %1330 = vector.shape_cast %1329 : vector<1x2x1x128xf32> to vector<2x1x128xf32>
    %1331 = vector.extract_strided_slice %1330 {offsets = [0, 0, 0], sizes = [1, 1, 128], strides = [1, 1, 1]} : vector<2x1x128xf32> to vector<1x1x128xf32>
    %1332 = vector.shape_cast %1331 : vector<1x1x128xf32> to vector<1x128xf32>
    %1333 = vector.extract_strided_slice %1330 {offsets = [1, 0, 0], sizes = [1, 1, 128], strides = [1, 1, 1]} : vector<2x1x128xf32> to vector<1x1x128xf32>
    %1334 = vector.shape_cast %1333 : vector<1x1x128xf32> to vector<1x128xf32>
    %1335 = arith.mulf %1258, %1332 : vector<1x128xf32>
    %1336 = arith.mulf %1258, %1334 : vector<1x128xf32>
    %1337 = arith.mulf %1281, %1332 : vector<1x128xf32>
    %1338 = arith.mulf %1281, %1334 : vector<1x128xf32>
    %1339 = arith.mulf %1304, %1332 : vector<1x128xf32>
    %1340 = arith.mulf %1304, %1334 : vector<1x128xf32>
    %1341 = arith.mulf %1327, %1332 : vector<1x128xf32>
    %1342 = arith.mulf %1327, %1334 : vector<1x128xf32>
    %1343 = vector.broadcast %3 : f32 to vector<1x128xf32>
    %1344 = arith.mulf %1343, %1335 : vector<1x128xf32>
    %1345 = vector.broadcast %7 : f32 to vector<1x128xf32>
    %1346 = arith.mulf %1345, %1336 : vector<1x128xf32>
    %1347 = vector.broadcast %11 : f32 to vector<1x128xf32>
    %1348 = arith.mulf %1347, %1337 : vector<1x128xf32>
    %1349 = vector.broadcast %15 : f32 to vector<1x128xf32>
    %1350 = arith.mulf %1349, %1338 : vector<1x128xf32>
    %1351 = vector.broadcast %19 : f32 to vector<1x128xf32>
    %1352 = arith.mulf %1351, %1339 : vector<1x128xf32>
    %1353 = vector.broadcast %23 : f32 to vector<1x128xf32>
    %1354 = arith.mulf %1353, %1340 : vector<1x128xf32>
    %1355 = vector.broadcast %27 : f32 to vector<1x128xf32>
    %1356 = arith.mulf %1355, %1341 : vector<1x128xf32>
    %1357 = vector.broadcast %31 : f32 to vector<1x128xf32>
    %1358 = arith.mulf %1357, %1342 : vector<1x128xf32>
    %1359 = arith.addf %1344, %1346 : vector<1x128xf32>
    %1360 = arith.addf %1348, %1350 : vector<1x128xf32>
    %1361 = arith.addf %1352, %1354 : vector<1x128xf32>
    %1362 = arith.addf %1356, %1358 : vector<1x128xf32>
    %1363 = arith.addf %1359, %1360 : vector<1x128xf32>
    %1364 = arith.addf %1361, %1362 : vector<1x128xf32>
    %1365 = arith.addf %1363, %1364 : vector<1x128xf32>
    %1366 = vector.broadcast %4 : f32 to vector<1x128xf32>
    %1367 = arith.mulf %1366, %1335 : vector<1x128xf32>
    %1368 = vector.broadcast %8 : f32 to vector<1x128xf32>
    %1369 = arith.mulf %1368, %1336 : vector<1x128xf32>
    %1370 = vector.broadcast %12 : f32 to vector<1x128xf32>
    %1371 = arith.mulf %1370, %1337 : vector<1x128xf32>
    %1372 = vector.broadcast %16 : f32 to vector<1x128xf32>
    %1373 = arith.mulf %1372, %1338 : vector<1x128xf32>
    %1374 = vector.broadcast %20 : f32 to vector<1x128xf32>
    %1375 = arith.mulf %1374, %1339 : vector<1x128xf32>
    %1376 = vector.broadcast %24 : f32 to vector<1x128xf32>
    %1377 = arith.mulf %1376, %1340 : vector<1x128xf32>
    %1378 = vector.broadcast %28 : f32 to vector<1x128xf32>
    %1379 = arith.mulf %1378, %1341 : vector<1x128xf32>
    %1380 = vector.broadcast %32 : f32 to vector<1x128xf32>
    %1381 = arith.mulf %1380, %1342 : vector<1x128xf32>
    %1382 = arith.addf %1367, %1369 : vector<1x128xf32>
    %1383 = arith.addf %1371, %1373 : vector<1x128xf32>
    %1384 = arith.addf %1375, %1377 : vector<1x128xf32>
    %1385 = arith.addf %1379, %1381 : vector<1x128xf32>
    %1386 = arith.addf %1382, %1383 : vector<1x128xf32>
    %1387 = arith.addf %1384, %1385 : vector<1x128xf32>
    %1388 = arith.addf %1386, %1387 : vector<1x128xf32>
    %1389 = vector.broadcast %5 : f32 to vector<1x128xf32>
    %1390 = arith.mulf %1389, %1335 : vector<1x128xf32>
    %1391 = vector.broadcast %9 : f32 to vector<1x128xf32>
    %1392 = arith.mulf %1391, %1336 : vector<1x128xf32>
    %1393 = vector.broadcast %13 : f32 to vector<1x128xf32>
    %1394 = arith.mulf %1393, %1337 : vector<1x128xf32>
    %1395 = vector.broadcast %17 : f32 to vector<1x128xf32>
    %1396 = arith.mulf %1395, %1338 : vector<1x128xf32>
    %1397 = vector.broadcast %21 : f32 to vector<1x128xf32>
    %1398 = arith.mulf %1397, %1339 : vector<1x128xf32>
    %1399 = vector.broadcast %25 : f32 to vector<1x128xf32>
    %1400 = arith.mulf %1399, %1340 : vector<1x128xf32>
    %1401 = vector.broadcast %29 : f32 to vector<1x128xf32>
    %1402 = arith.mulf %1401, %1341 : vector<1x128xf32>
    %1403 = vector.broadcast %33 : f32 to vector<1x128xf32>
    %1404 = arith.mulf %1403, %1342 : vector<1x128xf32>
    %1405 = arith.addf %1390, %1392 : vector<1x128xf32>
    %1406 = arith.addf %1394, %1396 : vector<1x128xf32>
    %1407 = arith.addf %1398, %1400 : vector<1x128xf32>
    %1408 = arith.addf %1402, %1404 : vector<1x128xf32>
    %1409 = arith.addf %1405, %1406 : vector<1x128xf32>
    %1410 = arith.addf %1407, %1408 : vector<1x128xf32>
    %1411 = arith.addf %1409, %1410 : vector<1x128xf32>
    %1412 = vector.broadcast %6 : f32 to vector<1x128xf32>
    %1413 = arith.mulf %1412, %1335 : vector<1x128xf32>
    %1414 = vector.broadcast %10 : f32 to vector<1x128xf32>
    %1415 = arith.mulf %1414, %1336 : vector<1x128xf32>
    %1416 = vector.broadcast %14 : f32 to vector<1x128xf32>
    %1417 = arith.mulf %1416, %1337 : vector<1x128xf32>
    %1418 = vector.broadcast %18 : f32 to vector<1x128xf32>
    %1419 = arith.mulf %1418, %1338 : vector<1x128xf32>
    %1420 = vector.broadcast %22 : f32 to vector<1x128xf32>
    %1421 = arith.mulf %1420, %1339 : vector<1x128xf32>
    %1422 = vector.broadcast %26 : f32 to vector<1x128xf32>
    %1423 = arith.mulf %1422, %1340 : vector<1x128xf32>
    %1424 = vector.broadcast %30 : f32 to vector<1x128xf32>
    %1425 = arith.mulf %1424, %1341 : vector<1x128xf32>
    %1426 = vector.broadcast %34 : f32 to vector<1x128xf32>
    %1427 = arith.mulf %1426, %1342 : vector<1x128xf32>
    %1428 = arith.addf %1413, %1415 : vector<1x128xf32>
    %1429 = arith.addf %1417, %1419 : vector<1x128xf32>
    %1430 = arith.addf %1421, %1423 : vector<1x128xf32>
    %1431 = arith.addf %1425, %1427 : vector<1x128xf32>
    %1432 = arith.addf %1428, %1429 : vector<1x128xf32>
    %1433 = arith.addf %1430, %1431 : vector<1x128xf32>
    %1434 = arith.addf %1432, %1433 : vector<1x128xf32>
    %c13_i32 = arith.constant 13 : i32
    %1435 = arith.index_cast %c13_i32 : i32 to index
    %c0_54 = arith.constant 0 : index
    %c0_55 = arith.constant 0 : index
    %c0_56 = arith.constant 0 : index
    %1436 = vector.load %arg2[%1435, %c0_54, %c0_55, %c0_56] : memref<16x2x1x128xf32, #tpu.memory_space<vmem>>, vector<1x2x1x128xf32>
    %1437 = vector.shape_cast %1436 : vector<1x2x1x128xf32> to vector<2x1x128xf32>
    %1438 = vector.extract_strided_slice %1437 {offsets = [0, 0, 0], sizes = [1, 1, 128], strides = [1, 1, 1]} : vector<2x1x128xf32> to vector<1x1x128xf32>
    %1439 = vector.shape_cast %1438 : vector<1x1x128xf32> to vector<1x128xf32>
    %1440 = vector.extract_strided_slice %1437 {offsets = [1, 0, 0], sizes = [1, 1, 128], strides = [1, 1, 1]} : vector<2x1x128xf32> to vector<1x1x128xf32>
    %1441 = vector.shape_cast %1440 : vector<1x1x128xf32> to vector<1x128xf32>
    %1442 = arith.mulf %1365, %1439 : vector<1x128xf32>
    %1443 = arith.mulf %1365, %1441 : vector<1x128xf32>
    %1444 = arith.mulf %1388, %1439 : vector<1x128xf32>
    %1445 = arith.mulf %1388, %1441 : vector<1x128xf32>
    %1446 = arith.mulf %1411, %1439 : vector<1x128xf32>
    %1447 = arith.mulf %1411, %1441 : vector<1x128xf32>
    %1448 = arith.mulf %1434, %1439 : vector<1x128xf32>
    %1449 = arith.mulf %1434, %1441 : vector<1x128xf32>
    %1450 = vector.broadcast %3 : f32 to vector<1x128xf32>
    %1451 = arith.mulf %1450, %1442 : vector<1x128xf32>
    %1452 = vector.broadcast %7 : f32 to vector<1x128xf32>
    %1453 = arith.mulf %1452, %1443 : vector<1x128xf32>
    %1454 = vector.broadcast %11 : f32 to vector<1x128xf32>
    %1455 = arith.mulf %1454, %1444 : vector<1x128xf32>
    %1456 = vector.broadcast %15 : f32 to vector<1x128xf32>
    %1457 = arith.mulf %1456, %1445 : vector<1x128xf32>
    %1458 = vector.broadcast %19 : f32 to vector<1x128xf32>
    %1459 = arith.mulf %1458, %1446 : vector<1x128xf32>
    %1460 = vector.broadcast %23 : f32 to vector<1x128xf32>
    %1461 = arith.mulf %1460, %1447 : vector<1x128xf32>
    %1462 = vector.broadcast %27 : f32 to vector<1x128xf32>
    %1463 = arith.mulf %1462, %1448 : vector<1x128xf32>
    %1464 = vector.broadcast %31 : f32 to vector<1x128xf32>
    %1465 = arith.mulf %1464, %1449 : vector<1x128xf32>
    %1466 = arith.addf %1451, %1453 : vector<1x128xf32>
    %1467 = arith.addf %1455, %1457 : vector<1x128xf32>
    %1468 = arith.addf %1459, %1461 : vector<1x128xf32>
    %1469 = arith.addf %1463, %1465 : vector<1x128xf32>
    %1470 = arith.addf %1466, %1467 : vector<1x128xf32>
    %1471 = arith.addf %1468, %1469 : vector<1x128xf32>
    %1472 = arith.addf %1470, %1471 : vector<1x128xf32>
    %1473 = vector.broadcast %4 : f32 to vector<1x128xf32>
    %1474 = arith.mulf %1473, %1442 : vector<1x128xf32>
    %1475 = vector.broadcast %8 : f32 to vector<1x128xf32>
    %1476 = arith.mulf %1475, %1443 : vector<1x128xf32>
    %1477 = vector.broadcast %12 : f32 to vector<1x128xf32>
    %1478 = arith.mulf %1477, %1444 : vector<1x128xf32>
    %1479 = vector.broadcast %16 : f32 to vector<1x128xf32>
    %1480 = arith.mulf %1479, %1445 : vector<1x128xf32>
    %1481 = vector.broadcast %20 : f32 to vector<1x128xf32>
    %1482 = arith.mulf %1481, %1446 : vector<1x128xf32>
    %1483 = vector.broadcast %24 : f32 to vector<1x128xf32>
    %1484 = arith.mulf %1483, %1447 : vector<1x128xf32>
    %1485 = vector.broadcast %28 : f32 to vector<1x128xf32>
    %1486 = arith.mulf %1485, %1448 : vector<1x128xf32>
    %1487 = vector.broadcast %32 : f32 to vector<1x128xf32>
    %1488 = arith.mulf %1487, %1449 : vector<1x128xf32>
    %1489 = arith.addf %1474, %1476 : vector<1x128xf32>
    %1490 = arith.addf %1478, %1480 : vector<1x128xf32>
    %1491 = arith.addf %1482, %1484 : vector<1x128xf32>
    %1492 = arith.addf %1486, %1488 : vector<1x128xf32>
    %1493 = arith.addf %1489, %1490 : vector<1x128xf32>
    %1494 = arith.addf %1491, %1492 : vector<1x128xf32>
    %1495 = arith.addf %1493, %1494 : vector<1x128xf32>
    %1496 = vector.broadcast %5 : f32 to vector<1x128xf32>
    %1497 = arith.mulf %1496, %1442 : vector<1x128xf32>
    %1498 = vector.broadcast %9 : f32 to vector<1x128xf32>
    %1499 = arith.mulf %1498, %1443 : vector<1x128xf32>
    %1500 = vector.broadcast %13 : f32 to vector<1x128xf32>
    %1501 = arith.mulf %1500, %1444 : vector<1x128xf32>
    %1502 = vector.broadcast %17 : f32 to vector<1x128xf32>
    %1503 = arith.mulf %1502, %1445 : vector<1x128xf32>
    %1504 = vector.broadcast %21 : f32 to vector<1x128xf32>
    %1505 = arith.mulf %1504, %1446 : vector<1x128xf32>
    %1506 = vector.broadcast %25 : f32 to vector<1x128xf32>
    %1507 = arith.mulf %1506, %1447 : vector<1x128xf32>
    %1508 = vector.broadcast %29 : f32 to vector<1x128xf32>
    %1509 = arith.mulf %1508, %1448 : vector<1x128xf32>
    %1510 = vector.broadcast %33 : f32 to vector<1x128xf32>
    %1511 = arith.mulf %1510, %1449 : vector<1x128xf32>
    %1512 = arith.addf %1497, %1499 : vector<1x128xf32>
    %1513 = arith.addf %1501, %1503 : vector<1x128xf32>
    %1514 = arith.addf %1505, %1507 : vector<1x128xf32>
    %1515 = arith.addf %1509, %1511 : vector<1x128xf32>
    %1516 = arith.addf %1512, %1513 : vector<1x128xf32>
    %1517 = arith.addf %1514, %1515 : vector<1x128xf32>
    %1518 = arith.addf %1516, %1517 : vector<1x128xf32>
    %1519 = vector.broadcast %6 : f32 to vector<1x128xf32>
    %1520 = arith.mulf %1519, %1442 : vector<1x128xf32>
    %1521 = vector.broadcast %10 : f32 to vector<1x128xf32>
    %1522 = arith.mulf %1521, %1443 : vector<1x128xf32>
    %1523 = vector.broadcast %14 : f32 to vector<1x128xf32>
    %1524 = arith.mulf %1523, %1444 : vector<1x128xf32>
    %1525 = vector.broadcast %18 : f32 to vector<1x128xf32>
    %1526 = arith.mulf %1525, %1445 : vector<1x128xf32>
    %1527 = vector.broadcast %22 : f32 to vector<1x128xf32>
    %1528 = arith.mulf %1527, %1446 : vector<1x128xf32>
    %1529 = vector.broadcast %26 : f32 to vector<1x128xf32>
    %1530 = arith.mulf %1529, %1447 : vector<1x128xf32>
    %1531 = vector.broadcast %30 : f32 to vector<1x128xf32>
    %1532 = arith.mulf %1531, %1448 : vector<1x128xf32>
    %1533 = vector.broadcast %34 : f32 to vector<1x128xf32>
    %1534 = arith.mulf %1533, %1449 : vector<1x128xf32>
    %1535 = arith.addf %1520, %1522 : vector<1x128xf32>
    %1536 = arith.addf %1524, %1526 : vector<1x128xf32>
    %1537 = arith.addf %1528, %1530 : vector<1x128xf32>
    %1538 = arith.addf %1532, %1534 : vector<1x128xf32>
    %1539 = arith.addf %1535, %1536 : vector<1x128xf32>
    %1540 = arith.addf %1537, %1538 : vector<1x128xf32>
    %1541 = arith.addf %1539, %1540 : vector<1x128xf32>
    %c14_i32 = arith.constant 14 : i32
    %1542 = arith.index_cast %c14_i32 : i32 to index
    %c0_57 = arith.constant 0 : index
    %c0_58 = arith.constant 0 : index
    %c0_59 = arith.constant 0 : index
    %1543 = vector.load %arg2[%1542, %c0_57, %c0_58, %c0_59] : memref<16x2x1x128xf32, #tpu.memory_space<vmem>>, vector<1x2x1x128xf32>
    %1544 = vector.shape_cast %1543 : vector<1x2x1x128xf32> to vector<2x1x128xf32>
    %1545 = vector.extract_strided_slice %1544 {offsets = [0, 0, 0], sizes = [1, 1, 128], strides = [1, 1, 1]} : vector<2x1x128xf32> to vector<1x1x128xf32>
    %1546 = vector.shape_cast %1545 : vector<1x1x128xf32> to vector<1x128xf32>
    %1547 = vector.extract_strided_slice %1544 {offsets = [1, 0, 0], sizes = [1, 1, 128], strides = [1, 1, 1]} : vector<2x1x128xf32> to vector<1x1x128xf32>
    %1548 = vector.shape_cast %1547 : vector<1x1x128xf32> to vector<1x128xf32>
    %1549 = arith.mulf %1472, %1546 : vector<1x128xf32>
    %1550 = arith.mulf %1472, %1548 : vector<1x128xf32>
    %1551 = arith.mulf %1495, %1546 : vector<1x128xf32>
    %1552 = arith.mulf %1495, %1548 : vector<1x128xf32>
    %1553 = arith.mulf %1518, %1546 : vector<1x128xf32>
    %1554 = arith.mulf %1518, %1548 : vector<1x128xf32>
    %1555 = arith.mulf %1541, %1546 : vector<1x128xf32>
    %1556 = arith.mulf %1541, %1548 : vector<1x128xf32>
    %1557 = vector.broadcast %3 : f32 to vector<1x128xf32>
    %1558 = arith.mulf %1557, %1549 : vector<1x128xf32>
    %1559 = vector.broadcast %7 : f32 to vector<1x128xf32>
    %1560 = arith.mulf %1559, %1550 : vector<1x128xf32>
    %1561 = vector.broadcast %11 : f32 to vector<1x128xf32>
    %1562 = arith.mulf %1561, %1551 : vector<1x128xf32>
    %1563 = vector.broadcast %15 : f32 to vector<1x128xf32>
    %1564 = arith.mulf %1563, %1552 : vector<1x128xf32>
    %1565 = vector.broadcast %19 : f32 to vector<1x128xf32>
    %1566 = arith.mulf %1565, %1553 : vector<1x128xf32>
    %1567 = vector.broadcast %23 : f32 to vector<1x128xf32>
    %1568 = arith.mulf %1567, %1554 : vector<1x128xf32>
    %1569 = vector.broadcast %27 : f32 to vector<1x128xf32>
    %1570 = arith.mulf %1569, %1555 : vector<1x128xf32>
    %1571 = vector.broadcast %31 : f32 to vector<1x128xf32>
    %1572 = arith.mulf %1571, %1556 : vector<1x128xf32>
    %1573 = arith.addf %1558, %1560 : vector<1x128xf32>
    %1574 = arith.addf %1562, %1564 : vector<1x128xf32>
    %1575 = arith.addf %1566, %1568 : vector<1x128xf32>
    %1576 = arith.addf %1570, %1572 : vector<1x128xf32>
    %1577 = arith.addf %1573, %1574 : vector<1x128xf32>
    %1578 = arith.addf %1575, %1576 : vector<1x128xf32>
    %1579 = arith.addf %1577, %1578 : vector<1x128xf32>
    %1580 = vector.broadcast %4 : f32 to vector<1x128xf32>
    %1581 = arith.mulf %1580, %1549 : vector<1x128xf32>
    %1582 = vector.broadcast %8 : f32 to vector<1x128xf32>
    %1583 = arith.mulf %1582, %1550 : vector<1x128xf32>
    %1584 = vector.broadcast %12 : f32 to vector<1x128xf32>
    %1585 = arith.mulf %1584, %1551 : vector<1x128xf32>
    %1586 = vector.broadcast %16 : f32 to vector<1x128xf32>
    %1587 = arith.mulf %1586, %1552 : vector<1x128xf32>
    %1588 = vector.broadcast %20 : f32 to vector<1x128xf32>
    %1589 = arith.mulf %1588, %1553 : vector<1x128xf32>
    %1590 = vector.broadcast %24 : f32 to vector<1x128xf32>
    %1591 = arith.mulf %1590, %1554 : vector<1x128xf32>
    %1592 = vector.broadcast %28 : f32 to vector<1x128xf32>
    %1593 = arith.mulf %1592, %1555 : vector<1x128xf32>
    %1594 = vector.broadcast %32 : f32 to vector<1x128xf32>
    %1595 = arith.mulf %1594, %1556 : vector<1x128xf32>
    %1596 = arith.addf %1581, %1583 : vector<1x128xf32>
    %1597 = arith.addf %1585, %1587 : vector<1x128xf32>
    %1598 = arith.addf %1589, %1591 : vector<1x128xf32>
    %1599 = arith.addf %1593, %1595 : vector<1x128xf32>
    %1600 = arith.addf %1596, %1597 : vector<1x128xf32>
    %1601 = arith.addf %1598, %1599 : vector<1x128xf32>
    %1602 = arith.addf %1600, %1601 : vector<1x128xf32>
    %1603 = vector.broadcast %5 : f32 to vector<1x128xf32>
    %1604 = arith.mulf %1603, %1549 : vector<1x128xf32>
    %1605 = vector.broadcast %9 : f32 to vector<1x128xf32>
    %1606 = arith.mulf %1605, %1550 : vector<1x128xf32>
    %1607 = vector.broadcast %13 : f32 to vector<1x128xf32>
    %1608 = arith.mulf %1607, %1551 : vector<1x128xf32>
    %1609 = vector.broadcast %17 : f32 to vector<1x128xf32>
    %1610 = arith.mulf %1609, %1552 : vector<1x128xf32>
    %1611 = vector.broadcast %21 : f32 to vector<1x128xf32>
    %1612 = arith.mulf %1611, %1553 : vector<1x128xf32>
    %1613 = vector.broadcast %25 : f32 to vector<1x128xf32>
    %1614 = arith.mulf %1613, %1554 : vector<1x128xf32>
    %1615 = vector.broadcast %29 : f32 to vector<1x128xf32>
    %1616 = arith.mulf %1615, %1555 : vector<1x128xf32>
    %1617 = vector.broadcast %33 : f32 to vector<1x128xf32>
    %1618 = arith.mulf %1617, %1556 : vector<1x128xf32>
    %1619 = arith.addf %1604, %1606 : vector<1x128xf32>
    %1620 = arith.addf %1608, %1610 : vector<1x128xf32>
    %1621 = arith.addf %1612, %1614 : vector<1x128xf32>
    %1622 = arith.addf %1616, %1618 : vector<1x128xf32>
    %1623 = arith.addf %1619, %1620 : vector<1x128xf32>
    %1624 = arith.addf %1621, %1622 : vector<1x128xf32>
    %1625 = arith.addf %1623, %1624 : vector<1x128xf32>
    %1626 = vector.broadcast %6 : f32 to vector<1x128xf32>
    %1627 = arith.mulf %1626, %1549 : vector<1x128xf32>
    %1628 = vector.broadcast %10 : f32 to vector<1x128xf32>
    %1629 = arith.mulf %1628, %1550 : vector<1x128xf32>
    %1630 = vector.broadcast %14 : f32 to vector<1x128xf32>
    %1631 = arith.mulf %1630, %1551 : vector<1x128xf32>
    %1632 = vector.broadcast %18 : f32 to vector<1x128xf32>
    %1633 = arith.mulf %1632, %1552 : vector<1x128xf32>
    %1634 = vector.broadcast %22 : f32 to vector<1x128xf32>
    %1635 = arith.mulf %1634, %1553 : vector<1x128xf32>
    %1636 = vector.broadcast %26 : f32 to vector<1x128xf32>
    %1637 = arith.mulf %1636, %1554 : vector<1x128xf32>
    %1638 = vector.broadcast %30 : f32 to vector<1x128xf32>
    %1639 = arith.mulf %1638, %1555 : vector<1x128xf32>
    %1640 = vector.broadcast %34 : f32 to vector<1x128xf32>
    %1641 = arith.mulf %1640, %1556 : vector<1x128xf32>
    %1642 = arith.addf %1627, %1629 : vector<1x128xf32>
    %1643 = arith.addf %1631, %1633 : vector<1x128xf32>
    %1644 = arith.addf %1635, %1637 : vector<1x128xf32>
    %1645 = arith.addf %1639, %1641 : vector<1x128xf32>
    %1646 = arith.addf %1642, %1643 : vector<1x128xf32>
    %1647 = arith.addf %1644, %1645 : vector<1x128xf32>
    %1648 = arith.addf %1646, %1647 : vector<1x128xf32>
    %c15_i32 = arith.constant 15 : i32
    %1649 = arith.index_cast %c15_i32 : i32 to index
    %c0_60 = arith.constant 0 : index
    %c0_61 = arith.constant 0 : index
    %c0_62 = arith.constant 0 : index
    %1650 = vector.load %arg2[%1649, %c0_60, %c0_61, %c0_62] : memref<16x2x1x128xf32, #tpu.memory_space<vmem>>, vector<1x2x1x128xf32>
    %1651 = vector.shape_cast %1650 : vector<1x2x1x128xf32> to vector<2x1x128xf32>
    %1652 = vector.extract_strided_slice %1651 {offsets = [0, 0, 0], sizes = [1, 1, 128], strides = [1, 1, 1]} : vector<2x1x128xf32> to vector<1x1x128xf32>
    %1653 = vector.shape_cast %1652 : vector<1x1x128xf32> to vector<1x128xf32>
    %1654 = vector.extract_strided_slice %1651 {offsets = [1, 0, 0], sizes = [1, 1, 128], strides = [1, 1, 1]} : vector<2x1x128xf32> to vector<1x1x128xf32>
    %1655 = vector.shape_cast %1654 : vector<1x1x128xf32> to vector<1x128xf32>
    %1656 = arith.mulf %1579, %1653 : vector<1x128xf32>
    %1657 = arith.mulf %1579, %1655 : vector<1x128xf32>
    %1658 = arith.mulf %1602, %1653 : vector<1x128xf32>
    %1659 = arith.mulf %1602, %1655 : vector<1x128xf32>
    %1660 = arith.mulf %1625, %1653 : vector<1x128xf32>
    %1661 = arith.mulf %1625, %1655 : vector<1x128xf32>
    %1662 = arith.mulf %1648, %1653 : vector<1x128xf32>
    %1663 = arith.mulf %1648, %1655 : vector<1x128xf32>
    %1664 = vector.broadcast %3 : f32 to vector<1x128xf32>
    %1665 = arith.mulf %1664, %1656 : vector<1x128xf32>
    %1666 = vector.broadcast %7 : f32 to vector<1x128xf32>
    %1667 = arith.mulf %1666, %1657 : vector<1x128xf32>
    %1668 = vector.broadcast %11 : f32 to vector<1x128xf32>
    %1669 = arith.mulf %1668, %1658 : vector<1x128xf32>
    %1670 = vector.broadcast %15 : f32 to vector<1x128xf32>
    %1671 = arith.mulf %1670, %1659 : vector<1x128xf32>
    %1672 = vector.broadcast %19 : f32 to vector<1x128xf32>
    %1673 = arith.mulf %1672, %1660 : vector<1x128xf32>
    %1674 = vector.broadcast %23 : f32 to vector<1x128xf32>
    %1675 = arith.mulf %1674, %1661 : vector<1x128xf32>
    %1676 = vector.broadcast %27 : f32 to vector<1x128xf32>
    %1677 = arith.mulf %1676, %1662 : vector<1x128xf32>
    %1678 = vector.broadcast %31 : f32 to vector<1x128xf32>
    %1679 = arith.mulf %1678, %1663 : vector<1x128xf32>
    %1680 = arith.addf %1665, %1667 : vector<1x128xf32>
    %1681 = arith.addf %1669, %1671 : vector<1x128xf32>
    %1682 = arith.addf %1673, %1675 : vector<1x128xf32>
    %1683 = arith.addf %1677, %1679 : vector<1x128xf32>
    %1684 = arith.addf %1680, %1681 : vector<1x128xf32>
    %1685 = arith.addf %1682, %1683 : vector<1x128xf32>
    %1686 = arith.addf %1684, %1685 : vector<1x128xf32>
    %1687 = vector.broadcast %4 : f32 to vector<1x128xf32>
    %1688 = arith.mulf %1687, %1656 : vector<1x128xf32>
    %1689 = vector.broadcast %8 : f32 to vector<1x128xf32>
    %1690 = arith.mulf %1689, %1657 : vector<1x128xf32>
    %1691 = vector.broadcast %12 : f32 to vector<1x128xf32>
    %1692 = arith.mulf %1691, %1658 : vector<1x128xf32>
    %1693 = vector.broadcast %16 : f32 to vector<1x128xf32>
    %1694 = arith.mulf %1693, %1659 : vector<1x128xf32>
    %1695 = vector.broadcast %20 : f32 to vector<1x128xf32>
    %1696 = arith.mulf %1695, %1660 : vector<1x128xf32>
    %1697 = vector.broadcast %24 : f32 to vector<1x128xf32>
    %1698 = arith.mulf %1697, %1661 : vector<1x128xf32>
    %1699 = vector.broadcast %28 : f32 to vector<1x128xf32>
    %1700 = arith.mulf %1699, %1662 : vector<1x128xf32>
    %1701 = vector.broadcast %32 : f32 to vector<1x128xf32>
    %1702 = arith.mulf %1701, %1663 : vector<1x128xf32>
    %1703 = arith.addf %1688, %1690 : vector<1x128xf32>
    %1704 = arith.addf %1692, %1694 : vector<1x128xf32>
    %1705 = arith.addf %1696, %1698 : vector<1x128xf32>
    %1706 = arith.addf %1700, %1702 : vector<1x128xf32>
    %1707 = arith.addf %1703, %1704 : vector<1x128xf32>
    %1708 = arith.addf %1705, %1706 : vector<1x128xf32>
    %1709 = arith.addf %1707, %1708 : vector<1x128xf32>
    %1710 = vector.broadcast %5 : f32 to vector<1x128xf32>
    %1711 = arith.mulf %1710, %1656 : vector<1x128xf32>
    %1712 = vector.broadcast %9 : f32 to vector<1x128xf32>
    %1713 = arith.mulf %1712, %1657 : vector<1x128xf32>
    %1714 = vector.broadcast %13 : f32 to vector<1x128xf32>
    %1715 = arith.mulf %1714, %1658 : vector<1x128xf32>
    %1716 = vector.broadcast %17 : f32 to vector<1x128xf32>
    %1717 = arith.mulf %1716, %1659 : vector<1x128xf32>
    %1718 = vector.broadcast %21 : f32 to vector<1x128xf32>
    %1719 = arith.mulf %1718, %1660 : vector<1x128xf32>
    %1720 = vector.broadcast %25 : f32 to vector<1x128xf32>
    %1721 = arith.mulf %1720, %1661 : vector<1x128xf32>
    %1722 = vector.broadcast %29 : f32 to vector<1x128xf32>
    %1723 = arith.mulf %1722, %1662 : vector<1x128xf32>
    %1724 = vector.broadcast %33 : f32 to vector<1x128xf32>
    %1725 = arith.mulf %1724, %1663 : vector<1x128xf32>
    %1726 = arith.addf %1711, %1713 : vector<1x128xf32>
    %1727 = arith.addf %1715, %1717 : vector<1x128xf32>
    %1728 = arith.addf %1719, %1721 : vector<1x128xf32>
    %1729 = arith.addf %1723, %1725 : vector<1x128xf32>
    %1730 = arith.addf %1726, %1727 : vector<1x128xf32>
    %1731 = arith.addf %1728, %1729 : vector<1x128xf32>
    %1732 = arith.addf %1730, %1731 : vector<1x128xf32>
    %1733 = vector.broadcast %6 : f32 to vector<1x128xf32>
    %1734 = arith.mulf %1733, %1656 : vector<1x128xf32>
    %1735 = vector.broadcast %10 : f32 to vector<1x128xf32>
    %1736 = arith.mulf %1735, %1657 : vector<1x128xf32>
    %1737 = vector.broadcast %14 : f32 to vector<1x128xf32>
    %1738 = arith.mulf %1737, %1658 : vector<1x128xf32>
    %1739 = vector.broadcast %18 : f32 to vector<1x128xf32>
    %1740 = arith.mulf %1739, %1659 : vector<1x128xf32>
    %1741 = vector.broadcast %22 : f32 to vector<1x128xf32>
    %1742 = arith.mulf %1741, %1660 : vector<1x128xf32>
    %1743 = vector.broadcast %26 : f32 to vector<1x128xf32>
    %1744 = arith.mulf %1743, %1661 : vector<1x128xf32>
    %1745 = vector.broadcast %30 : f32 to vector<1x128xf32>
    %1746 = arith.mulf %1745, %1662 : vector<1x128xf32>
    %1747 = vector.broadcast %34 : f32 to vector<1x128xf32>
    %1748 = arith.mulf %1747, %1663 : vector<1x128xf32>
    %1749 = arith.addf %1734, %1736 : vector<1x128xf32>
    %1750 = arith.addf %1738, %1740 : vector<1x128xf32>
    %1751 = arith.addf %1742, %1744 : vector<1x128xf32>
    %1752 = arith.addf %1746, %1748 : vector<1x128xf32>
    %1753 = arith.addf %1749, %1750 : vector<1x128xf32>
    %1754 = arith.addf %1751, %1752 : vector<1x128xf32>
    %1755 = arith.addf %1753, %1754 : vector<1x128xf32>
    %c16_i32 = arith.constant 16 : i32
    %true = arith.constant true
    %1756 = arith.xori %35, %true : i1
    %1757 = arith.extui %1756 : i1 to i32
    %c0_i32_63 = arith.constant 0 : i32
    %1758 = arith.cmpi ne, %1757, %c0_i32_63 : i32
    scf.if %1758 {
      %c0_65 = arith.constant 0 : index
      %c0_66 = arith.constant 0 : index
      %c0_67 = arith.constant 0 : index
      %1761 = vector.load %arg6[%c0_65, %c0_66, %c0_67] : memref<4x1x128xf32, #tpu.memory_space<vmem>>, vector<1x1x128xf32>
      %1762 = vector.shape_cast %1761 : vector<1x1x128xf32> to vector<1x128xf32>
      %1763 = vector.shape_cast %1686 : vector<1x128xf32> to vector<1x1x128xf32>
      tpu.vector_store %arg6[%c0_65, %c0_66, %c0_67], %1763 {strides = array<i32>} : memref<4x1x128xf32, #tpu.memory_space<vmem>>, vector<1x1x128xf32>,
      %c1_68 = arith.constant 1 : index
      %c0_69 = arith.constant 0 : index
      %c0_70 = arith.constant 0 : index
      %1764 = vector.load %arg6[%c1_68, %c0_69, %c0_70] : memref<4x1x128xf32, #tpu.memory_space<vmem>>, vector<1x1x128xf32>
      %1765 = vector.shape_cast %1764 : vector<1x1x128xf32> to vector<1x128xf32>
      %1766 = vector.shape_cast %1709 : vector<1x128xf32> to vector<1x1x128xf32>
      tpu.vector_store %arg6[%c1_68, %c0_69, %c0_70], %1766 {strides = array<i32>} : memref<4x1x128xf32, #tpu.memory_space<vmem>>, vector<1x1x128xf32>,
      %c2_71 = arith.constant 2 : index
      %c0_72 = arith.constant 0 : index
      %c0_73 = arith.constant 0 : index
      %1767 = vector.load %arg6[%c2_71, %c0_72, %c0_73] : memref<4x1x128xf32, #tpu.memory_space<vmem>>, vector<1x1x128xf32>
      %1768 = vector.shape_cast %1767 : vector<1x1x128xf32> to vector<1x128xf32>
      %1769 = vector.shape_cast %1732 : vector<1x128xf32> to vector<1x1x128xf32>
      tpu.vector_store %arg6[%c2_71, %c0_72, %c0_73], %1769 {strides = array<i32>} : memref<4x1x128xf32, #tpu.memory_space<vmem>>, vector<1x1x128xf32>,
      %c3_74 = arith.constant 3 : index
      %c0_75 = arith.constant 0 : index
      %c0_76 = arith.constant 0 : index
      %1770 = vector.load %arg6[%c3_74, %c0_75, %c0_76] : memref<4x1x128xf32, #tpu.memory_space<vmem>>, vector<1x1x128xf32>
      %1771 = vector.shape_cast %1770 : vector<1x1x128xf32> to vector<1x128xf32>
      %1772 = vector.shape_cast %1755 : vector<1x128xf32> to vector<1x1x128xf32>
      tpu.vector_store %arg6[%c3_74, %c0_75, %c0_76], %1772 {strides = array<i32>} : memref<4x1x128xf32, #tpu.memory_space<vmem>>, vector<1x1x128xf32>,
    } else {
    }
    %1759 = arith.extui %35 : i1 to i32
    %c0_i32_64 = arith.constant 0 : i32
    %1760 = arith.cmpi ne, %1759, %c0_i32_64 : i32
    scf.if %1760 {
      %c0_65 = arith.constant 0 : index
      %1761 = memref.load %arg4[%c0_65] : memref<40xf32, #tpu.memory_space<smem>>
      %1762 = vector.broadcast %1761 : f32 to vector<1x128xf32>
      %1763 = arith.mulf %1762, %1686 : vector<1x128xf32>
      %c10_66 = arith.constant 10 : index
      %1764 = memref.load %arg4[%c10_66] : memref<40xf32, #tpu.memory_space<smem>>
      %1765 = vector.broadcast %1764 : f32 to vector<1x128xf32>
      %1766 = arith.mulf %1765, %1709 : vector<1x128xf32>
      %c20_67 = arith.constant 20 : index
      %1767 = memref.load %arg4[%c20_67] : memref<40xf32, #tpu.memory_space<smem>>
      %1768 = vector.broadcast %1767 : f32 to vector<1x128xf32>
      %1769 = arith.mulf %1768, %1732 : vector<1x128xf32>
      %c30_68 = arith.constant 30 : index
      %1770 = memref.load %arg4[%c30_68] : memref<40xf32, #tpu.memory_space<smem>>
      %1771 = vector.broadcast %1770 : f32 to vector<1x128xf32>
      %1772 = arith.mulf %1771, %1755 : vector<1x128xf32>
      %1773 = arith.addf %1763, %1766 : vector<1x128xf32>
      %1774 = arith.addf %1769, %1772 : vector<1x128xf32>
      %1775 = arith.addf %1773, %1774 : vector<1x128xf32>
      %c1_69 = arith.constant 1 : index
      %1776 = memref.load %arg4[%c1_69] : memref<40xf32, #tpu.memory_space<smem>>
      %1777 = vector.broadcast %1776 : f32 to vector<1x128xf32>
      %1778 = arith.mulf %1777, %1686 : vector<1x128xf32>
      %c11_70 = arith.constant 11 : index
      %1779 = memref.load %arg4[%c11_70] : memref<40xf32, #tpu.memory_space<smem>>
      %1780 = vector.broadcast %1779 : f32 to vector<1x128xf32>
      %1781 = arith.mulf %1780, %1709 : vector<1x128xf32>
      %c21_71 = arith.constant 21 : index
      %1782 = memref.load %arg4[%c21_71] : memref<40xf32, #tpu.memory_space<smem>>
      %1783 = vector.broadcast %1782 : f32 to vector<1x128xf32>
      %1784 = arith.mulf %1783, %1732 : vector<1x128xf32>
      %c31_72 = arith.constant 31 : index
      %1785 = memref.load %arg4[%c31_72] : memref<40xf32, #tpu.memory_space<smem>>
      %1786 = vector.broadcast %1785 : f32 to vector<1x128xf32>
      %1787 = arith.mulf %1786, %1755 : vector<1x128xf32>
      %1788 = arith.addf %1778, %1781 : vector<1x128xf32>
      %1789 = arith.addf %1784, %1787 : vector<1x128xf32>
      %1790 = arith.addf %1788, %1789 : vector<1x128xf32>
      %c2_73 = arith.constant 2 : index
      %1791 = memref.load %arg4[%c2_73] : memref<40xf32, #tpu.memory_space<smem>>
      %1792 = vector.broadcast %1791 : f32 to vector<1x128xf32>
      %1793 = arith.mulf %1792, %1686 : vector<1x128xf32>
      %c12_74 = arith.constant 12 : index
      %1794 = memref.load %arg4[%c12_74] : memref<40xf32, #tpu.memory_space<smem>>
      %1795 = vector.broadcast %1794 : f32 to vector<1x128xf32>
      %1796 = arith.mulf %1795, %1709 : vector<1x128xf32>
      %c22_75 = arith.constant 22 : index
      %1797 = memref.load %arg4[%c22_75] : memref<40xf32, #tpu.memory_space<smem>>
      %1798 = vector.broadcast %1797 : f32 to vector<1x128xf32>
      %1799 = arith.mulf %1798, %1732 : vector<1x128xf32>
      %c32 = arith.constant 32 : index
      %1800 = memref.load %arg4[%c32] : memref<40xf32, #tpu.memory_space<smem>>
      %1801 = vector.broadcast %1800 : f32 to vector<1x128xf32>
      %1802 = arith.mulf %1801, %1755 : vector<1x128xf32>
      %1803 = arith.addf %1793, %1796 : vector<1x128xf32>
      %1804 = arith.addf %1799, %1802 : vector<1x128xf32>
      %1805 = arith.addf %1803, %1804 : vector<1x128xf32>
      %c3_76 = arith.constant 3 : index
      %1806 = memref.load %arg4[%c3_76] : memref<40xf32, #tpu.memory_space<smem>>
      %1807 = vector.broadcast %1806 : f32 to vector<1x128xf32>
      %1808 = arith.mulf %1807, %1686 : vector<1x128xf32>
      %c13_77 = arith.constant 13 : index
      %1809 = memref.load %arg4[%c13_77] : memref<40xf32, #tpu.memory_space<smem>>
      %1810 = vector.broadcast %1809 : f32 to vector<1x128xf32>
      %1811 = arith.mulf %1810, %1709 : vector<1x128xf32>
      %c23_78 = arith.constant 23 : index
      %1812 = memref.load %arg4[%c23_78] : memref<40xf32, #tpu.memory_space<smem>>
      %1813 = vector.broadcast %1812 : f32 to vector<1x128xf32>
      %1814 = arith.mulf %1813, %1732 : vector<1x128xf32>
      %c33 = arith.constant 33 : index
      %1815 = memref.load %arg4[%c33] : memref<40xf32, #tpu.memory_space<smem>>
      %1816 = vector.broadcast %1815 : f32 to vector<1x128xf32>
      %1817 = arith.mulf %1816, %1755 : vector<1x128xf32>
      %1818 = arith.addf %1808, %1811 : vector<1x128xf32>
      %1819 = arith.addf %1814, %1817 : vector<1x128xf32>
      %1820 = arith.addf %1818, %1819 : vector<1x128xf32>
      %c4_79 = arith.constant 4 : index
      %1821 = memref.load %arg4[%c4_79] : memref<40xf32, #tpu.memory_space<smem>>
      %1822 = vector.broadcast %1821 : f32 to vector<1x128xf32>
      %1823 = arith.mulf %1822, %1686 : vector<1x128xf32>
      %c14_80 = arith.constant 14 : index
      %1824 = memref.load %arg4[%c14_80] : memref<40xf32, #tpu.memory_space<smem>>
      %1825 = vector.broadcast %1824 : f32 to vector<1x128xf32>
      %1826 = arith.mulf %1825, %1709 : vector<1x128xf32>
      %c24_81 = arith.constant 24 : index
      %1827 = memref.load %arg4[%c24_81] : memref<40xf32, #tpu.memory_space<smem>>
      %1828 = vector.broadcast %1827 : f32 to vector<1x128xf32>
      %1829 = arith.mulf %1828, %1732 : vector<1x128xf32>
      %c34 = arith.constant 34 : index
      %1830 = memref.load %arg4[%c34] : memref<40xf32, #tpu.memory_space<smem>>
      %1831 = vector.broadcast %1830 : f32 to vector<1x128xf32>
      %1832 = arith.mulf %1831, %1755 : vector<1x128xf32>
      %1833 = arith.addf %1823, %1826 : vector<1x128xf32>
      %1834 = arith.addf %1829, %1832 : vector<1x128xf32>
      %1835 = arith.addf %1833, %1834 : vector<1x128xf32>
      %c5_82 = arith.constant 5 : index
      %1836 = memref.load %arg4[%c5_82] : memref<40xf32, #tpu.memory_space<smem>>
      %1837 = vector.broadcast %1836 : f32 to vector<1x128xf32>
      %1838 = arith.mulf %1837, %1686 : vector<1x128xf32>
      %c15_83 = arith.constant 15 : index
      %1839 = memref.load %arg4[%c15_83] : memref<40xf32, #tpu.memory_space<smem>>
      %1840 = vector.broadcast %1839 : f32 to vector<1x128xf32>
      %1841 = arith.mulf %1840, %1709 : vector<1x128xf32>
      %c25_84 = arith.constant 25 : index
      %1842 = memref.load %arg4[%c25_84] : memref<40xf32, #tpu.memory_space<smem>>
      %1843 = vector.broadcast %1842 : f32 to vector<1x128xf32>
      %1844 = arith.mulf %1843, %1732 : vector<1x128xf32>
      %c35 = arith.constant 35 : index
      %1845 = memref.load %arg4[%c35] : memref<40xf32, #tpu.memory_space<smem>>
      %1846 = vector.broadcast %1845 : f32 to vector<1x128xf32>
      %1847 = arith.mulf %1846, %1755 : vector<1x128xf32>
      %1848 = arith.addf %1838, %1841 : vector<1x128xf32>
      %1849 = arith.addf %1844, %1847 : vector<1x128xf32>
      %1850 = arith.addf %1848, %1849 : vector<1x128xf32>
      %c6_85 = arith.constant 6 : index
      %1851 = memref.load %arg4[%c6_85] : memref<40xf32, #tpu.memory_space<smem>>
      %1852 = vector.broadcast %1851 : f32 to vector<1x128xf32>
      %1853 = arith.mulf %1852, %1686 : vector<1x128xf32>
      %c16_86 = arith.constant 16 : index
      %1854 = memref.load %arg4[%c16_86] : memref<40xf32, #tpu.memory_space<smem>>
      %1855 = vector.broadcast %1854 : f32 to vector<1x128xf32>
      %1856 = arith.mulf %1855, %1709 : vector<1x128xf32>
      %c26_87 = arith.constant 26 : index
      %1857 = memref.load %arg4[%c26_87] : memref<40xf32, #tpu.memory_space<smem>>
      %1858 = vector.broadcast %1857 : f32 to vector<1x128xf32>
      %1859 = arith.mulf %1858, %1732 : vector<1x128xf32>
      %c36 = arith.constant 36 : index
      %1860 = memref.load %arg4[%c36] : memref<40xf32, #tpu.memory_space<smem>>
      %1861 = vector.broadcast %1860 : f32 to vector<1x128xf32>
      %1862 = arith.mulf %1861, %1755 : vector<1x128xf32>
      %1863 = arith.addf %1853, %1856 : vector<1x128xf32>
      %1864 = arith.addf %1859, %1862 : vector<1x128xf32>
      %1865 = arith.addf %1863, %1864 : vector<1x128xf32>
      %c7_88 = arith.constant 7 : index
      %1866 = memref.load %arg4[%c7_88] : memref<40xf32, #tpu.memory_space<smem>>
      %1867 = vector.broadcast %1866 : f32 to vector<1x128xf32>
      %1868 = arith.mulf %1867, %1686 : vector<1x128xf32>
      %c17_89 = arith.constant 17 : index
      %1869 = memref.load %arg4[%c17_89] : memref<40xf32, #tpu.memory_space<smem>>
      %1870 = vector.broadcast %1869 : f32 to vector<1x128xf32>
      %1871 = arith.mulf %1870, %1709 : vector<1x128xf32>
      %c27_90 = arith.constant 27 : index
      %1872 = memref.load %arg4[%c27_90] : memref<40xf32, #tpu.memory_space<smem>>
      %1873 = vector.broadcast %1872 : f32 to vector<1x128xf32>
      %1874 = arith.mulf %1873, %1732 : vector<1x128xf32>
      %c37 = arith.constant 37 : index
      %1875 = memref.load %arg4[%c37] : memref<40xf32, #tpu.memory_space<smem>>
      %1876 = vector.broadcast %1875 : f32 to vector<1x128xf32>
      %1877 = arith.mulf %1876, %1755 : vector<1x128xf32>
      %1878 = arith.addf %1868, %1871 : vector<1x128xf32>
      %1879 = arith.addf %1874, %1877 : vector<1x128xf32>
      %1880 = arith.addf %1878, %1879 : vector<1x128xf32>
      %c8_91 = arith.constant 8 : index
      %1881 = memref.load %arg4[%c8_91] : memref<40xf32, #tpu.memory_space<smem>>
      %1882 = vector.broadcast %1881 : f32 to vector<1x128xf32>
      %1883 = arith.mulf %1882, %1686 : vector<1x128xf32>
      %c18_92 = arith.constant 18 : index
      %1884 = memref.load %arg4[%c18_92] : memref<40xf32, #tpu.memory_space<smem>>
      %1885 = vector.broadcast %1884 : f32 to vector<1x128xf32>
      %1886 = arith.mulf %1885, %1709 : vector<1x128xf32>
      %c28_93 = arith.constant 28 : index
      %1887 = memref.load %arg4[%c28_93] : memref<40xf32, #tpu.memory_space<smem>>
      %1888 = vector.broadcast %1887 : f32 to vector<1x128xf32>
      %1889 = arith.mulf %1888, %1732 : vector<1x128xf32>
      %c38 = arith.constant 38 : index
      %1890 = memref.load %arg4[%c38] : memref<40xf32, #tpu.memory_space<smem>>
      %1891 = vector.broadcast %1890 : f32 to vector<1x128xf32>
      %1892 = arith.mulf %1891, %1755 : vector<1x128xf32>
      %1893 = arith.addf %1883, %1886 : vector<1x128xf32>
      %1894 = arith.addf %1889, %1892 : vector<1x128xf32>
      %1895 = arith.addf %1893, %1894 : vector<1x128xf32>
      %c9_94 = arith.constant 9 : index
      %1896 = memref.load %arg4[%c9_94] : memref<40xf32, #tpu.memory_space<smem>>
      %1897 = vector.broadcast %1896 : f32 to vector<1x128xf32>
      %1898 = arith.mulf %1897, %1686 : vector<1x128xf32>
      %c19_95 = arith.constant 19 : index
      %1899 = memref.load %arg4[%c19_95] : memref<40xf32, #tpu.memory_space<smem>>
      %1900 = vector.broadcast %1899 : f32 to vector<1x128xf32>
      %1901 = arith.mulf %1900, %1709 : vector<1x128xf32>
      %c29_96 = arith.constant 29 : index
      %1902 = memref.load %arg4[%c29_96] : memref<40xf32, #tpu.memory_space<smem>>
      %1903 = vector.broadcast %1902 : f32 to vector<1x128xf32>
      %1904 = arith.mulf %1903, %1732 : vector<1x128xf32>
      %c39 = arith.constant 39 : index
      %1905 = memref.load %arg4[%c39] : memref<40xf32, #tpu.memory_space<smem>>
      %1906 = vector.broadcast %1905 : f32 to vector<1x128xf32>
      %1907 = arith.mulf %1906, %1755 : vector<1x128xf32>
      %1908 = arith.addf %1898, %1901 : vector<1x128xf32>
      %1909 = arith.addf %1904, %1907 : vector<1x128xf32>
      %1910 = arith.addf %1908, %1909 : vector<1x128xf32>
      %1911 = arith.maximumf %1775, %1790 : vector<1x128xf32>
      %1912 = arith.maximumf %1805, %1820 : vector<1x128xf32>
      %1913 = arith.maximumf %1835, %1850 : vector<1x128xf32>
      %1914 = arith.maximumf %1865, %1880 : vector<1x128xf32>
      %1915 = arith.maximumf %1895, %1910 : vector<1x128xf32>
      %1916 = arith.maximumf %1911, %1912 : vector<1x128xf32>
      %1917 = arith.maximumf %1913, %1914 : vector<1x128xf32>
      %1918 = arith.maximumf %1916, %1917 : vector<1x128xf32>
      %1919 = arith.maximumf %1918, %1915 : vector<1x128xf32>
      %1920 = arith.subf %1775, %1919 : vector<1x128xf32>
      %1921 = math.exp %1920 : vector<1x128xf32>
      %1922 = arith.subf %1790, %1919 : vector<1x128xf32>
      %1923 = math.exp %1922 : vector<1x128xf32>
      %1924 = arith.subf %1805, %1919 : vector<1x128xf32>
      %1925 = math.exp %1924 : vector<1x128xf32>
      %1926 = arith.subf %1820, %1919 : vector<1x128xf32>
      %1927 = math.exp %1926 : vector<1x128xf32>
      %1928 = arith.subf %1835, %1919 : vector<1x128xf32>
      %1929 = math.exp %1928 : vector<1x128xf32>
      %1930 = arith.subf %1850, %1919 : vector<1x128xf32>
      %1931 = math.exp %1930 : vector<1x128xf32>
      %1932 = arith.subf %1865, %1919 : vector<1x128xf32>
      %1933 = math.exp %1932 : vector<1x128xf32>
      %1934 = arith.subf %1880, %1919 : vector<1x128xf32>
      %1935 = math.exp %1934 : vector<1x128xf32>
      %1936 = arith.subf %1895, %1919 : vector<1x128xf32>
      %1937 = math.exp %1936 : vector<1x128xf32>
      %1938 = arith.subf %1910, %1919 : vector<1x128xf32>
      %1939 = math.exp %1938 : vector<1x128xf32>
      %1940 = arith.addf %1921, %1923 : vector<1x128xf32>
      %1941 = arith.addf %1925, %1927 : vector<1x128xf32>
      %1942 = arith.addf %1929, %1931 : vector<1x128xf32>
      %1943 = arith.addf %1933, %1935 : vector<1x128xf32>
      %1944 = arith.addf %1937, %1939 : vector<1x128xf32>
      %1945 = arith.addf %1940, %1941 : vector<1x128xf32>
      %1946 = arith.addf %1942, %1943 : vector<1x128xf32>
      %1947 = arith.addf %1945, %1946 : vector<1x128xf32>
      %1948 = arith.addf %1947, %1944 : vector<1x128xf32>
      %1949 = math.log %1948 : vector<1x128xf32>
      %1950 = arith.addf %1919, %1949 : vector<1x128xf32>
      %1951 = arith.subf %1775, %1950 : vector<1x128xf32>
      %c0_97 = arith.constant 0 : index
      %c0_98 = arith.constant 0 : index
      %c0_99 = arith.constant 0 : index
      %1952 = vector.load %arg5[%c0_97, %c0_98, %c0_99] : memref<10x1x128xf32, #tpu.memory_space<vmem>>, vector<1x1x128xf32>
      %1953 = vector.shape_cast %1952 : vector<1x1x128xf32> to vector<1x128xf32>
      %1954 = vector.shape_cast %1951 : vector<1x128xf32> to vector<1x1x128xf32>
      tpu.vector_store %arg5[%c0_97, %c0_98, %c0_99], %1954 {strides = array<i32>} : memref<10x1x128xf32, #tpu.memory_space<vmem>>, vector<1x1x128xf32>,
      %1955 = arith.subf %1790, %1950 : vector<1x128xf32>
      %c1_100 = arith.constant 1 : index
      %c0_101 = arith.constant 0 : index
      %c0_102 = arith.constant 0 : index
      %1956 = vector.load %arg5[%c1_100, %c0_101, %c0_102] : memref<10x1x128xf32, #tpu.memory_space<vmem>>, vector<1x1x128xf32>
      %1957 = vector.shape_cast %1956 : vector<1x1x128xf32> to vector<1x128xf32>
      %1958 = vector.shape_cast %1955 : vector<1x128xf32> to vector<1x1x128xf32>
      tpu.vector_store %arg5[%c1_100, %c0_101, %c0_102], %1958 {strides = array<i32>} : memref<10x1x128xf32, #tpu.memory_space<vmem>>, vector<1x1x128xf32>,
      %1959 = arith.subf %1805, %1950 : vector<1x128xf32>
      %c2_103 = arith.constant 2 : index
      %c0_104 = arith.constant 0 : index
      %c0_105 = arith.constant 0 : index
      %1960 = vector.load %arg5[%c2_103, %c0_104, %c0_105] : memref<10x1x128xf32, #tpu.memory_space<vmem>>, vector<1x1x128xf32>
      %1961 = vector.shape_cast %1960 : vector<1x1x128xf32> to vector<1x128xf32>
      %1962 = vector.shape_cast %1959 : vector<1x128xf32> to vector<1x1x128xf32>
      tpu.vector_store %arg5[%c2_103, %c0_104, %c0_105], %1962 {strides = array<i32>} : memref<10x1x128xf32, #tpu.memory_space<vmem>>, vector<1x1x128xf32>,
      %1963 = arith.subf %1820, %1950 : vector<1x128xf32>
      %c3_106 = arith.constant 3 : index
      %c0_107 = arith.constant 0 : index
      %c0_108 = arith.constant 0 : index
      %1964 = vector.load %arg5[%c3_106, %c0_107, %c0_108] : memref<10x1x128xf32, #tpu.memory_space<vmem>>, vector<1x1x128xf32>
      %1965 = vector.shape_cast %1964 : vector<1x1x128xf32> to vector<1x128xf32>
      %1966 = vector.shape_cast %1963 : vector<1x128xf32> to vector<1x1x128xf32>
      tpu.vector_store %arg5[%c3_106, %c0_107, %c0_108], %1966 {strides = array<i32>} : memref<10x1x128xf32, #tpu.memory_space<vmem>>, vector<1x1x128xf32>,
      %1967 = arith.subf %1835, %1950 : vector<1x128xf32>
      %c4_109 = arith.constant 4 : index
      %c0_110 = arith.constant 0 : index
      %c0_111 = arith.constant 0 : index
      %1968 = vector.load %arg5[%c4_109, %c0_110, %c0_111] : memref<10x1x128xf32, #tpu.memory_space<vmem>>, vector<1x1x128xf32>
      %1969 = vector.shape_cast %1968 : vector<1x1x128xf32> to vector<1x128xf32>
      %1970 = vector.shape_cast %1967 : vector<1x128xf32> to vector<1x1x128xf32>
      tpu.vector_store %arg5[%c4_109, %c0_110, %c0_111], %1970 {strides = array<i32>} : memref<10x1x128xf32, #tpu.memory_space<vmem>>, vector<1x1x128xf32>,
      %1971 = arith.subf %1850, %1950 : vector<1x128xf32>
      %c5_112 = arith.constant 5 : index
      %c0_113 = arith.constant 0 : index
      %c0_114 = arith.constant 0 : index
      %1972 = vector.load %arg5[%c5_112, %c0_113, %c0_114] : memref<10x1x128xf32, #tpu.memory_space<vmem>>, vector<1x1x128xf32>
      %1973 = vector.shape_cast %1972 : vector<1x1x128xf32> to vector<1x128xf32>
      %1974 = vector.shape_cast %1971 : vector<1x128xf32> to vector<1x1x128xf32>
      tpu.vector_store %arg5[%c5_112, %c0_113, %c0_114], %1974 {strides = array<i32>} : memref<10x1x128xf32, #tpu.memory_space<vmem>>, vector<1x1x128xf32>,
      %1975 = arith.subf %1865, %1950 : vector<1x128xf32>
      %c6_115 = arith.constant 6 : index
      %c0_116 = arith.constant 0 : index
      %c0_117 = arith.constant 0 : index
      %1976 = vector.load %arg5[%c6_115, %c0_116, %c0_117] : memref<10x1x128xf32, #tpu.memory_space<vmem>>, vector<1x1x128xf32>
      %1977 = vector.shape_cast %1976 : vector<1x1x128xf32> to vector<1x128xf32>
      %1978 = vector.shape_cast %1975 : vector<1x128xf32> to vector<1x1x128xf32>
      tpu.vector_store %arg5[%c6_115, %c0_116, %c0_117], %1978 {strides = array<i32>} : memref<10x1x128xf32, #tpu.memory_space<vmem>>, vector<1x1x128xf32>,
      %1979 = arith.subf %1880, %1950 : vector<1x128xf32>
      %c7_118 = arith.constant 7 : index
      %c0_119 = arith.constant 0 : index
      %c0_120 = arith.constant 0 : index
      %1980 = vector.load %arg5[%c7_118, %c0_119, %c0_120] : memref<10x1x128xf32, #tpu.memory_space<vmem>>, vector<1x1x128xf32>
      %1981 = vector.shape_cast %1980 : vector<1x1x128xf32> to vector<1x128xf32>
      %1982 = vector.shape_cast %1979 : vector<1x128xf32> to vector<1x1x128xf32>
      tpu.vector_store %arg5[%c7_118, %c0_119, %c0_120], %1982 {strides = array<i32>} : memref<10x1x128xf32, #tpu.memory_space<vmem>>, vector<1x1x128xf32>,
      %1983 = arith.subf %1895, %1950 : vector<1x128xf32>
      %c8_121 = arith.constant 8 : index
      %c0_122 = arith.constant 0 : index
      %c0_123 = arith.constant 0 : index
      %1984 = vector.load %arg5[%c8_121, %c0_122, %c0_123] : memref<10x1x128xf32, #tpu.memory_space<vmem>>, vector<1x1x128xf32>
      %1985 = vector.shape_cast %1984 : vector<1x1x128xf32> to vector<1x128xf32>
      %1986 = vector.shape_cast %1983 : vector<1x128xf32> to vector<1x1x128xf32>
      tpu.vector_store %arg5[%c8_121, %c0_122, %c0_123], %1986 {strides = array<i32>} : memref<10x1x128xf32, #tpu.memory_space<vmem>>, vector<1x1x128xf32>,
      %1987 = arith.subf %1910, %1950 : vector<1x128xf32>
      %c9_124 = arith.constant 9 : index
      %c0_125 = arith.constant 0 : index
      %c0_126 = arith.constant 0 : index
      %1988 = vector.load %arg5[%c9_124, %c0_125, %c0_126] : memref<10x1x128xf32, #tpu.memory_space<vmem>>, vector<1x1x128xf32>
      %1989 = vector.shape_cast %1988 : vector<1x1x128xf32> to vector<1x128xf32>
      %1990 = vector.shape_cast %1987 : vector<1x128xf32> to vector<1x1x128xf32>
      tpu.vector_store %arg5[%c9_124, %c0_125, %c0_126], %1990 {strides = array<i32>} : memref<10x1x128xf32, #tpu.memory_space<vmem>>, vector<1x1x128xf32>,
    } else {
    }
    return
  }
  func.func @transform_0(%arg0: i32, %arg1: i32) -> (i32, i32, i32, i32) {
    %c0_i32 = arith.constant 0 : i32
    %c0_i32_0 = arith.constant 0 : i32
    %c0_i32_1 = arith.constant 0 : i32
    return %arg1, %c0_i32, %arg0, %c0_i32_0 : i32, i32, i32, i32
  }
  func.func @transform_1(%arg0: i32, %arg1: i32) -> i32 {
    %c0_i32 = arith.constant 0 : i32
    %c0_i32_0 = arith.constant 0 : i32
    return %c0_i32 : i32
  }
  func.func @transform_2(%arg0: i32, %arg1: i32) -> i32 {
    %c0_i32 = arith.constant 0 : i32
    %c0_i32_0 = arith.constant 0 : i32
    return %c0_i32 : i32
  }
  func.func @transform_3(%arg0: i32, %arg1: i32) -> (i32, i32, i32) {
    %c0_i32 = arith.constant 0 : i32
    %c0_i32_0 = arith.constant 0 : i32
    %c0_i32_1 = arith.constant 0 : i32
    return %c0_i32, %arg0, %c0_i32_0 : i32, i32, i32
  }
}

</mosaic_0001>

<llo_original>
// kernel: tpu_custom_call.1
$region0: #{tpu_custom_call.1}
  #allocation0 [shape = 'u32[]', space=smem, size = 0x4, offset = 0x4, fixed_abs, tag = 'smem constant byte address 0x4 - core index']
  #allocation1 [shape = 'u32[72,128]{1,0:T(1,128)}', space=vmem, size = 0x9000, scoped, tag = 'internal scratch']
  #allocation2 [shape = 'f32[4,1,128]{2,1,0:T(1,128)}', space=vmem, size = 0x800, scoped, tag = 'scratch operand']
  %s0 = inlined_call_operand.hbm [shape: f32[16,2,1,128], index: 0, kind: input, shape index: {}]
  %s1 = inlined_call_operand.hbm [shape: f32[32], index: 1, kind: input, shape index: {}]
  %s2 = inlined_call_operand.vmem [shape: f32[40], index: 2, kind: input, shape index: {}]
  %s3 = inlined_call_operand.hbm [shape: f32[10,1,128], index: 3, kind: output, shape index: {}]
  %s4 = sld [smem:[#allocation0]]
  $region46: #{tpu_custom_call.1} parent=0
    _
  %s6 = ssub.s32 1, %s4
  %s7 = scalar_select 0, %s6, %s4
  $region1: #{tpu_custom_call.1} parent=0
    #allocation3 [shape = 'u8[16384]{0}', space=vmem, size = 0x4000, scoped, tag = 'input window, operand 0, single buffered']
    #allocation4 [shape = 's32[1]{0}', space=sflag, size = 0x4, scoped, tag = 'scoped memory for tpu_custom_call.1']
    #allocation5 [shape = 's32[1]{0}', space=sflag, size = 0x4, scoped, tag = 'scoped memory for tpu_custom_call.1']
    #allocation6 [shape = 's32[1]{0}', space=sflag, size = 0x4, scoped, tag = 'scoped memory for tpu_custom_call.1']
    #allocation7 [shape = 's32[1]{0}', space=sflag, size = 0x4, scoped, tag = 'scoped memory for tpu_custom_call.1']
    #allocation8 [shape = 'u8[512]{0}', space=smem, size = 0x200, scoped, tag = 'input window, operand 1, single buffered']
    #allocation9 [shape = 'u8[512]{0}', space=smem, size = 0x200, scoped, tag = 'input window, operand 2, single buffered']
    #allocation10 [shape = 'u8[5120]{0}', space=vmem, size = 0x1400, scoped, tag = 'output window, operand 0, single buffered']
    %8 = vsyncpa [#allocation4], 0
    %9 = vsyncpa [#allocation6], 0
    %10 = vsyncpa [#allocation7], 0
    %11 = vsyncpa [#allocation5], 0
    // Predicated region
    $region2: #{tpu_custom_call.1} parent=1 // pred_check
      _
    $region3: #{tpu_custom_call.1} parent=1 // pred_check_branch
      %13 = sbr.rel (0) target = $region5
    $region4: #{tpu_custom_call.1} parent=1 // pred_region
      %15 = vsyncadd [#allocation4], 0
      %s16 = sshll.u32 %s0, 4
      %s17 = int_to_ptr.hbm [resolvable:$true] %s16
      %s18 = sshll.u32 [#allocation3], 4
      %s19 = int_to_ptr.vmem [resolvable:$true] %s18
      %24 = dma.hbm_to_vmem [thread:$0]  %s17, 512, %s19, [#allocation4], 16, 16, 1
    $region5: #{tpu_custom_call.1} parent=1 // pred_fallthru
      _
    // Predicated region
    $region6: #{tpu_custom_call.1} parent=1 // pred_check
      _
    $region7: #{tpu_custom_call.1} parent=1 // pred_check_branch
      %26 = sbr.rel (0) target = $region9
    $region8: #{tpu_custom_call.1} parent=1 // pred_region
      %28 = vsyncadd [#allocation6], 0
      %s30 = sshll.u32 %s1, 4
      %s31 = int_to_ptr.hbm [resolvable:$true] %s30
      %33 = dma.hbm_to_smem %s31, 16, [#allocation8], [#allocation6]
    $region9: #{tpu_custom_call.1} parent=1 // pred_fallthru
      _
    // Predicated region
    $region10: #{tpu_custom_call.1} parent=1 // pred_check
      _
    $region11: #{tpu_custom_call.1} parent=1 // pred_check_branch
      %35 = sbr.rel (0) target = $region13
    $region12: #{tpu_custom_call.1} parent=1 // pred_region
      %37 = vsyncadd [#allocation7], 0
      %s39 = sshll.u32 %s2, 4
      %s40 = int_to_ptr.vmem [resolvable:$true] %s39
      %42 = dma.vmem_to_smem %s40, 16, [#allocation9], [#allocation7]
    $region13: #{tpu_custom_call.1} parent=1 // pred_fallthru
      _
    // Predicated region
    $region14: #{tpu_custom_call.1} parent=1 // pred_check
      _
    $region15: #{tpu_custom_call.1} parent=1 // pred_check_branch
      %44 = sbr.rel (0) target = $region17
    $region16: #{tpu_custom_call.1} parent=1 // pred_region
      %46 = dma.done [#allocation4], 512
    $region17: #{tpu_custom_call.1} parent=1 // pred_fallthru
      _
    // Predicated region
    $region18: #{tpu_custom_call.1} parent=1 // pred_check
      _
    $region19: #{tpu_custom_call.1} parent=1 // pred_check_branch
      %48 = sbr.rel (0) target = $region21
    $region20: #{tpu_custom_call.1} parent=1 // pred_region
      %50 = dma.done [#allocation6], 16
    $region21: #{tpu_custom_call.1} parent=1 // pred_fallthru
      _
    // Predicated region
    $region22: #{tpu_custom_call.1} parent=1 // pred_check
      _
    $region23: #{tpu_custom_call.1} parent=1 // pred_check_branch
      %52 = sbr.rel (0) target = $region25
    $region24: #{tpu_custom_call.1} parent=1 // pred_region
      %54 = dma.done [#allocation7], 16
    $region25: #{tpu_custom_call.1} parent=1 // pred_fallthru
      _
    %55 = sfence
    %p56 = scmp.eq.s32.totalorder 0, 0
    // Predicated region
    $region26: #{tpu_custom_call.1} parent=1 // pred_check
      %p57 = pneg %p56
    $region27: #{tpu_custom_call.1} parent=1 // pred_check_branch
      %59 = sbr.rel (%p57) target = $region29
    $region28: #{tpu_custom_call.1} parent=1 // pred_region
      %60 = vst [vmem:[#allocation2] sm:$0x1] 1.0
      %61 = vst [vmem:[#allocation2 + $0x1] sm:$0x1] 1.0
      %62 = vst [vmem:[#allocation2 + $0x2] sm:$0x1] 1.0
      %63 = vst [vmem:[#allocation2 + $0x3] sm:$0x1] 1.0
    $region29: #{tpu_custom_call.1} parent=1 // pred_fallthru
      _
    %s64 = sld [smem:[#allocation8]]
    %s65 = sld [smem:[#allocation8 + $0x1]]
    %s66 = sld [smem:[#allocation8 + $0x2]]
    %s67 = sld [smem:[#allocation8 + $0x3]]
    %s68 = sld [smem:[#allocation8 + $0x4]]
    %s69 = sld [smem:[#allocation8 + $0x5]]
    %s70 = sld [smem:[#allocation8 + $0x6]]
    %s71 = sld [smem:[#allocation8 + $0x7]]
    %s72 = sld [smem:[#allocation8 + $0x8]]
    %s73 = sld [smem:[#allocation8 + $0x9]]
    %s74 = sld [smem:[#allocation8 + $0xa]]
    %s75 = sld [smem:[#allocation8 + $0xb]]
    %s76 = sld [smem:[#allocation8 + $0xc]]
    %s77 = sld [smem:[#allocation8 + $0xd]]
    %s78 = sld [smem:[#allocation8 + $0xe]]
    %s79 = sld [smem:[#allocation8 + $0xf]]
    %s80 = sld [smem:[#allocation8 + $0x10]]
    %s81 = sld [smem:[#allocation8 + $0x11]]
    %s82 = sld [smem:[#allocation8 + $0x12]]
    %s83 = sld [smem:[#allocation8 + $0x13]]
    %s84 = sld [smem:[#allocation8 + $0x14]]
    %s85 = sld [smem:[#allocation8 + $0x15]]
    %s86 = sld [smem:[#allocation8 + $0x16]]
    %s87 = sld [smem:[#allocation8 + $0x17]]
    %s88 = sld [smem:[#allocation8 + $0x18]]
    %s89 = sld [smem:[#allocation8 + $0x19]]
    %s90 = sld [smem:[#allocation8 + $0x1a]]
    %s91 = sld [smem:[#allocation8 + $0x1b]]
    %s92 = sld [smem:[#allocation8 + $0x1c]]
    %s93 = sld [smem:[#allocation8 + $0x1d]]
    %s94 = sld [smem:[#allocation8 + $0x1e]]
    %s95 = sld [smem:[#allocation8 + $0x1f]]
    %v96 = vld [vmem:[#allocation2] sm:$0x1]
    %s97 = scalar_lea.vmem [#allocation2], 1
    %v98 = vld [vmem:[%s97] sm:$0x1]
    %s99 = scalar_lea.vmem [#allocation2], 2
    %v100 = vld [vmem:[%s99] sm:$0x1]
    %s101 = scalar_lea.vmem [#allocation2], 3
    %v102 = vld [vmem:[%s101] sm:$0x1]
    %v103 = vld [vmem:[#allocation3] sm:$0x1]
    %v104 = vld [vmem:[#allocation3 + $0x1] sm:$0x1]
    %v105 = vmul.f32 %v96, %v103
    %v106 = vmul.f32 %v96, %v104
    %v107 = vmul.f32 %v98, %v103
    %v108 = vmul.f32 %v98, %v104
    %v109 = vmul.f32 %v100, %v103
    %v110 = vmul.f32 %v100, %v104
    %v111 = vmul.f32 %v102, %v103
    %v112 = vmul.f32 %v102, %v104
    %v113 = vstv %s64
    %v114 = vmul.f32 %v113, %v105
    %v115 = vstv %s68
    %v116 = vmul.f32 %v115, %v106
    %v117 = vstv %s72
    %v118 = vmul.f32 %v117, %v107
    %v119 = vstv %s76
    %v120 = vmul.f32 %v119, %v108
    %v121 = vstv %s80
    %v122 = vmul.f32 %v121, %v109
    %v123 = vstv %s84
    %v124 = vmul.f32 %v123, %v110
    %v125 = vstv %s88
    %v126 = vmul.f32 %v125, %v111
    %v127 = vstv %s92
    %v128 = vmul.f32 %v127, %v112
    %v129 = vadd.f32 %v114, %v116
    %v130 = vadd.f32 %v118, %v120
    %v131 = vadd.f32 %v122, %v124
    %v132 = vadd.f32 %v126, %v128
    %v133 = vadd.f32 %v129, %v130
    %v134 = vadd.f32 %v131, %v132
    %v135 = vadd.f32 %v133, %v134
    %v136 = vstv %s65
    %v137 = vmul.f32 %v136, %v105
    %v138 = vstv %s69
    %v139 = vmul.f32 %v138, %v106
    %v140 = vstv %s73
    %v141 = vmul.f32 %v140, %v107
    %v142 = vstv %s77
    %v143 = vmul.f32 %v142, %v108
    %v144 = vstv %s81
    %v145 = vmul.f32 %v144, %v109
    %v146 = vstv %s85
    %v147 = vmul.f32 %v146, %v110
    %v148 = vstv %s89
    %v149 = vmul.f32 %v148, %v111
    %v150 = vstv %s93
    %v151 = vmul.f32 %v150, %v112
    %v152 = vadd.f32 %v137, %v139
    %v153 = vadd.f32 %v141, %v143
    %v154 = vadd.f32 %v145, %v147
    %v155 = vadd.f32 %v149, %v151
    %v156 = vadd.f32 %v152, %v153
    %v157 = vadd.f32 %v154, %v155
    %v158 = vadd.f32 %v156, %v157
    %v159 = vstv %s66
    %v160 = vmul.f32 %v159, %v105
    %v161 = vstv %s70
    %v162 = vmul.f32 %v161, %v106
    %v163 = vstv %s74
    %v164 = vmul.f32 %v163, %v107
    %v165 = vstv %s78
    %v166 = vmul.f32 %v165, %v108
    %v167 = vstv %s82
    %v168 = vmul.f32 %v167, %v109
    %v169 = vstv %s86
    %v170 = vmul.f32 %v169, %v110
    %v171 = vstv %s90
    %v172 = vmul.f32 %v171, %v111
    %v173 = vstv %s94
    %v174 = vmul.f32 %v173, %v112
    %v175 = vadd.f32 %v160, %v162
    %v176 = vadd.f32 %v164, %v166
    %v177 = vadd.f32 %v168, %v170
    %v178 = vadd.f32 %v172, %v174
    %v179 = vadd.f32 %v175, %v176
    %v180 = vadd.f32 %v177, %v178
    %v181 = vadd.f32 %v179, %v180
    %v182 = vstv %s67
    %v183 = vmul.f32 %v182, %v105
    %v184 = vstv %s71
    %v185 = vmul.f32 %v184, %v106
    %v186 = vstv %s75
    %v187 = vmul.f32 %v186, %v107
    %v188 = vstv %s79
    %v189 = vmul.f32 %v188, %v108
    %v190 = vstv %s83
    %v191 = vmul.f32 %v190, %v109
    %v192 = vstv %s87
    %v193 = vmul.f32 %v192, %v110
    %v194 = vstv %s91
    %v195 = vmul.f32 %v194, %v111
    %v196 = vstv %s95
    %v197 = vmul.f32 %v196, %v112
    %v198 = vadd.f32 %v183, %v185
    %v199 = vadd.f32 %v187, %v189
    %v200 = vadd.f32 %v191, %v193
    %v201 = vadd.f32 %v195, %v197
    %v202 = vadd.f32 %v198, %v199
    %v203 = vadd.f32 %v200, %v201
    %v204 = vadd.f32 %v202, %v203
    %s205 = scalar_lea.vmem [#allocation3], 2
    %v206 = vld [vmem:[%s205] sm:$0x1]
    %v207 = vld [vmem:[%s205 + $0x1] sm:$0x1]
    %v208 = vmul.f32 %v135, %v206
    %v209 = vmul.f32 %v135, %v207
    %v210 = vmul.f32 %v158, %v206
    %v211 = vmul.f32 %v158, %v207
    %v212 = vmul.f32 %v181, %v206
    %v213 = vmul.f32 %v181, %v207
    %v214 = vmul.f32 %v204, %v206
    %v215 = vmul.f32 %v204, %v207
    %v216 = vmul.f32 %v113, %v208
    %v217 = vmul.f32 %v115, %v209
    %v218 = vmul.f32 %v117, %v210
    %v219 = vmul.f32 %v119, %v211
    %v220 = vmul.f32 %v121, %v212
    %v221 = vmul.f32 %v123, %v213
    %v222 = vmul.f32 %v125, %v214
    %v223 = vmul.f32 %v127, %v215
    %v224 = vadd.f32 %v216, %v217
    %v225 = vadd.f32 %v218, %v219
    %v226 = vadd.f32 %v220, %v221
    %v227 = vadd.f32 %v222, %v223
    %v228 = vadd.f32 %v224, %v225
    %v229 = vadd.f32 %v226, %v227
    %v230 = vadd.f32 %v228, %v229
    %v231 = vmul.f32 %v136, %v208
    %v232 = vmul.f32 %v138, %v209
    %v233 = vmul.f32 %v140, %v210
    %v234 = vmul.f32 %v142, %v211
    %v235 = vmul.f32 %v144, %v212
    %v236 = vmul.f32 %v146, %v213
    %v237 = vmul.f32 %v148, %v214
    %v238 = vmul.f32 %v150, %v215
    %v239 = vadd.f32 %v231, %v232
    %v240 = vadd.f32 %v233, %v234
    %v241 = vadd.f32 %v235, %v236
    %v242 = vadd.f32 %v237, %v238
    %v243 = vadd.f32 %v239, %v240
    %v244 = vadd.f32 %v241, %v242
    %v245 = vadd.f32 %v243, %v244
    %v246 = vmul.f32 %v159, %v208
    %v247 = vmul.f32 %v161, %v209
    %v248 = vmul.f32 %v163, %v210
    %v249 = vmul.f32 %v165, %v211
    %v250 = vmul.f32 %v167, %v212
    %v251 = vmul.f32 %v169, %v213
    %v252 = vmul.f32 %v171, %v214
    %v253 = vmul.f32 %v173, %v215
    %v254 = vadd.f32 %v246, %v247
    %v255 = vadd.f32 %v248, %v249
    %v256 = vadd.f32 %v250, %v251
    %v257 = vadd.f32 %v252, %v253
    %v258 = vadd.f32 %v254, %v255
    %v259 = vadd.f32 %v256, %v257
    %v260 = vadd.f32 %v258, %v259
    %v261 = vmul.f32 %v182, %v208
    %v262 = vmul.f32 %v184, %v209
    %v263 = vmul.f32 %v186, %v210
    %v264 = vmul.f32 %v188, %v211
    %v265 = vmul.f32 %v190, %v212
    %v266 = vmul.f32 %v192, %v213
    %v267 = vmul.f32 %v194, %v214
    %v268 = vmul.f32 %v196, %v215
    %v269 = vadd.f32 %v261, %v262
    %v270 = vadd.f32 %v263, %v264
    %v271 = vadd.f32 %v265, %v266
    %v272 = vadd.f32 %v267, %v268
    %v273 = vadd.f32 %v269, %v270
    %v274 = vadd.f32 %v271, %v272
    %v275 = vadd.f32 %v273, %v274
    %s276 = scalar_lea.vmem [#allocation3], 4
    %v277 = vld [vmem:[%s276] sm:$0x1]
    %v278 = vld [vmem:[%s276 + $0x1] sm:$0x1]
    %v279 = vmul.f32 %v230, %v277
    %v280 = vmul.f32 %v230, %v278
    %v281 = vmul.f32 %v245, %v277
    %v282 = vmul.f32 %v245, %v278
    %v283 = vmul.f32 %v260, %v277
    %v284 = vmul.f32 %v260, %v278
    %v285 = vmul.f32 %v275, %v277
    %v286 = vmul.f32 %v275, %v278
    %v287 = vmul.f32 %v113, %v279
    %v288 = vmul.f32 %v115, %v280
    %v289 = vmul.f32 %v117, %v281
    %v290 = vmul.f32 %v119, %v282
    %v291 = vmul.f32 %v121, %v283
    %v292 = vmul.f32 %v123, %v284
    %v293 = vmul.f32 %v125, %v285
    %v294 = vmul.f32 %v127, %v286
    %v295 = vadd.f32 %v287, %v288
    %v296 = vadd.f32 %v289, %v290
    %v297 = vadd.f32 %v291, %v292
    %v298 = vadd.f32 %v293, %v294
    %v299 = vadd.f32 %v295, %v296
    %v300 = vadd.f32 %v297, %v298
    %v301 = vadd.f32 %v299, %v300
    %v302 = vmul.f32 %v136, %v279
    %v303 = vmul.f32 %v138, %v280
    %v304 = vmul.f32 %v140, %v281
    %v305 = vmul.f32 %v142, %v282
    %v306 = vmul.f32 %v144, %v283
    %v307 = vmul.f32 %v146, %v284
    %v308 = vmul.f32 %v148, %v285
    %v309 = vmul.f32 %v150, %v286
    %v310 = vadd.f32 %v302, %v303
    %v311 = vadd.f32 %v304, %v305
    %v312 = vadd.f32 %v306, %v307
    %v313 = vadd.f32 %v308, %v309
    %v314 = vadd.f32 %v310, %v311
    %v315 = vadd.f32 %v312, %v313
    %v316 = vadd.f32 %v314, %v315
    %v317 = vmul.f32 %v159, %v279
    %v318 = vmul.f32 %v161, %v280
    %v319 = vmul.f32 %v163, %v281
    %v320 = vmul.f32 %v165, %v282
    %v321 = vmul.f32 %v167, %v283
    %v322 = vmul.f32 %v169, %v284
    %v323 = vmul.f32 %v171, %v285
    %v324 = vmul.f32 %v173, %v286
    %v325 = vadd.f32 %v317, %v318
    %v326 = vadd.f32 %v319, %v320
    %v327 = vadd.f32 %v321, %v322
    %v328 = vadd.f32 %v323, %v324
    %v329 = vadd.f32 %v325, %v326
    %v330 = vadd.f32 %v327, %v328
    %v331 = vadd.f32 %v329, %v330
    %v332 = vmul.f32 %v182, %v279
    %v333 = vmul.f32 %v184, %v280
    %v334 = vmul.f32 %v186, %v281
    %v335 = vmul.f32 %v188, %v282
    %v336 = vmul.f32 %v190, %v283
    %v337 = vmul.f32 %v192, %v284
    %v338 = vmul.f32 %v194, %v285
    %v339 = vmul.f32 %v196, %v286
    %v340 = vadd.f32 %v332, %v333
    %v341 = vadd.f32 %v334, %v335
    %v342 = vadd.f32 %v336, %v337
    %v343 = vadd.f32 %v338, %v339
    %v344 = vadd.f32 %v340, %v341
    %v345 = vadd.f32 %v342, %v343
    %v346 = vadd.f32 %v344, %v345
    %s347 = scalar_lea.vmem [#allocation3], 6
    %v348 = vld [vmem:[%s347] sm:$0x1]
    %v349 = vld [vmem:[%s347 + $0x1] sm:$0x1]
    %v350 = vmul.f32 %v301, %v348
    %v351 = vmul.f32 %v301, %v349
    %v352 = vmul.f32 %v316, %v348
    %v353 = vmul.f32 %v316, %v349
    %v354 = vmul.f32 %v331, %v348
    %v355 = vmul.f32 %v331, %v349
    %v356 = vmul.f32 %v346, %v348
    %v357 = vmul.f32 %v346, %v349
    %v358 = vmul.f32 %v113, %v350
    %v359 = vmul.f32 %v115, %v351
    %v360 = vmul.f32 %v117, %v352
    %v361 = vmul.f32 %v119, %v353
    %v362 = vmul.f32 %v121, %v354
    %v363 = vmul.f32 %v123, %v355
    %v364 = vmul.f32 %v125, %v356
    %v365 = vmul.f32 %v127, %v357
    %v366 = vadd.f32 %v358, %v359
    %v367 = vadd.f32 %v360, %v361
    %v368 = vadd.f32 %v362, %v363
    %v369 = vadd.f32 %v364, %v365
    %v370 = vadd.f32 %v366, %v367
    %v371 = vadd.f32 %v368, %v369
    %v372 = vadd.f32 %v370, %v371
    %v373 = vmul.f32 %v136, %v350
    %v374 = vmul.f32 %v138, %v351
    %v375 = vmul.f32 %v140, %v352
    %v376 = vmul.f32 %v142, %v353
    %v377 = vmul.f32 %v144, %v354
    %v378 = vmul.f32 %v146, %v355
    %v379 = vmul.f32 %v148, %v356
    %v380 = vmul.f32 %v150, %v357
    %v381 = vadd.f32 %v373, %v374
    %v382 = vadd.f32 %v375, %v376
    %v383 = vadd.f32 %v377, %v378
    %v384 = vadd.f32 %v379, %v380
    %v385 = vadd.f32 %v381, %v382
    %v386 = vadd.f32 %v383, %v384
    %v387 = vadd.f32 %v385, %v386
    %v388 = vmul.f32 %v159, %v350
    %v389 = vmul.f32 %v161, %v351
    %v390 = vmul.f32 %v163, %v352
    %v391 = vmul.f32 %v165, %v353
    %v392 = vmul.f32 %v167, %v354
    %v393 = vmul.f32 %v169, %v355
    %v394 = vmul.f32 %v171, %v356
    %v395 = vmul.f32 %v173, %v357
    %v396 = vadd.f32 %v388, %v389
    %v397 = vadd.f32 %v390, %v391
    %v398 = vadd.f32 %v392, %v393
    %v399 = vadd.f32 %v394, %v395
    %v400 = vadd.f32 %v396, %v397
    %v401 = vadd.f32 %v398, %v399
    %v402 = vadd.f32 %v400, %v401
    %v403 = vmul.f32 %v182, %v350
    %v404 = vmul.f32 %v184, %v351
    %v405 = vmul.f32 %v186, %v352
    %v406 = vmul.f32 %v188, %v353
    %v407 = vmul.f32 %v190, %v354
    %v408 = vmul.f32 %v192, %v355
    %v409 = vmul.f32 %v194, %v356
    %v410 = vmul.f32 %v196, %v357
    %v411 = vadd.f32 %v403, %v404
    %v412 = vadd.f32 %v405, %v406
    %v413 = vadd.f32 %v407, %v408
    %v414 = vadd.f32 %v409, %v410
    %v415 = vadd.f32 %v411, %v412
    %v416 = vadd.f32 %v413, %v414
    %v417 = vadd.f32 %v415, %v416
    %s418 = scalar_lea.vmem [#allocation3], 8
    %v419 = vld [vmem:[%s418] sm:$0x1]
    %v420 = vld [vmem:[%s418 + $0x1] sm:$0x1]
    %v421 = vmul.f32 %v372, %v419
    %v422 = vmul.f32 %v372, %v420
    %v423 = vmul.f32 %v387, %v419
    %v424 = vmul.f32 %v387, %v420
    %v425 = vmul.f32 %v402, %v419
    %v426 = vmul.f32 %v402, %v420
    %v427 = vmul.f32 %v417, %v419
    %v428 = vmul.f32 %v417, %v420
    %v429 = vmul.f32 %v113, %v421
    %v430 = vmul.f32 %v115, %v422
    %v431 = vmul.f32 %v117, %v423
    %v432 = vmul.f32 %v119, %v424
    %v433 = vmul.f32 %v121, %v425
    %v434 = vmul.f32 %v123, %v426
    %v435 = vmul.f32 %v125, %v427
    %v436 = vmul.f32 %v127, %v428
    %v437 = vadd.f32 %v429, %v430
    %v438 = vadd.f32 %v431, %v432
    %v439 = vadd.f32 %v433, %v434
    %v440 = vadd.f32 %v435, %v436
    %v441 = vadd.f32 %v437, %v438
    %v442 = vadd.f32 %v439, %v440
    %v443 = vadd.f32 %v441, %v442
    %v444 = vmul.f32 %v136, %v421
    %v445 = vmul.f32 %v138, %v422
    %v446 = vmul.f32 %v140, %v423
    %v447 = vmul.f32 %v142, %v424
    %v448 = vmul.f32 %v144, %v425
    %v449 = vmul.f32 %v146, %v426
    %v450 = vmul.f32 %v148, %v427
    %v451 = vmul.f32 %v150, %v428
    %v452 = vadd.f32 %v444, %v445
    %v453 = vadd.f32 %v446, %v447
    %v454 = vadd.f32 %v448, %v449
    %v455 = vadd.f32 %v450, %v451
    %v456 = vadd.f32 %v452, %v453
    %v457 = vadd.f32 %v454, %v455
    %v458 = vadd.f32 %v456, %v457
    %v459 = vmul.f32 %v159, %v421
    %v460 = vmul.f32 %v161, %v422
    %v461 = vmul.f32 %v163, %v423
    %v462 = vmul.f32 %v165, %v424
    %v463 = vmul.f32 %v167, %v425
    %v464 = vmul.f32 %v169, %v426
    %v465 = vmul.f32 %v171, %v427
    %v466 = vmul.f32 %v173, %v428
    %v467 = vadd.f32 %v459, %v460
    %v468 = vadd.f32 %v461, %v462
    %v469 = vadd.f32 %v463, %v464
    %v470 = vadd.f32 %v465, %v466
    %v471 = vadd.f32 %v467, %v468
    %v472 = vadd.f32 %v469, %v470
    %v473 = vadd.f32 %v471, %v472
    %v474 = vmul.f32 %v182, %v421
    %v475 = vmul.f32 %v184, %v422
    %v476 = vmul.f32 %v186, %v423
    %v477 = vmul.f32 %v188, %v424
    %v478 = vmul.f32 %v190, %v425
    %v479 = vmul.f32 %v192, %v426
    %v480 = vmul.f32 %v194, %v427
    %v481 = vmul.f32 %v196, %v428
    %v482 = vadd.f32 %v474, %v475
    %v483 = vadd.f32 %v476, %v477
    %v484 = vadd.f32 %v478, %v479
    %v485 = vadd.f32 %v480, %v481
    %v486 = vadd.f32 %v482, %v483
    %v487 = vadd.f32 %v484, %v485
    %v488 = vadd.f32 %v486, %v487
    %s489 = scalar_lea.vmem [#allocation3], 10
    %v490 = vld [vmem:[%s489] sm:$0x1]
    %v491 = vld [vmem:[%s489 + $0x1] sm:$0x1]
    %v492 = vmul.f32 %v443, %v490
    %v493 = vmul.f32 %v443, %v491
    %v494 = vmul.f32 %v458, %v490
    %v495 = vmul.f32 %v458, %v491
    %v496 = vmul.f32 %v473, %v490
    %v497 = vmul.f32 %v473, %v491
    %v498 = vmul.f32 %v488, %v490
    %v499 = vmul.f32 %v488, %v491
    %v500 = vmul.f32 %v113, %v492
    %v501 = vmul.f32 %v115, %v493
    %v502 = vmul.f32 %v117, %v494
    %v503 = vmul.f32 %v119, %v495
    %v504 = vmul.f32 %v121, %v496
    %v505 = vmul.f32 %v123, %v497
    %v506 = vmul.f32 %v125, %v498
    %v507 = vmul.f32 %v127, %v499
    %v508 = vadd.f32 %v500, %v501
    %v509 = vadd.f32 %v502, %v503
    %v510 = vadd.f32 %v504, %v505
    %v511 = vadd.f32 %v506, %v507
    %v512 = vadd.f32 %v508, %v509
    %v513 = vadd.f32 %v510, %v511
    %v514 = vadd.f32 %v512, %v513
    %v515 = vmul.f32 %v136, %v492
    %v516 = vmul.f32 %v138, %v493
    %v517 = vmul.f32 %v140, %v494
    %v518 = vmul.f32 %v142, %v495
    %v519 = vmul.f32 %v144, %v496
    %v520 = vmul.f32 %v146, %v497
    %v521 = vmul.f32 %v148, %v498
    %v522 = vmul.f32 %v150, %v499
    %v523 = vadd.f32 %v515, %v516
    %v524 = vadd.f32 %v517, %v518
    %v525 = vadd.f32 %v519, %v520
    %v526 = vadd.f32 %v521, %v522
    %v527 = vadd.f32 %v523, %v524
    %v528 = vadd.f32 %v525, %v526
    %v529 = vadd.f32 %v527, %v528
    %v530 = vmul.f32 %v159, %v492
    %v531 = vmul.f32 %v161, %v493
    %v532 = vmul.f32 %v163, %v494
    %v533 = vmul.f32 %v165, %v495
    %v534 = vmul.f32 %v167, %v496
    %v535 = vmul.f32 %v169, %v497
    %v536 = vmul.f32 %v171, %v498
    %v537 = vmul.f32 %v173, %v499
    %v538 = vadd.f32 %v530, %v531
    %v539 = vadd.f32 %v532, %v533
    %v540 = vadd.f32 %v534, %v535
    %v541 = vadd.f32 %v536, %v537
    %v542 = vadd.f32 %v538, %v539
    %v543 = vadd.f32 %v540, %v541
    %v544 = vadd.f32 %v542, %v543
    %v545 = vmul.f32 %v182, %v492
    %v546 = vmul.f32 %v184, %v493
    %v547 = vmul.f32 %v186, %v494
    %v548 = vmul.f32 %v188, %v495
    %v549 = vmul.f32 %v190, %v496
    %v550 = vmul.f32 %v192, %v497
    %v551 = vmul.f32 %v194, %v498
    %v552 = vmul.f32 %v196, %v499
    %v553 = vadd.f32 %v545, %v546
    %v554 = vadd.f32 %v547, %v548
    %v555 = vadd.f32 %v549, %v550
    %v556 = vadd.f32 %v551, %v552
    %v557 = vadd.f32 %v553, %v554
    %v558 = vadd.f32 %v555, %v556
    %v559 = vadd.f32 %v557, %v558
    %s560 = scalar_lea.vmem [#allocation3], 12
    %v561 = vld [vmem:[%s560] sm:$0x1]
    %v562 = vld [vmem:[%s560 + $0x1] sm:$0x1]
    %v563 = vmul.f32 %v514, %v561
    %v564 = vmul.f32 %v514, %v562
    %v565 = vmul.f32 %v529, %v561
    %v566 = vmul.f32 %v529, %v562
    %v567 = vmul.f32 %v544, %v561
    %v568 = vmul.f32 %v544, %v562
    %v569 = vmul.f32 %v559, %v561
    %v570 = vmul.f32 %v559, %v562
    %v571 = vmul.f32 %v113, %v563
    %v572 = vmul.f32 %v115, %v564
    %v573 = vmul.f32 %v117, %v565
    %v574 = vmul.f32 %v119, %v566
    %v575 = vmul.f32 %v121, %v567
    %v576 = vmul.f32 %v123, %v568
    %v577 = vmul.f32 %v125, %v569
    %v578 = vmul.f32 %v127, %v570
    %v579 = vadd.f32 %v571, %v572
    %v580 = vadd.f32 %v573, %v574
    %v581 = vadd.f32 %v575, %v576
    %v582 = vadd.f32 %v577, %v578
    %v583 = vadd.f32 %v579, %v580
    %v584 = vadd.f32 %v581, %v582
    %v585 = vadd.f32 %v583, %v584
    %v586 = vmul.f32 %v136, %v563
    %v587 = vmul.f32 %v138, %v564
    %v588 = vmul.f32 %v140, %v565
    %v589 = vmul.f32 %v142, %v566
    %v590 = vmul.f32 %v144, %v567
    %v591 = vmul.f32 %v146, %v568
    %v592 = vmul.f32 %v148, %v569
    %v593 = vmul.f32 %v150, %v570
    %v594 = vadd.f32 %v586, %v587
    %v595 = vadd.f32 %v588, %v589
    %v596 = vadd.f32 %v590, %v591
    %v597 = vadd.f32 %v592, %v593
    %v598 = vadd.f32 %v594, %v595
    %v599 = vadd.f32 %v596, %v597
    %v600 = vadd.f32 %v598, %v599
    %v601 = vmul.f32 %v159, %v563
    %v602 = vmul.f32 %v161, %v564
    %v603 = vmul.f32 %v163, %v565
    %v604 = vmul.f32 %v165, %v566
    %v605 = vmul.f32 %v167, %v567
    %v606 = vmul.f32 %v169, %v568
    %v607 = vmul.f32 %v171, %v569
    %v608 = vmul.f32 %v173, %v570
    %v609 = vadd.f32 %v601, %v602
    %v610 = vadd.f32 %v603, %v604
    %v611 = vadd.f32 %v605, %v606
    %v612 = vadd.f32 %v607, %v608
    %v613 = vadd.f32 %v609, %v610
    %v614 = vadd.f32 %v611, %v612
    %v615 = vadd.f32 %v613, %v614
    %v616 = vmul.f32 %v182, %v563
    %v617 = vmul.f32 %v184, %v564
    %v618 = vmul.f32 %v186, %v565
    %v619 = vmul.f32 %v188, %v566
    %v620 = vmul.f32 %v190, %v567
    %v621 = vmul.f32 %v192, %v568
    %v622 = vmul.f32 %v194, %v569
    %v623 = vmul.f32 %v196, %v570
    %v624 = vadd.f32 %v616, %v617
    %v625 = vadd.f32 %v618, %v619
    %v626 = vadd.f32 %v620, %v621
    %v627 = vadd.f32 %v622, %v623
    %v628 = vadd.f32 %v624, %v625
    %v629 = vadd.f32 %v626, %v627
    %v630 = vadd.f32 %v628, %v629
    %s631 = scalar_lea.vmem [#allocation3], 14
    %v632 = vld [vmem:[%s631] sm:$0x1]
    %v633 = vld [vmem:[%s631 + $0x1] sm:$0x1]
    %v634 = vmul.f32 %v585, %v632
    %v635 = vmul.f32 %v585, %v633
    %v636 = vmul.f32 %v600, %v632
    %v637 = vmul.f32 %v600, %v633
    %v638 = vmul.f32 %v615, %v632
    %v639 = vmul.f32 %v615, %v633
    %v640 = vmul.f32 %v630, %v632
    %v641 = vmul.f32 %v630, %v633
    %v642 = vmul.f32 %v113, %v634
    %v643 = vmul.f32 %v115, %v635
    %v644 = vmul.f32 %v117, %v636
    %v645 = vmul.f32 %v119, %v637
    %v646 = vmul.f32 %v121, %v638
    %v647 = vmul.f32 %v123, %v639
    %v648 = vmul.f32 %v125, %v640
    %v649 = vmul.f32 %v127, %v641
    %v650 = vadd.f32 %v642, %v643
    %v651 = vadd.f32 %v644, %v645
    %v652 = vadd.f32 %v646, %v647
    %v653 = vadd.f32 %v648, %v649
    %v654 = vadd.f32 %v650, %v651
    %v655 = vadd.f32 %v652, %v653
    %v656 = vadd.f32 %v654, %v655
    %v657 = vmul.f32 %v136, %v634
    %v658 = vmul.f32 %v138, %v635
    %v659 = vmul.f32 %v140, %v636
    %v660 = vmul.f32 %v142, %v637
    %v661 = vmul.f32 %v144, %v638
    %v662 = vmul.f32 %v146, %v639
    %v663 = vmul.f32 %v148, %v640
    %v664 = vmul.f32 %v150, %v641
    %v665 = vadd.f32 %v657, %v658
    %v666 = vadd.f32 %v659, %v660
    %v667 = vadd.f32 %v661, %v662
    %v668 = vadd.f32 %v663, %v664
    %v669 = vadd.f32 %v665, %v666
    %v670 = vadd.f32 %v667, %v668
    %v671 = vadd.f32 %v669, %v670
    %v672 = vmul.f32 %v159, %v634
    %v673 = vmul.f32 %v161, %v635
    %v674 = vmul.f32 %v163, %v636
    %v675 = vmul.f32 %v165, %v637
    %v676 = vmul.f32 %v167, %v638
    %v677 = vmul.f32 %v169, %v639
    %v678 = vmul.f32 %v171, %v640
    %v679 = vmul.f32 %v173, %v641
    %v680 = vadd.f32 %v672, %v673
    %v681 = vadd.f32 %v674, %v675
    %v682 = vadd.f32 %v676, %v677
    %v683 = vadd.f32 %v678, %v679
    %v684 = vadd.f32 %v680, %v681
    %v685 = vadd.f32 %v682, %v683
    %v686 = vadd.f32 %v684, %v685
    %v687 = vmul.f32 %v182, %v634
    %v688 = vmul.f32 %v184, %v635
    %v689 = vmul.f32 %v186, %v636
    %v690 = vmul.f32 %v188, %v637
    %v691 = vmul.f32 %v190, %v638
    %v692 = vmul.f32 %v192, %v639
    %v693 = vmul.f32 %v194, %v640
    %v694 = vmul.f32 %v196, %v641
    %v695 = vadd.f32 %v687, %v688
    %v696 = vadd.f32 %v689, %v690
    %v697 = vadd.f32 %v691, %v692
    %v698 = vadd.f32 %v693, %v694
    %v699 = vadd.f32 %v695, %v696
    %v700 = vadd.f32 %v697, %v698
    %v701 = vadd.f32 %v699, %v700
    %s702 = scalar_lea.vmem [#allocation3], 16
    %v703 = vld [vmem:[%s702] sm:$0x1]
    %v704 = vld [vmem:[%s702 + $0x1] sm:$0x1]
    %v705 = vmul.f32 %v656, %v703
    %v706 = vmul.f32 %v656, %v704
    %v707 = vmul.f32 %v671, %v703
    %v708 = vmul.f32 %v671, %v704
    %v709 = vmul.f32 %v686, %v703
    %v710 = vmul.f32 %v686, %v704
    %v711 = vmul.f32 %v701, %v703
    %v712 = vmul.f32 %v701, %v704
    %v713 = vmul.f32 %v113, %v705
    %v714 = vmul.f32 %v115, %v706
    %v715 = vmul.f32 %v117, %v707
    %v716 = vmul.f32 %v119, %v708
    %v717 = vmul.f32 %v121, %v709
    %v718 = vmul.f32 %v123, %v710
    %v719 = vmul.f32 %v125, %v711
    %v720 = vmul.f32 %v127, %v712
    %v721 = vadd.f32 %v713, %v714
    %v722 = vadd.f32 %v715, %v716
    %v723 = vadd.f32 %v717, %v718
    %v724 = vadd.f32 %v719, %v720
    %v725 = vadd.f32 %v721, %v722
    %v726 = vadd.f32 %v723, %v724
    %v727 = vadd.f32 %v725, %v726
    %v728 = vmul.f32 %v136, %v705
    %v729 = vmul.f32 %v138, %v706
    %v730 = vmul.f32 %v140, %v707
    %v731 = vmul.f32 %v142, %v708
    %v732 = vmul.f32 %v144, %v709
    %v733 = vmul.f32 %v146, %v710
    %v734 = vmul.f32 %v148, %v711
    %v735 = vmul.f32 %v150, %v712
    %v736 = vadd.f32 %v728, %v729
    %v737 = vadd.f32 %v730, %v731
    %v738 = vadd.f32 %v732, %v733
    %v739 = vadd.f32 %v734, %v735
    %v740 = vadd.f32 %v736, %v737
    %v741 = vadd.f32 %v738, %v739
    %v742 = vadd.f32 %v740, %v741
    %v743 = vmul.f32 %v159, %v705
    %v744 = vmul.f32 %v161, %v706
    %v745 = vmul.f32 %v163, %v707
    %v746 = vmul.f32 %v165, %v708
    %v747 = vmul.f32 %v167, %v709
    %v748 = vmul.f32 %v169, %v710
    %v749 = vmul.f32 %v171, %v711
    %v750 = vmul.f32 %v173, %v712
    %v751 = vadd.f32 %v743, %v744
    %v752 = vadd.f32 %v745, %v746
    %v753 = vadd.f32 %v747, %v748
    %v754 = vadd.f32 %v749, %v750
    %v755 = vadd.f32 %v751, %v752
    %v756 = vadd.f32 %v753, %v754
    %v757 = vadd.f32 %v755, %v756
    %v758 = vmul.f32 %v182, %v705
    %v759 = vmul.f32 %v184, %v706
    %v760 = vmul.f32 %v186, %v707
    %v761 = vmul.f32 %v188, %v708
    %v762 = vmul.f32 %v190, %v709
    %v763 = vmul.f32 %v192, %v710
    %v764 = vmul.f32 %v194, %v711
    %v765 = vmul.f32 %v196, %v712
    %v766 = vadd.f32 %v758, %v759
    %v767 = vadd.f32 %v760, %v761
    %v768 = vadd.f32 %v762, %v763
    %v769 = vadd.f32 %v764, %v765
    %v770 = vadd.f32 %v766, %v767
    %v771 = vadd.f32 %v768, %v769
    %v772 = vadd.f32 %v770, %v771
    %s773 = scalar_lea.vmem [#allocation3], 18
    %v774 = vld [vmem:[%s773] sm:$0x1]
    %v775 = vld [vmem:[%s773 + $0x1] sm:$0x1]
    %v776 = vmul.f32 %v727, %v774
    %v777 = vmul.f32 %v727, %v775
    %v778 = vmul.f32 %v742, %v774
    %v779 = vmul.f32 %v742, %v775
    %v780 = vmul.f32 %v757, %v774
    %v781 = vmul.f32 %v757, %v775
    %v782 = vmul.f32 %v772, %v774
    %v783 = vmul.f32 %v772, %v775
    %v784 = vmul.f32 %v113, %v776
    %v785 = vmul.f32 %v115, %v777
    %v786 = vmul.f32 %v117, %v778
    %v787 = vmul.f32 %v119, %v779
    %v788 = vmul.f32 %v121, %v780
    %v789 = vmul.f32 %v123, %v781
    %v790 = vmul.f32 %v125, %v782
    %v791 = vmul.f32 %v127, %v783
    %v792 = vadd.f32 %v784, %v785
    %v793 = vadd.f32 %v786, %v787
    %v794 = vadd.f32 %v788, %v789
    %v795 = vadd.f32 %v790, %v791
    %v796 = vadd.f32 %v792, %v793
    %v797 = vadd.f32 %v794, %v795
    %v798 = vadd.f32 %v796, %v797
    %v799 = vmul.f32 %v136, %v776
    %v800 = vmul.f32 %v138, %v777
    %v801 = vmul.f32 %v140, %v778
    %v802 = vmul.f32 %v142, %v779
    %v803 = vmul.f32 %v144, %v780
    %v804 = vmul.f32 %v146, %v781
    %v805 = vmul.f32 %v148, %v782
    %v806 = vmul.f32 %v150, %v783
    %v807 = vadd.f32 %v799, %v800
    %v808 = vadd.f32 %v801, %v802
    %v809 = vadd.f32 %v803, %v804
    %v810 = vadd.f32 %v805, %v806
    %v811 = vadd.f32 %v807, %v808
    %v812 = vadd.f32 %v809, %v810
    %v813 = vadd.f32 %v811, %v812
    %v814 = vmul.f32 %v159, %v776
    %v815 = vmul.f32 %v161, %v777
    %v816 = vmul.f32 %v163, %v778
    %v817 = vmul.f32 %v165, %v779
    %v818 = vmul.f32 %v167, %v780
    %v819 = vmul.f32 %v169, %v781
    %v820 = vmul.f32 %v171, %v782
    %v821 = vmul.f32 %v173, %v783
    %v822 = vadd.f32 %v814, %v815
    %v823 = vadd.f32 %v816, %v817
    %v824 = vadd.f32 %v818, %v819
    %v825 = vadd.f32 %v820, %v821
    %v826 = vadd.f32 %v822, %v823
    %v827 = vadd.f32 %v824, %v825
    %v828 = vadd.f32 %v826, %v827
    %v829 = vmul.f32 %v182, %v776
    %v830 = vmul.f32 %v184, %v777
    %v831 = vmul.f32 %v186, %v778
    %v832 = vmul.f32 %v188, %v779
    %v833 = vmul.f32 %v190, %v780
    %v834 = vmul.f32 %v192, %v781
    %v835 = vmul.f32 %v194, %v782
    %v836 = vmul.f32 %v196, %v783
    %v837 = vadd.f32 %v829, %v830
    %v838 = vadd.f32 %v831, %v832
    %v839 = vadd.f32 %v833, %v834
    %v840 = vadd.f32 %v835, %v836
    %v841 = vadd.f32 %v837, %v838
    %v842 = vadd.f32 %v839, %v840
    %v843 = vadd.f32 %v841, %v842
    %s844 = scalar_lea.vmem [#allocation3], 20
    %v845 = vld [vmem:[%s844] sm:$0x1]
    %v846 = vld [vmem:[%s844 + $0x1] sm:$0x1]
    %v847 = vmul.f32 %v798, %v845
    %v848 = vmul.f32 %v798, %v846
    %v849 = vmul.f32 %v813, %v845
    %v850 = vmul.f32 %v813, %v846
    %v851 = vmul.f32 %v828, %v845
    %v852 = vmul.f32 %v828, %v846
    %v853 = vmul.f32 %v843, %v845
    %v854 = vmul.f32 %v843, %v846
    %v855 = vmul.f32 %v113, %v847
    %v856 = vmul.f32 %v115, %v848
    %v857 = vmul.f32 %v117, %v849
    %v858 = vmul.f32 %v119, %v850
    %v859 = vmul.f32 %v121, %v851
    %v860 = vmul.f32 %v123, %v852
    %v861 = vmul.f32 %v125, %v853
    %v862 = vmul.f32 %v127, %v854
    %v863 = vadd.f32 %v855, %v856
    %v864 = vadd.f32 %v857, %v858
    %v865 = vadd.f32 %v859, %v860
    %v866 = vadd.f32 %v861, %v862
    %v867 = vadd.f32 %v863, %v864
    %v868 = vadd.f32 %v865, %v866
    %v869 = vadd.f32 %v867, %v868
    %v870 = vmul.f32 %v136, %v847
    %v871 = vmul.f32 %v138, %v848
    %v872 = vmul.f32 %v140, %v849
    %v873 = vmul.f32 %v142, %v850
    %v874 = vmul.f32 %v144, %v851
    %v875 = vmul.f32 %v146, %v852
    %v876 = vmul.f32 %v148, %v853
    %v877 = vmul.f32 %v150, %v854
    %v878 = vadd.f32 %v870, %v871
    %v879 = vadd.f32 %v872, %v873
    %v880 = vadd.f32 %v874, %v875
    %v881 = vadd.f32 %v876, %v877
    %v882 = vadd.f32 %v878, %v879
    %v883 = vadd.f32 %v880, %v881
    %v884 = vadd.f32 %v882, %v883
    %v885 = vmul.f32 %v159, %v847
    %v886 = vmul.f32 %v161, %v848
    %v887 = vmul.f32 %v163, %v849
    %v888 = vmul.f32 %v165, %v850
    %v889 = vmul.f32 %v167, %v851
    %v890 = vmul.f32 %v169, %v852
    %v891 = vmul.f32 %v171, %v853
    %v892 = vmul.f32 %v173, %v854
    %v893 = vadd.f32 %v885, %v886
    %v894 = vadd.f32 %v887, %v888
    %v895 = vadd.f32 %v889, %v890
    %v896 = vadd.f32 %v891, %v892
    %v897 = vadd.f32 %v893, %v894
    %v898 = vadd.f32 %v895, %v896
    %v899 = vadd.f32 %v897, %v898
    %v900 = vmul.f32 %v182, %v847
    %v901 = vmul.f32 %v184, %v848
    %v902 = vmul.f32 %v186, %v849
    %v903 = vmul.f32 %v188, %v850
    %v904 = vmul.f32 %v190, %v851
    %v905 = vmul.f32 %v192, %v852
    %v906 = vmul.f32 %v194, %v853
    %v907 = vmul.f32 %v196, %v854
    %v908 = vadd.f32 %v900, %v901
    %v909 = vadd.f32 %v902, %v903
    %v910 = vadd.f32 %v904, %v905
    %v911 = vadd.f32 %v906, %v907
    %v912 = vadd.f32 %v908, %v909
    %v913 = vadd.f32 %v910, %v911
    %v914 = vadd.f32 %v912, %v913
    %s915 = scalar_lea.vmem [#allocation3], 22
    %v916 = vld [vmem:[%s915] sm:$0x1]
    %v917 = vld [vmem:[%s915 + $0x1] sm:$0x1]
    %v918 = vmul.f32 %v869, %v916
    %v919 = vmul.f32 %v869, %v917
    %v920 = vmul.f32 %v884, %v916
    %v921 = vmul.f32 %v884, %v917
    %v922 = vmul.f32 %v899, %v916
    %v923 = vmul.f32 %v899, %v917
    %v924 = vmul.f32 %v914, %v916
    %v925 = vmul.f32 %v914, %v917
    %v926 = vmul.f32 %v113, %v918
    %v927 = vmul.f32 %v115, %v919
    %v928 = vmul.f32 %v117, %v920
    %v929 = vmul.f32 %v119, %v921
    %v930 = vmul.f32 %v121, %v922
    %v931 = vmul.f32 %v123, %v923
    %v932 = vmul.f32 %v125, %v924
    %v933 = vmul.f32 %v127, %v925
    %v934 = vadd.f32 %v926, %v927
    %v935 = vadd.f32 %v928, %v929
    %v936 = vadd.f32 %v930, %v931
    %v937 = vadd.f32 %v932, %v933
    %v938 = vadd.f32 %v934, %v935
    %v939 = vadd.f32 %v936, %v937
    %v940 = vadd.f32 %v938, %v939
    %v941 = vmul.f32 %v136, %v918
    %v942 = vmul.f32 %v138, %v919
    %v943 = vmul.f32 %v140, %v920
    %v944 = vmul.f32 %v142, %v921
    %v945 = vmul.f32 %v144, %v922
    %v946 = vmul.f32 %v146, %v923
    %v947 = vmul.f32 %v148, %v924
    %v948 = vmul.f32 %v150, %v925
    %v949 = vadd.f32 %v941, %v942
    %v950 = vadd.f32 %v943, %v944
    %v951 = vadd.f32 %v945, %v946
    %v952 = vadd.f32 %v947, %v948
    %v953 = vadd.f32 %v949, %v950
    %v954 = vadd.f32 %v951, %v952
    %v955 = vadd.f32 %v953, %v954
    %v956 = vmul.f32 %v159, %v918
    %v957 = vmul.f32 %v161, %v919
    %v958 = vmul.f32 %v163, %v920
    %v959 = vmul.f32 %v165, %v921
    %v960 = vmul.f32 %v167, %v922
    %v961 = vmul.f32 %v169, %v923
    %v962 = vmul.f32 %v171, %v924
    %v963 = vmul.f32 %v173, %v925
    %v964 = vadd.f32 %v956, %v957
    %v965 = vadd.f32 %v958, %v959
    %v966 = vadd.f32 %v960, %v961
    %v967 = vadd.f32 %v962, %v963
    %v968 = vadd.f32 %v964, %v965
    %v969 = vadd.f32 %v966, %v967
    %v970 = vadd.f32 %v968, %v969
    %v971 = vmul.f32 %v182, %v918
    %v972 = vmul.f32 %v184, %v919
    %v973 = vmul.f32 %v186, %v920
    %v974 = vmul.f32 %v188, %v921
    %v975 = vmul.f32 %v190, %v922
    %v976 = vmul.f32 %v192, %v923
    %v977 = vmul.f32 %v194, %v924
    %v978 = vmul.f32 %v196, %v925
    %v979 = vadd.f32 %v971, %v972
    %v980 = vadd.f32 %v973, %v974
    %v981 = vadd.f32 %v975, %v976
    %v982 = vadd.f32 %v977, %v978
    %v983 = vadd.f32 %v979, %v980
    %v984 = vadd.f32 %v981, %v982
    %v985 = vadd.f32 %v983, %v984
    %s986 = scalar_lea.vmem [#allocation3], 24
    %v987 = vld [vmem:[%s986] sm:$0x1]
    %v988 = vld [vmem:[%s986 + $0x1] sm:$0x1]
    %v989 = vmul.f32 %v940, %v987
    %v990 = vmul.f32 %v940, %v988
    %v991 = vmul.f32 %v955, %v987
    %v992 = vmul.f32 %v955, %v988
    %v993 = vmul.f32 %v970, %v987
    %v994 = vmul.f32 %v970, %v988
    %v995 = vmul.f32 %v985, %v987
    %v996 = vmul.f32 %v985, %v988
    %v997 = vmul.f32 %v113, %v989
    %v998 = vmul.f32 %v115, %v990
    %v999 = vmul.f32 %v117, %v991
    %v1000 = vmul.f32 %v119, %v992
    %v1001 = vmul.f32 %v121, %v993
    %v1002 = vmul.f32 %v123, %v994
    %v1003 = vmul.f32 %v125, %v995
    %v1004 = vmul.f32 %v127, %v996
    %v1005 = vadd.f32 %v997, %v998
    %v1006 = vadd.f32 %v999, %v1000
    %v1007 = vadd.f32 %v1001, %v1002
    %v1008 = vadd.f32 %v1003, %v1004
    %v1009 = vadd.f32 %v1005, %v1006
    %v1010 = vadd.f32 %v1007, %v1008
    %v1011 = vadd.f32 %v1009, %v1010
    %v1012 = vmul.f32 %v136, %v989
    %v1013 = vmul.f32 %v138, %v990
    %v1014 = vmul.f32 %v140, %v991
    %v1015 = vmul.f32 %v142, %v992
    %v1016 = vmul.f32 %v144, %v993
    %v1017 = vmul.f32 %v146, %v994
    %v1018 = vmul.f32 %v148, %v995
    %v1019 = vmul.f32 %v150, %v996
    %v1020 = vadd.f32 %v1012, %v1013
    %v1021 = vadd.f32 %v1014, %v1015
    %v1022 = vadd.f32 %v1016, %v1017
    %v1023 = vadd.f32 %v1018, %v1019
    %v1024 = vadd.f32 %v1020, %v1021
    %v1025 = vadd.f32 %v1022, %v1023
    %v1026 = vadd.f32 %v1024, %v1025
    %v1027 = vmul.f32 %v159, %v989
    %v1028 = vmul.f32 %v161, %v990
    %v1029 = vmul.f32 %v163, %v991
    %v1030 = vmul.f32 %v165, %v992
    %v1031 = vmul.f32 %v167, %v993
    %v1032 = vmul.f32 %v169, %v994
    %v1033 = vmul.f32 %v171, %v995
    %v1034 = vmul.f32 %v173, %v996
    %v1035 = vadd.f32 %v1027, %v1028
    %v1036 = vadd.f32 %v1029, %v1030
    %v1037 = vadd.f32 %v1031, %v1032
    %v1038 = vadd.f32 %v1033, %v1034
    %v1039 = vadd.f32 %v1035, %v1036
    %v1040 = vadd.f32 %v1037, %v1038
    %v1041 = vadd.f32 %v1039, %v1040
    %v1042 = vmul.f32 %v182, %v989
    %v1043 = vmul.f32 %v184, %v990
    %v1044 = vmul.f32 %v186, %v991
    %v1045 = vmul.f32 %v188, %v992
    %v1046 = vmul.f32 %v190, %v993
    %v1047 = vmul.f32 %v192, %v994
    %v1048 = vmul.f32 %v194, %v995
    %v1049 = vmul.f32 %v196, %v996
    %v1050 = vadd.f32 %v1042, %v1043
    %v1051 = vadd.f32 %v1044, %v1045
    %v1052 = vadd.f32 %v1046, %v1047
    %v1053 = vadd.f32 %v1048, %v1049
    %v1054 = vadd.f32 %v1050, %v1051
    %v1055 = vadd.f32 %v1052, %v1053
    %v1056 = vadd.f32 %v1054, %v1055
    %s1057 = scalar_lea.vmem [#allocation3], 26
    %v1058 = vld [vmem:[%s1057] sm:$0x1]
    %v1059 = vld [vmem:[%s1057 + $0x1] sm:$0x1]
    %v1060 = vmul.f32 %v1011, %v1058
    %v1061 = vmul.f32 %v1011, %v1059
    %v1062 = vmul.f32 %v1026, %v1058
    %v1063 = vmul.f32 %v1026, %v1059
    %v1064 = vmul.f32 %v1041, %v1058
    %v1065 = vmul.f32 %v1041, %v1059
    %v1066 = vmul.f32 %v1056, %v1058
    %v1067 = vmul.f32 %v1056, %v1059
    %v1068 = vmul.f32 %v113, %v1060
    %v1069 = vmul.f32 %v115, %v1061
    %v1070 = vmul.f32 %v117, %v1062
    %v1071 = vmul.f32 %v119, %v1063
    %v1072 = vmul.f32 %v121, %v1064
    %v1073 = vmul.f32 %v123, %v1065
    %v1074 = vmul.f32 %v125, %v1066
    %v1075 = vmul.f32 %v127, %v1067
    %v1076 = vadd.f32 %v1068, %v1069
    %v1077 = vadd.f32 %v1070, %v1071
    %v1078 = vadd.f32 %v1072, %v1073
    %v1079 = vadd.f32 %v1074, %v1075
    %v1080 = vadd.f32 %v1076, %v1077
    %v1081 = vadd.f32 %v1078, %v1079
    %v1082 = vadd.f32 %v1080, %v1081
    %v1083 = vmul.f32 %v136, %v1060
    %v1084 = vmul.f32 %v138, %v1061
    %v1085 = vmul.f32 %v140, %v1062
    %v1086 = vmul.f32 %v142, %v1063
    %v1087 = vmul.f32 %v144, %v1064
    %v1088 = vmul.f32 %v146, %v1065
    %v1089 = vmul.f32 %v148, %v1066
    %v1090 = vmul.f32 %v150, %v1067
    %v1091 = vadd.f32 %v1083, %v1084
    %v1092 = vadd.f32 %v1085, %v1086
    %v1093 = vadd.f32 %v1087, %v1088
    %v1094 = vadd.f32 %v1089, %v1090
    %v1095 = vadd.f32 %v1091, %v1092
    %v1096 = vadd.f32 %v1093, %v1094
    %v1097 = vadd.f32 %v1095, %v1096
    %v1098 = vmul.f32 %v159, %v1060
    %v1099 = vmul.f32 %v161, %v1061
    %v1100 = vmul.f32 %v163, %v1062
    %v1101 = vmul.f32 %v165, %v1063
    %v1102 = vmul.f32 %v167, %v1064
    %v1103 = vmul.f32 %v169, %v1065
    %v1104 = vmul.f32 %v171, %v1066
    %v1105 = vmul.f32 %v173, %v1067
    %v1106 = vadd.f32 %v1098, %v1099
    %v1107 = vadd.f32 %v1100, %v1101
    %v1108 = vadd.f32 %v1102, %v1103
    %v1109 = vadd.f32 %v1104, %v1105
    %v1110 = vadd.f32 %v1106, %v1107
    %v1111 = vadd.f32 %v1108, %v1109
    %v1112 = vadd.f32 %v1110, %v1111
    %v1113 = vmul.f32 %v182, %v1060
    %v1114 = vmul.f32 %v184, %v1061
    %v1115 = vmul.f32 %v186, %v1062
    %v1116 = vmul.f32 %v188, %v1063
    %v1117 = vmul.f32 %v190, %v1064
    %v1118 = vmul.f32 %v192, %v1065
    %v1119 = vmul.f32 %v194, %v1066
    %v1120 = vmul.f32 %v196, %v1067
    %v1121 = vadd.f32 %v1113, %v1114
    %v1122 = vadd.f32 %v1115, %v1116
    %v1123 = vadd.f32 %v1117, %v1118
    %v1124 = vadd.f32 %v1119, %v1120
    %v1125 = vadd.f32 %v1121, %v1122
    %v1126 = vadd.f32 %v1123, %v1124
    %v1127 = vadd.f32 %v1125, %v1126
    %s1128 = scalar_lea.vmem [#allocation3], 28
    %v1129 = vld [vmem:[%s1128] sm:$0x1]
    %v1130 = vld [vmem:[%s1128 + $0x1] sm:$0x1]
    %v1131 = vmul.f32 %v1082, %v1129
    %v1132 = vmul.f32 %v1082, %v1130
    %v1133 = vmul.f32 %v1097, %v1129
    %v1134 = vmul.f32 %v1097, %v1130
    %v1135 = vmul.f32 %v1112, %v1129
    %v1136 = vmul.f32 %v1112, %v1130
    %v1137 = vmul.f32 %v1127, %v1129
    %v1138 = vmul.f32 %v1127, %v1130
    %v1139 = vmul.f32 %v113, %v1131
    %v1140 = vmul.f32 %v115, %v1132
    %v1141 = vmul.f32 %v117, %v1133
    %v1142 = vmul.f32 %v119, %v1134
    %v1143 = vmul.f32 %v121, %v1135
    %v1144 = vmul.f32 %v123, %v1136
    %v1145 = vmul.f32 %v125, %v1137
    %v1146 = vmul.f32 %v127, %v1138
    %v1147 = vadd.f32 %v1139, %v1140
    %v1148 = vadd.f32 %v1141, %v1142
    %v1149 = vadd.f32 %v1143, %v1144
    %v1150 = vadd.f32 %v1145, %v1146
    %v1151 = vadd.f32 %v1147, %v1148
    %v1152 = vadd.f32 %v1149, %v1150
    %v1153 = vadd.f32 %v1151, %v1152
    %v1154 = vmul.f32 %v136, %v1131
    %v1155 = vmul.f32 %v138, %v1132
    %v1156 = vmul.f32 %v140, %v1133
    %v1157 = vmul.f32 %v142, %v1134
    %v1158 = vmul.f32 %v144, %v1135
    %v1159 = vmul.f32 %v146, %v1136
    %v1160 = vmul.f32 %v148, %v1137
    %v1161 = vmul.f32 %v150, %v1138
    %v1162 = vadd.f32 %v1154, %v1155
    %v1163 = vadd.f32 %v1156, %v1157
    %v1164 = vadd.f32 %v1158, %v1159
    %v1165 = vadd.f32 %v1160, %v1161
    %v1166 = vadd.f32 %v1162, %v1163
    %v1167 = vadd.f32 %v1164, %v1165
    %v1168 = vadd.f32 %v1166, %v1167
    %v1169 = vmul.f32 %v159, %v1131
    %v1170 = vmul.f32 %v161, %v1132
    %v1171 = vmul.f32 %v163, %v1133
    %v1172 = vmul.f32 %v165, %v1134
    %v1173 = vmul.f32 %v167, %v1135
    %v1174 = vmul.f32 %v169, %v1136
    %v1175 = vmul.f32 %v171, %v1137
    %v1176 = vmul.f32 %v173, %v1138
    %v1177 = vadd.f32 %v1169, %v1170
    %v1178 = vadd.f32 %v1171, %v1172
    %v1179 = vadd.f32 %v1173, %v1174
    %v1180 = vadd.f32 %v1175, %v1176
    %v1181 = vadd.f32 %v1177, %v1178
    %v1182 = vadd.f32 %v1179, %v1180
    %v1183 = vadd.f32 %v1181, %v1182
    %v1184 = vmul.f32 %v182, %v1131
    %v1185 = vmul.f32 %v184, %v1132
    %v1186 = vmul.f32 %v186, %v1133
    %v1187 = vmul.f32 %v188, %v1134
    %v1188 = vmul.f32 %v190, %v1135
    %v1189 = vmul.f32 %v192, %v1136
    %v1190 = vmul.f32 %v194, %v1137
    %v1191 = vmul.f32 %v196, %v1138
    %v1192 = vadd.f32 %v1184, %v1185
    %v1193 = vadd.f32 %v1186, %v1187
    %v1194 = vadd.f32 %v1188, %v1189
    %v1195 = vadd.f32 %v1190, %v1191
    %v1196 = vadd.f32 %v1192, %v1193
    %v1197 = vadd.f32 %v1194, %v1195
    %v1198 = vadd.f32 %v1196, %v1197
    %s1199 = scalar_lea.vmem [#allocation3], 30
    %v1200 = vld [vmem:[%s1199] sm:$0x1]
    %v1201 = vld [vmem:[%s1199 + $0x1] sm:$0x1]
    %v1202 = vmul.f32 %v1153, %v1200
    %v1203 = vmul.f32 %v1153, %v1201
    %v1204 = vmul.f32 %v1168, %v1200
    %v1205 = vmul.f32 %v1168, %v1201
    %v1206 = vmul.f32 %v1183, %v1200
    %v1207 = vmul.f32 %v1183, %v1201
    %v1208 = vmul.f32 %v1198, %v1200
    %v1209 = vmul.f32 %v1198, %v1201
    %v1210 = vmul.f32 %v113, %v1202
    %v1211 = vmul.f32 %v115, %v1203
    %v1212 = vmul.f32 %v117, %v1204
    %v1213 = vmul.f32 %v119, %v1205
    %v1214 = vmul.f32 %v121, %v1206
    %v1215 = vmul.f32 %v123, %v1207
    %v1216 = vmul.f32 %v125, %v1208
    %v1217 = vmul.f32 %v127, %v1209
    %v1218 = vadd.f32 %v1210, %v1211
    %v1219 = vadd.f32 %v1212, %v1213
    %v1220 = vadd.f32 %v1214, %v1215
    %v1221 = vadd.f32 %v1216, %v1217
    %v1222 = vadd.f32 %v1218, %v1219
    %v1223 = vadd.f32 %v1220, %v1221
    %v1224 = vadd.f32 %v1222, %v1223
    %v1225 = vmul.f32 %v136, %v1202
    %v1226 = vmul.f32 %v138, %v1203
    %v1227 = vmul.f32 %v140, %v1204
    %v1228 = vmul.f32 %v142, %v1205
    %v1229 = vmul.f32 %v144, %v1206
    %v1230 = vmul.f32 %v146, %v1207
    %v1231 = vmul.f32 %v148, %v1208
    %v1232 = vmul.f32 %v150, %v1209
    %v1233 = vadd.f32 %v1225, %v1226
    %v1234 = vadd.f32 %v1227, %v1228
    %v1235 = vadd.f32 %v1229, %v1230
    %v1236 = vadd.f32 %v1231, %v1232
    %v1237 = vadd.f32 %v1233, %v1234
    %v1238 = vadd.f32 %v1235, %v1236
    %v1239 = vadd.f32 %v1237, %v1238
    %v1240 = vmul.f32 %v159, %v1202
    %v1241 = vmul.f32 %v161, %v1203
    %v1242 = vmul.f32 %v163, %v1204
    %v1243 = vmul.f32 %v165, %v1205
    %v1244 = vmul.f32 %v167, %v1206
    %v1245 = vmul.f32 %v169, %v1207
    %v1246 = vmul.f32 %v171, %v1208
    %v1247 = vmul.f32 %v173, %v1209
    %v1248 = vadd.f32 %v1240, %v1241
    %v1249 = vadd.f32 %v1242, %v1243
    %v1250 = vadd.f32 %v1244, %v1245
    %v1251 = vadd.f32 %v1246, %v1247
    %v1252 = vadd.f32 %v1248, %v1249
    %v1253 = vadd.f32 %v1250, %v1251
    %v1254 = vadd.f32 %v1252, %v1253
    %v1255 = vmul.f32 %v182, %v1202
    %v1256 = vmul.f32 %v184, %v1203
    %v1257 = vmul.f32 %v186, %v1204
    %v1258 = vmul.f32 %v188, %v1205
    %v1259 = vmul.f32 %v190, %v1206
    %v1260 = vmul.f32 %v192, %v1207
    %v1261 = vmul.f32 %v194, %v1208
    %v1262 = vmul.f32 %v196, %v1209
    %v1263 = vadd.f32 %v1255, %v1256
    %v1264 = vadd.f32 %v1257, %v1258
    %v1265 = vadd.f32 %v1259, %v1260
    %v1266 = vadd.f32 %v1261, %v1262
    %v1267 = vadd.f32 %v1263, %v1264
    %v1268 = vadd.f32 %v1265, %v1266
    %v1269 = vadd.f32 %v1267, %v1268
    %p1270 = scmp.ne.s32.totalorder 0, 0
    // Predicated region
    $region30: #{tpu_custom_call.1} parent=1 // pred_check
      %p1271 = pneg %p1270
    $region31: #{tpu_custom_call.1} parent=1 // pred_check_branch
      %1273 = sbr.rel (%p1271) target = $region33
    $region32: #{tpu_custom_call.1} parent=1 // pred_region
      %1274 = vst [vmem:[#allocation2] sm:$0x1] %v1224
      %1275 = vst [vmem:[%s97] sm:$0x1] %v1239
      %1276 = vst [vmem:[%s99] sm:$0x1] %v1254
      %1277 = vst [vmem:[%s101] sm:$0x1] %v1269
    $region33: #{tpu_custom_call.1} parent=1 // pred_fallthru
      _
    // Predicated region
    $region34: #{tpu_custom_call.1} parent=1 // pred_check
      %p1278 = pneg %p56
    $region35: #{tpu_custom_call.1} parent=1 // pred_check_branch
      %1280 = sbr.rel (%p1278) target = $region37
    $region36: #{tpu_custom_call.1} parent=1 // pred_region
      %s1281 = sld [smem:[#allocation9]]
      %v1282 = vstv %s1281
      %v1283 = vmul.f32 %v1282, %v1224
      %s1284 = sld [smem:[#allocation9 + $0xa]]
      %v1285 = vstv %s1284
      %v1286 = vmul.f32 %v1285, %v1239
      %s1287 = sld [smem:[#allocation9 + $0x14]]
      %v1288 = vstv %s1287
      %v1289 = vmul.f32 %v1288, %v1254
      %s1290 = sld [smem:[#allocation9 + $0x1e]]
      %v1291 = vstv %s1290
      %v1292 = vmul.f32 %v1291, %v1269
      %v1293 = vadd.f32 %v1283, %v1286
      %v1294 = vadd.f32 %v1289, %v1292
      %v1295 = vadd.f32 %v1293, %v1294
      %s1296 = sld [smem:[#allocation9 + $0x1]]
      %v1297 = vstv %s1296
      %v1298 = vmul.f32 %v1297, %v1224
      %s1299 = sld [smem:[#allocation9 + $0xb]]
      %v1300 = vstv %s1299
      %v1301 = vmul.f32 %v1300, %v1239
      %s1302 = sld [smem:[#allocation9 + $0x15]]
      %v1303 = vstv %s1302
      %v1304 = vmul.f32 %v1303, %v1254
      %s1305 = sld [smem:[#allocation9 + $0x1f]]
      %v1306 = vstv %s1305
      %v1307 = vmul.f32 %v1306, %v1269
      %v1308 = vadd.f32 %v1298, %v1301
      %v1309 = vadd.f32 %v1304, %v1307
      %v1310 = vadd.f32 %v1308, %v1309
      %s1311 = sld [smem:[#allocation9 + $0x2]]
      %v1312 = vstv %s1311
      %v1313 = vmul.f32 %v1312, %v1224
      %s1314 = sld [smem:[#allocation9 + $0xc]]
      %v1315 = vstv %s1314
      %v1316 = vmul.f32 %v1315, %v1239
      %s1317 = sld [smem:[#allocation9 + $0x16]]
      %v1318 = vstv %s1317
      %v1319 = vmul.f32 %v1318, %v1254
      %s1320 = sld [smem:[#allocation9 + $0x20]]
      %v1321 = vstv %s1320
      %v1322 = vmul.f32 %v1321, %v1269
      %v1323 = vadd.f32 %v1313, %v1316
      %v1324 = vadd.f32 %v1319, %v1322
      %v1325 = vadd.f32 %v1323, %v1324
      %s1326 = sld [smem:[#allocation9 + $0x3]]
      %v1327 = vstv %s1326
      %v1328 = vmul.f32 %v1327, %v1224
      %s1329 = sld [smem:[#allocation9 + $0xd]]
      %v1330 = vstv %s1329
      %v1331 = vmul.f32 %v1330, %v1239
      %s1332 = sld [smem:[#allocation9 + $0x17]]
      %v1333 = vstv %s1332
      %v1334 = vmul.f32 %v1333, %v1254
      %s1335 = sld [smem:[#allocation9 + $0x21]]
      %v1336 = vstv %s1335
      %v1337 = vmul.f32 %v1336, %v1269
      %v1338 = vadd.f32 %v1328, %v1331
      %v1339 = vadd.f32 %v1334, %v1337
      %v1340 = vadd.f32 %v1338, %v1339
      %s1341 = sld [smem:[#allocation9 + $0x4]]
      %v1342 = vstv %s1341
      %v1343 = vmul.f32 %v1342, %v1224
      %s1344 = sld [smem:[#allocation9 + $0xe]]
      %v1345 = vstv %s1344
      %v1346 = vmul.f32 %v1345, %v1239
      %s1347 = sld [smem:[#allocation9 + $0x18]]
      %v1348 = vstv %s1347
      %v1349 = vmul.f32 %v1348, %v1254
      %s1350 = sld [smem:[#allocation9 + $0x22]]
      %v1351 = vstv %s1350
      %v1352 = vmul.f32 %v1351, %v1269
      %v1353 = vadd.f32 %v1343, %v1346
      %v1354 = vadd.f32 %v1349, %v1352
      %v1355 = vadd.f32 %v1353, %v1354
      %s1356 = sld [smem:[#allocation9 + $0x5]]
      %v1357 = vstv %s1356
      %v1358 = vmul.f32 %v1357, %v1224
      %s1359 = sld [smem:[#allocation9 + $0xf]]
      %v1360 = vstv %s1359
      %v1361 = vmul.f32 %v1360, %v1239
      %s1362 = sld [smem:[#allocation9 + $0x19]]
      %v1363 = vstv %s1362
      %v1364 = vmul.f32 %v1363, %v1254
      %s1365 = sld [smem:[#allocation9 + $0x23]]
      %v1366 = vstv %s1365
      %v1367 = vmul.f32 %v1366, %v1269
      %v1368 = vadd.f32 %v1358, %v1361
      %v1369 = vadd.f32 %v1364, %v1367
      %v1370 = vadd.f32 %v1368, %v1369
      %s1371 = sld [smem:[#allocation9 + $0x6]]
      %v1372 = vstv %s1371
      %v1373 = vmul.f32 %v1372, %v1224
      %s1374 = sld [smem:[#allocation9 + $0x10]]
      %v1375 = vstv %s1374
      %v1376 = vmul.f32 %v1375, %v1239
      %s1377 = sld [smem:[#allocation9 + $0x1a]]
      %v1378 = vstv %s1377
      %v1379 = vmul.f32 %v1378, %v1254
      %s1380 = sld [smem:[#allocation9 + $0x24]]
      %v1381 = vstv %s1380
      %v1382 = vmul.f32 %v1381, %v1269
      %v1383 = vadd.f32 %v1373, %v1376
      %v1384 = vadd.f32 %v1379, %v1382
      %v1385 = vadd.f32 %v1383, %v1384
      %s1386 = sld [smem:[#allocation9 + $0x7]]
      %v1387 = vstv %s1386
      %v1388 = vmul.f32 %v1387, %v1224
      %s1389 = sld [smem:[#allocation9 + $0x11]]
      %v1390 = vstv %s1389
      %v1391 = vmul.f32 %v1390, %v1239
      %s1392 = sld [smem:[#allocation9 + $0x1b]]
      %v1393 = vstv %s1392
      %v1394 = vmul.f32 %v1393, %v1254
      %s1395 = sld [smem:[#allocation9 + $0x25]]
      %v1396 = vstv %s1395
      %v1397 = vmul.f32 %v1396, %v1269
      %v1398 = vadd.f32 %v1388, %v1391
      %v1399 = vadd.f32 %v1394, %v1397
      %v1400 = vadd.f32 %v1398, %v1399
      %s1401 = sld [smem:[#allocation9 + $0x8]]
      %v1402 = vstv %s1401
      %v1403 = vmul.f32 %v1402, %v1224
      %s1404 = sld [smem:[#allocation9 + $0x12]]
      %v1405 = vstv %s1404
      %v1406 = vmul.f32 %v1405, %v1239
      %s1407 = sld [smem:[#allocation9 + $0x1c]]
      %v1408 = vstv %s1407
      %v1409 = vmul.f32 %v1408, %v1254
      %s1410 = sld [smem:[#allocation9 + $0x26]]
      %v1411 = vstv %s1410
      %v1412 = vmul.f32 %v1411, %v1269
      %v1413 = vadd.f32 %v1403, %v1406
      %v1414 = vadd.f32 %v1409, %v1412
      %v1415 = vadd.f32 %v1413, %v1414
      %s1416 = sld [smem:[#allocation9 + $0x9]]
      %v1417 = vstv %s1416
      %v1418 = vmul.f32 %v1417, %v1224
      %s1419 = sld [smem:[#allocation9 + $0x13]]
      %v1420 = vstv %s1419
      %v1421 = vmul.f32 %v1420, %v1239
      %s1422 = sld [smem:[#allocation9 + $0x1d]]
      %v1423 = vstv %s1422
      %v1424 = vmul.f32 %v1423, %v1254
      %s1425 = sld [smem:[#allocation9 + $0x27]]
      %v1426 = vstv %s1425
      %v1427 = vmul.f32 %v1426, %v1269
      %v1428 = vadd.f32 %v1418, %v1421
      %v1429 = vadd.f32 %v1424, %v1427
      %v1430 = vadd.f32 %v1428, %v1429
      %v1431 = vmax.f32 %v1295, %v1310
      %v1432 = vmax.f32 %v1325, %v1340
      %v1433 = vmax.f32 %v1355, %v1370
      %v1434 = vmax.f32 %v1385, %v1400
      %v1435 = vmax.f32 %v1415, %v1430
      %v1436 = vmax.f32 %v1431, %v1432
      %v1437 = vmax.f32 %v1433, %v1434
      %v1438 = vmax.f32 %v1436, %v1437
      %v1439 = vmax.f32 %v1438, %v1435
      %v1440 = vsub.f32 %v1295, %v1439
      %v1441 = vmul.f32 %v1440, 1.442695
      %v1442 = vpow.pop %v1441
      %v1443 = vsub.f32 %v1310, %v1439
      %v1444 = vmul.f32 %v1443, 1.442695
      %v1445 = vpow.pop %v1444
      %v1446 = vsub.f32 %v1325, %v1439
      %v1447 = vmul.f32 %v1446, 1.442695
      %v1448 = vpow.pop %v1447
      %v1449 = vsub.f32 %v1340, %v1439
      %v1450 = vmul.f32 %v1449, 1.442695
      %v1451 = vpow.pop %v1450
      %v1452 = vsub.f32 %v1355, %v1439
      %v1453 = vmul.f32 %v1452, 1.442695
      %v1454 = vpow.pop %v1453
      %v1455 = vsub.f32 %v1370, %v1439
      %v1456 = vmul.f32 %v1455, 1.442695
      %v1457 = vpow.pop %v1456
      %v1458 = vsub.f32 %v1385, %v1439
      %v1459 = vmul.f32 %v1458, 1.442695
      %v1460 = vpow.pop %v1459
      %v1461 = vsub.f32 %v1400, %v1439
      %v1462 = vmul.f32 %v1461, 1.442695
      %v1463 = vpow.pop %v1462
      %v1464 = vsub.f32 %v1415, %v1439
      %v1465 = vmul.f32 %v1464, 1.442695
      %v1466 = vpow.pop %v1465
      %v1467 = vsub.f32 %v1430, %v1439
      %v1468 = vmul.f32 %v1467, 1.442695
      %v1469 = vpow.pop %v1468
      %v1470 = vadd.f32 %v1442, %v1445
      %v1471 = vadd.f32 %v1448, %v1451
      %v1472 = vadd.f32 %v1454, %v1457
      %v1473 = vadd.f32 %v1460, %v1463
      %v1474 = vadd.f32 %v1466, %v1469
      %v1475 = vadd.f32 %v1470, %v1471
      %v1476 = vadd.f32 %v1472, %v1473
      %v1477 = vadd.f32 %v1475, %v1476
      %v1478 = vadd.f32 %v1477, %v1474
      %v1479 = vlog2.pop %v1478
      %v1480 = vmul.f32 %v1479, 0.6931472
      %v1481 = vadd.f32 %v1439, %v1480
      %v1482 = vsub.f32 %v1295, %v1481
      %1483 = vst [vmem:[#allocation10] sm:$0x1] %v1482
      %v1484 = vsub.f32 %v1310, %v1481
      %s1485 = scalar_lea.vmem [#allocation10], 1
      %1486 = vst [vmem:[%s1485] sm:$0x1] %v1484
      %v1487 = vsub.f32 %v1325, %v1481
      %s1488 = scalar_lea.vmem [#allocation10], 2
      %1489 = vst [vmem:[%s1488] sm:$0x1] %v1487
      %v1490 = vsub.f32 %v1340, %v1481
      %s1491 = scalar_lea.vmem [#allocation10], 3
      %1492 = vst [vmem:[%s1491] sm:$0x1] %v1490
      %v1493 = vsub.f32 %v1355, %v1481
      %s1494 = scalar_lea.vmem [#allocation10], 4
      %1495 = vst [vmem:[%s1494] sm:$0x1] %v1493
      %v1496 = vsub.f32 %v1370, %v1481
      %s1497 = scalar_lea.vmem [#allocation10], 5
      %1498 = vst [vmem:[%s1497] sm:$0x1] %v1496
      %v1499 = vsub.f32 %v1385, %v1481
      %s1500 = scalar_lea.vmem [#allocation10], 6
      %1501 = vst [vmem:[%s1500] sm:$0x1] %v1499
      %v1502 = vsub.f32 %v1400, %v1481
      %s1503 = scalar_lea.vmem [#allocation10], 7
      %1504 = vst [vmem:[%s1503] sm:$0x1] %v1502
      %v1505 = vsub.f32 %v1415, %v1481
      %s1506 = scalar_lea.vmem [#allocation10], 8
      %1507 = vst [vmem:[%s1506] sm:$0x1] %v1505
      %v1508 = vsub.f32 %v1430, %v1481
      %s1509 = scalar_lea.vmem [#allocation10], 9
      %1510 = vst [vmem:[%s1509] sm:$0x1] %v1508
    $region37: #{tpu_custom_call.1} parent=1 // pred_fallthru
      _
    // Predicated region
    $region38: #{tpu_custom_call.1} parent=1 // pred_check
      _
    $region39: #{tpu_custom_call.1} parent=1 // pred_check_branch
      %1512 = sbr.rel (0) target = $region41
    $region40: #{tpu_custom_call.1} parent=1 // pred_region
      %1514 = vsyncadd [#allocation5], 0
      %s1515 = sshll.u32 [#allocation10], 4
      %s1516 = int_to_ptr.vmem [resolvable:$true] %s1515
      %s1517 = sshll.u32 %s3, 4
      %s1518 = int_to_ptr.hbm [resolvable:$true] %s1517
      %1523 = dma.vmem_to_hbm [thread:$0]  %s1516, 160, %s1518, [#allocation5], 16, 16, 1
    $region41: #{tpu_custom_call.1} parent=1 // pred_fallthru
      _
    // Predicated region
    $region42: #{tpu_custom_call.1} parent=1 // pred_check
      _
    $region43: #{tpu_custom_call.1} parent=1 // pred_check_branch
      %1525 = sbr.rel (0) target = $region45
    $region44: #{tpu_custom_call.1} parent=1 // pred_region
      %1527 = dma.done [#allocation5], 160
    $region45: #{tpu_custom_call.1} parent=1 // pred_fallthru
      _
    %1528 = vsyncpa [#allocation4], 1
    %1529 = vsyncpa [#allocation5], 1
    %1530 = vsyncpa [#allocation6], 1
    %1531 = vsyncpa [#allocation7], 1

</llo_original>
